<compile_context>
chip_gen: v7x
topology: tpu7x:2x2x1
jax: 0.10.0
libtpu: 0.0.40
codegen_flags: <defaults>
</compile_context>

<pallas_src>
import jax
import jax.numpy as jnp
from jax import lax
from jax.experimental import pallas as pl
from jax.experimental.pallas import tpu as pltpu


def _round_up(x, m):
    return (x + m - 1) // m * m


# ----------------------------------------------------------------------------
# Fused Pallas kernel: full SentimentLSTM forward in one invocation
# ----------------------------------------------------------------------------
def make_fused_kernel(L, T, B_pad, H, P):
    """Ref order:
      x_cat,
      layer 0: (W0_cat, bias, Whh_cat, Whr_cat)
      layer l>0: (M1, M2, bias, Whh_cat, Whr_cat)
      fcA, fcB, fc_b,
      out_ref,
      slab0, slab1, zxA, zxB
    Merged gate column layout (H-wide blocks): [i_f,i_b,f_f,f_b,o_f,o_b,g_f,g_b].
    Layer slab row t = [h_fwd(t) | h_bwd(T-1-t)]  (bwd half stored time-reversed).
    """
    H2, H4, H6, H8, P2 = 2 * H, 4 * H, 6 * H, 8 * H, 2 * P

    def kernel(*refs):
        it = iter(refs)
        x_ref = next(it)
        layer_refs = []
        for l in range(L):
            if l == 0:
                layer_refs.append((next(it), None, next(it), next(it), next(it)))
            else:
                layer_refs.append((next(it), next(it), next(it), next(it), next(it)))
        fcA_ref, fcB_ref, fcb_ref = next(it), next(it), next(it)
        out_ref = next(it)
        slab0, slab1, zxA, zxB = next(it), next(it), next(it), next(it)
        slabs = (slab0, slab1)

        for l in range(L):
            m1_ref, m2_ref, b_ref, whh_ref, whr_ref = layer_refs[l]
            cur_slab = slabs[l % 2]

            # Hoisted input projection over ALL timesteps (off the serial chain).
            if l == 0:
                # x_cat row t = [x_t | x_{T-1-t}]; W0_cat routes the two halves
                # to the fwd / bwd gate columns respectively.
                zxA[...] = (jnp.dot(x_ref[...], m1_ref[...],
                                    preferred_element_type=jnp.float32)
                            + b_ref[...])
            else:
                prev = slabs[(l - 1) % 2][...]
                # zxA row t: same-row contributions; zxB row s: contributions
                # the step consumes from row T-1-s (handles the bwd time flip).
                zxA[...] = (jnp.dot(prev, m1_ref[...],
                                    preferred_element_type=jnp.float32)
                            + b_ref[...])
                zxB[...] = jnp.dot(prev, m2_ref[...],
                                   preferred_element_type=jnp.float32)

            whh = whh_ref[...]          # (2P, 8H) block structure
            whr = whr_ref[...]          # (2H, 2P) block-diagonal
            use_zxB = l > 0

            def step(t, carry):
                h, c = carry            # h:(B_pad,2P)  c:(B_pad,2H) -- vreg carries
                rowA = pl.multiple_of(t * B_pad, B_pad)
                z = zxA[pl.ds(rowA, B_pad), :]
                if use_zxB:
                    rowB = pl.multiple_of((T - 1 - t) * B_pad, B_pad)
                    z = z + zxB[pl.ds(rowB, B_pad), :]
                z = z + jnp.dot(h, whh, preferred_element_type=jnp.float32)
                zs = jax.nn.sigmoid(z[:, :H6])       # one wide sigmoid (i,f,o both dirs)
                i_g = zs[:, 0:H2]
                f_g = zs[:, H2:H4]
                o_g = zs[:, H4:H6]
                g_g = jnp.tanh(z[:, H6:H8])          # one tanh (g both dirs)
                c_new = f_g * c + i_g * g_g
                # proj_size > 0: h = (o * tanh(c)) @ blockdiag(W_hr_f^T, W_hr_b^T)
                h_new = jnp.dot(o_g * jnp.tanh(c_new), whr,
                                preferred_element_type=jnp.float32)
                cur_slab[pl.ds(rowA, B_pad), :] = h_new   # single contiguous store
                return (h_new, c_new)

            h0 = jnp.zeros((B_pad, P2), jnp.float32)
            c0 = jnp.zeros((B_pad, H2), jnp.float32)
            # Full unroll at toy T; partial unroll keeps instruction memory sane
            # for long sequences.
            unroll = True if T <= 16 else 8
            lax.fori_loop(0, T, step, (h0, c0), unroll=unroll)

        # TODO(synk): nn.LSTM inter-layer dropout and self.dropout are
        # train-time only; the eval-mode forward is identity, nothing to emit.

        # Fused FC head on the last output timestep (t = T-1).
        last = slabs[(L - 1) % 2]
        u = last[(T - 1) * B_pad:T * B_pad, :]   # [h_fwd(T-1) | h_bwd(0)  ]
        v = last[0:B_pad, :]                     # [h_fwd(0)   | h_bwd(T-1)]
        out_ref[...] = (jnp.dot(u, fcA_ref[...], preferred_element_type=jnp.float32)
                        + jnp.dot(v, fcB_ref[...], preferred_element_type=jnp.float32)
                        + fcb_ref[...])

    return kernel


# ----------------------------------------------------------------------------
# Host-side weight packing (done ONCE, not per forward call)
# ----------------------------------------------------------------------------
def _scatter_gate_cols(w_t, direction, H):
    """w_t: (K, 4H) with PyTorch gate column order [i, f, g, o].
    Returns (K, 8H) with the columns placed at the merged positions
    [i_f,i_b,f_f,f_b,o_f,o_b,g_f,g_b] for the given direction (0=fwd, 1=bwd)."""
    K = w_t.shape[0]
    out = jnp.zeros((K, 8 * H), jnp.float32)
    for pg, base in ((0, 0), (1, 2), (2, 6), (3, 4)):   # i->0, f->2, g->6, o->4
        blk = base + direction
        out = out.at[:, blk * H:(blk + 1) * H].set(w_t[:, pg * H:(pg + 1) * H])
    return out


def pack_params(params, config):
    H = config['model']['lstm_hidden_size']
    P = config['model']['proj_size']
    L = config['model']['lstm_layers']
    packed = {'layers': []}
    for l in range(L):
        pf, pb = params['lstm'][l]
        bias = (_scatter_gate_cols((pf['b_ih'] + pf['b_hh']).reshape(1, 4 * H), 0, H)
                + _scatter_gate_cols((pb['b_ih'] + pb['b_hh']).reshape(1, 4 * H), 1, H))
        whh = jnp.concatenate(
            [_scatter_gate_cols(pf['w_hh'].T, 0, H),
             _scatter_gate_cols(pb['w_hh'].T, 1, H)], axis=0)            # (2P, 8H)
        whr = jnp.zeros((2 * H, 2 * P), jnp.float32)
        whr = whr.at[:H, :P].set(pf['w_hr'].T)
        whr = whr.at[H:, P:].set(pb['w_hr'].T)                           # (2H, 2P)
        if l == 0:
            w0 = jnp.concatenate(
                [_scatter_gate_cols(pf['w_ih'].T, 0, H),
                 _scatter_gate_cols(pb['w_ih'].T, 1, H)], axis=0)        # (2D, 8H)
            packed['layers'].append({'m1': w0, 'm2': None, 'bias': bias,
                                     'whh': whh, 'whr': whr})
        else:
            wf_t = pf['w_ih'].T                                          # (2P, 4H)
            wb_t = pb['w_ih'].T
            # slab row t = [h_f(t) | h_b(T-1-t)]:
            #   M1 consumes slab[t], M2 consumes slab[T-1-t].
            m1 = jnp.concatenate(
                [_scatter_gate_cols(wf_t[:P], 0, H),
                 _scatter_gate_cols(wb_t[P:], 1, H)], axis=0)            # (2P, 8H)
            m2 = jnp.concatenate(
                [_scatter_gate_cols(wb_t[:P], 1, H),
                 _scatter_gate_cols(wf_t[P:], 0, H)], axis=0)            # (2P, 8H)
            packed['layers'].append({'m1': m1, 'm2': m2, 'bias': bias,
                                     'whh': whh, 'whr': whr})
    fc_w_t = params['fc_w'].T                                            # (2P, O)
    O = fc_w_t.shape[1]
    packed['fcA'] = jnp.zeros_like(fc_w_t).at[:P, :].set(fc_w_t[:P, :])
    packed['fcB'] = jnp.zeros_like(fc_w_t).at[P:, :].set(fc_w_t[P:, :])
    packed['fc_b'] = params['fc_b'].reshape(1, O)
    packed['dims'] = (L, H, P, O)
    return packed


# ----------------------------------------------------------------------------
# Model forward (wrapper: one pallas_call)
# ----------------------------------------------------------------------------
def sentiment_lstm_forward(x_btd, packed):
    L, H, P, O = packed['dims']
    B, T, D = x_btd.shape
    B_pad = _round_up(max(B, 8), 8)          # f32 sublane multiple

    # time-major, batch padded; layer-0 merged input row block t = [x_t | x_{T-1-t}]
    x_tbd = jnp.transpose(x_btd, (1, 0, 2))
    x_tbd = jnp.pad(x_tbd, ((0, 0), (0, B_pad - B), (0, 0)))
    x_cat = jnp.concatenate([x_tbd, x_tbd[::-1]], axis=-1).reshape(T * B_pad, 2 * D)

    args = [x_cat]
    for l in range(L):
        lp = packed['layers'][l]
        if l == 0:
            args += [lp['m1'], lp['bias'], lp['whh'], lp['whr']]
        else:
            args += [lp['m1'], lp['m2'], lp['bias'], lp['whh'], lp['whr']]
    args += [packed['fcA'], packed['fcB'], packed['fc_b']]

    # NOTE: gridless call -> one TensorCore; for large batches on v7x a
    # parallel batch grid axis would engage the second core.
    out_padded = pl.pallas_call(
        make_fused_kernel(L, T, B_pad, H, P),
        out_shape=jax.ShapeDtypeStruct((B_pad, O), jnp.float32),
        scratch_shapes=[
            pltpu.VMEM((T * B_pad, 2 * P), jnp.float32),   # layer output slab 0
            pltpu.VMEM((T * B_pad, 2 * P), jnp.float32),   # layer output slab 1
            pltpu.VMEM((T * B_pad, 8 * H), jnp.float32),   # hoisted proj (same row)
            pltpu.VMEM((T * B_pad, 8 * H), jnp.float32),   # hoisted proj (flipped row)
        ],
    )(*args)
    return out_padded[:B]


# ----------------------------------------------------------------------------
# Pure-JAX reference (for correctness check)
# ----------------------------------------------------------------------------
def lstm_direction_ref(x_tbd, w_ih, w_hh, bias, w_hr, reverse):
    B = x_tbd.shape[1]
    H = w_ih.shape[0] // 4
    P = w_hr.shape[0]
    xs = x_tbd[::-1] if reverse else x_tbd

    def step(carry, x_t):
        h, c = carry
        z = x_t @ w_ih.T + h @ w_hh.T + bias
        i = jax.nn.sigmoid(z[:, :H])
        f = jax.nn.sigmoid(z[:, H:2 * H])
        g = jnp.tanh(z[:, 2 * H:3 * H])
        o = jax.nn.sigmoid(z[:, 3 * H:])
        c = f * c + i * g
        h = (o * jnp.tanh(c)) @ w_hr.T
        return (h, c), h

    _, ys = jax.lax.scan(
        step, (jnp.zeros((B, P), jnp.float32), jnp.zeros((B, H), jnp.float32)), xs)
    return ys[::-1] if reverse else ys


def sentiment_lstm_ref(x_btd, params, config):
    L = config['model']['lstm_layers']
    x = jnp.transpose(x_btd, (1, 0, 2))
    for layer in range(L):
        outs = []
        for d, reverse in enumerate((False, True)):
            p = params['lstm'][layer][d]
            outs.append(lstm_direction_ref(
                x, p['w_ih'], p['w_hh'], p['b_ih'] + p['b_hh'], p['w_hr'],
                reverse))
        x = jnp.concatenate(outs, axis=-1)
    last = x[-1]
    return last @ params['fc_w'].T + params['fc_b']


# ----------------------------------------------------------------------------
# Deterministic parameter init (PyTorch-style U(-1/sqrt(H), 1/sqrt(H)))
# ----------------------------------------------------------------------------
def init_params(key, config, input_dim):
    H = config['model']['lstm_hidden_size']
    P = config['model']['proj_size']
    L = config['model']['lstm_layers']
    bound = 1.0 / jnp.sqrt(H)

    def u(key, shape):
        return jax.random.uniform(key, shape, jnp.float32, -bound, bound)

    params = {'lstm': []}
    for layer in range(L):
        d_in = input_dim if layer == 0 else 2 * P
        layer_params = []
        for d in range(2):  # forward, backward
            key, k1, k2, k3, k4, k5 = jax.random.split(key, 6)
            layer_params.append({
                'w_ih': u(k1, (4 * H, d_in)),
                'w_hh': u(k2, (4 * H, P)),
                'b_ih': u(k3, (4 * H,)),
                'b_hh': u(k4, (4 * H,)),
                'w_hr': u(k5, (P, H)),
            })
        params['lstm'].append(layer_params)
    key, kw, kb = jax.random.split(key, 3)
    fb = 1.0 / jnp.sqrt(2 * P)
    params['fc_w'] = jax.random.uniform(kw, (3, 2 * P), jnp.float32, -fb, fb)
    params['fc_b'] = jax.random.uniform(kb, (3,), jnp.float32, -fb, fb)
    return params


# ----------------------------------------------------------------------------
if __name__ == "__main__":
    config = {
        'model': {
            'lstm_hidden_size': 32,
            'lstm_layers': 2,
            'proj_size': 16,
            'dropout': 0.1,   # inactive (eval-mode forward)
        }
    }
    input_dim = 8
    B, T = 2, 8

    key = jax.random.PRNGKey(0)
    key, kx, kp = jax.random.split(key, 3)
    x = jax.random.normal(kx, (B, T, input_dim), jnp.float32)
    params = init_params(kp, config, input_dim)
    packed = pack_params(params, config)      # pre-fused weights, computed once

    out = sentiment_lstm_forward(x, packed)
    out = jax.block_until_ready(out)

    ref = jax.block_until_ready(sentiment_lstm_ref(x, params, config))
    assert out.shape == (B, 3), out.shape
    assert jnp.allclose(out, ref, atol=1e-4, rtol=1e-4), (out, ref)

    print("KERNEL_OK")
</pallas_src>

<mosaic_0001>
module attributes {stable_mosaic.version = 11 : i64} {
  func.func @kernel(%arg0: memref<64x16xf32, #tpu.memory_space<vmem>>, %arg1: memref<16x256xf32, #tpu.memory_space<vmem>>, %arg2: memref<1x256xf32, #tpu.memory_space<vmem>>, %arg3: memref<32x256xf32, #tpu.memory_space<vmem>>, %arg4: memref<64x32xf32, #tpu.memory_space<vmem>>, %arg5: memref<32x256xf32, #tpu.memory_space<vmem>>, %arg6: memref<32x256xf32, #tpu.memory_space<vmem>>, %arg7: memref<1x256xf32, #tpu.memory_space<vmem>>, %arg8: memref<32x256xf32, #tpu.memory_space<vmem>>, %arg9: memref<64x32xf32, #tpu.memory_space<vmem>>, %arg10: memref<32x3xf32, #tpu.memory_space<vmem>>, %arg11: memref<32x3xf32, #tpu.memory_space<vmem>>, %arg12: memref<1x3xf32, #tpu.memory_space<vmem>>, %arg13: memref<8x3xf32, #tpu.memory_space<vmem>>, %arg14: memref<64x32xf32, #tpu.memory_space<vmem>>, %arg15: memref<64x32xf32, #tpu.memory_space<vmem>>, %arg16: memref<64x256xf32, #tpu.memory_space<vmem>>, %arg17: memref<64x256xf32, #tpu.memory_space<vmem>>) attributes {dimension_semantics = [], scalar_prefetch = 0 : i64, scratch_operands = 4 : i64, tpu.core_type = #tpu.core_type<tc>} {
    %c0 = arith.constant 0 : index
    %c0_0 = arith.constant 0 : index
    %0 = vector.load %arg0[%c0, %c0_0] : memref<64x16xf32, #tpu.memory_space<vmem>>, vector<64x16xf32>
    %c0_1 = arith.constant 0 : index
    %c0_2 = arith.constant 0 : index
    %1 = vector.load %arg1[%c0_1, %c0_2] : memref<16x256xf32, #tpu.memory_space<vmem>>, vector<16x256xf32>
    %cst = arith.constant dense<0.000000e+00> : vector<64x256xf32>
    %2 = tpu.matmul %0, %1, %cst {dimension_numbers = #tpu.dot_dimension_numbers<[1], [0], [0], [1], [0, 0, 1, 1], [], []>} : vector<64x16xf32>, vector<16x256xf32>, vector<64x256xf32> -> vector<64x256xf32>
    %c0_3 = arith.constant 0 : index
    %c0_4 = arith.constant 0 : index
    %3 = vector.load %arg2[%c0_3, %c0_4] : memref<1x256xf32, #tpu.memory_space<vmem>>, vector<1x256xf32>
    %4 = vector.broadcast %3 : vector<1x256xf32> to vector<64x256xf32>
    %5 = arith.addf %2, %4 : vector<64x256xf32>
    %c0_5 = arith.constant 0 : index
    %c0_6 = arith.constant 0 : index
    %6 = vector.load %arg16[%c0_5, %c0_6] : memref<64x256xf32, #tpu.memory_space<vmem>>, vector<64x256xf32>
    tpu.vector_store %arg16[%c0_5, %c0_6], %5 {strides = array<i32>} : memref<64x256xf32, #tpu.memory_space<vmem>>, vector<64x256xf32>,
    %c0_7 = arith.constant 0 : index
    %c0_8 = arith.constant 0 : index
    %7 = vector.load %arg3[%c0_7, %c0_8] : memref<32x256xf32, #tpu.memory_space<vmem>>, vector<32x256xf32>
    %c0_9 = arith.constant 0 : index
    %c0_10 = arith.constant 0 : index
    %8 = vector.load %arg4[%c0_9, %c0_10] : memref<64x32xf32, #tpu.memory_space<vmem>>, vector<64x32xf32>
    %cst_11 = arith.constant 0.000000e+00 : f32
    %9 = vector.broadcast %cst_11 : f32 to vector<8x32xf32>
    %cst_12 = arith.constant 0.000000e+00 : f32
    %10 = vector.broadcast %cst_12 : f32 to vector<8x64xf32>
    %c0_i32 = arith.constant 0 : i32
    %c8_i32 = arith.constant 8 : i32
    %11 = arith.muli %c0_i32, %c8_i32 : i32
    %12 = tpu.assume_multiple %11, 8 : i32
    %13 = arith.index_cast %12 : i32 to index
    %c0_13 = arith.constant 0 : index
    %14 = vector.load %arg16[%13, %c0_13] : memref<64x256xf32, #tpu.memory_space<vmem>>, vector<8x256xf32>
    %cst_14 = arith.constant dense<0.000000e+00> : vector<8x256xf32>
    %15 = tpu.matmul %9, %7, %cst_14 {dimension_numbers = #tpu.dot_dimension_numbers<[1], [0], [0], [1], [0, 0, 1, 1], [], []>} : vector<8x32xf32>, vector<32x256xf32>, vector<8x256xf32> -> vector<8x256xf32>
    %16 = arith.addf %14, %15 : vector<8x256xf32>
    %17 = vector.extract_strided_slice %16 {offsets = [0, 0], sizes = [8, 192], strides = [1, 1]} : vector<8x256xf32> to vector<8x192xf32>
    %18 = arith.negf %17 : vector<8x192xf32>
    %19 = math.exp %18 : vector<8x192xf32>
    %cst_15 = arith.constant 1.000000e+00 : f32
    %20 = vector.broadcast %cst_15 : f32 to vector<8x192xf32>
    %21 = arith.addf %20, %19 : vector<8x192xf32>
    %22 = arith.divf %20, %21 : vector<8x192xf32>
    %23 = vector.extract_strided_slice %22 {offsets = [0, 0], sizes = [8, 64], strides = [1, 1]} : vector<8x192xf32> to vector<8x64xf32>
    %24 = vector.extract_strided_slice %22 {offsets = [0, 64], sizes = [8, 64], strides = [1, 1]} : vector<8x192xf32> to vector<8x64xf32>
    %25 = vector.extract_strided_slice %22 {offsets = [0, 128], sizes = [8, 64], strides = [1, 1]} : vector<8x192xf32> to vector<8x64xf32>
    %26 = vector.extract_strided_slice %16 {offsets = [0, 192], sizes = [8, 64], strides = [1, 1]} : vector<8x256xf32> to vector<8x64xf32>
    %27 = math.tanh %26 : vector<8x64xf32>
    %28 = arith.mulf %24, %10 : vector<8x64xf32>
    %29 = arith.mulf %23, %27 : vector<8x64xf32>
    %30 = arith.addf %28, %29 : vector<8x64xf32>
    %31 = math.tanh %30 : vector<8x64xf32>
    %32 = arith.mulf %25, %31 : vector<8x64xf32>
    %cst_16 = arith.constant dense<0.000000e+00> : vector<8x32xf32>
    %33 = tpu.matmul %32, %8, %cst_16 {dimension_numbers = #tpu.dot_dimension_numbers<[1], [0], [0], [1], [0, 0, 1, 1], [], []>} : vector<8x64xf32>, vector<64x32xf32>, vector<8x32xf32> -> vector<8x32xf32>
    %34 = arith.index_cast %12 : i32 to index
    %c0_17 = arith.constant 0 : index
    %35 = vector.load %arg14[%34, %c0_17] : memref<64x32xf32, #tpu.memory_space<vmem>>, vector<8x32xf32>
    tpu.vector_store %arg14[%34, %c0_17], %33 {strides = array<i32>} : memref<64x32xf32, #tpu.memory_space<vmem>>, vector<8x32xf32>,
    %c1_i32 = arith.constant 1 : i32
    %c8_i32_18 = arith.constant 8 : i32
    %36 = arith.muli %c1_i32, %c8_i32_18 : i32
    %37 = tpu.assume_multiple %36, 8 : i32
    %38 = arith.index_cast %37 : i32 to index
    %c0_19 = arith.constant 0 : index
    %39 = vector.load %arg16[%38, %c0_19] : memref<64x256xf32, #tpu.memory_space<vmem>>, vector<8x256xf32>
    %cst_20 = arith.constant dense<0.000000e+00> : vector<8x256xf32>
    %40 = tpu.matmul %33, %7, %cst_20 {dimension_numbers = #tpu.dot_dimension_numbers<[1], [0], [0], [1], [0, 0, 1, 1], [], []>} : vector<8x32xf32>, vector<32x256xf32>, vector<8x256xf32> -> vector<8x256xf32>
    %41 = arith.addf %39, %40 : vector<8x256xf32>
    %42 = vector.extract_strided_slice %41 {offsets = [0, 0], sizes = [8, 192], strides = [1, 1]} : vector<8x256xf32> to vector<8x192xf32>
    %43 = arith.negf %42 : vector<8x192xf32>
    %44 = math.exp %43 : vector<8x192xf32>
    %cst_21 = arith.constant 1.000000e+00 : f32
    %45 = vector.broadcast %cst_21 : f32 to vector<8x192xf32>
    %46 = arith.addf %45, %44 : vector<8x192xf32>
    %47 = arith.divf %45, %46 : vector<8x192xf32>
    %48 = vector.extract_strided_slice %47 {offsets = [0, 0], sizes = [8, 64], strides = [1, 1]} : vector<8x192xf32> to vector<8x64xf32>
    %49 = vector.extract_strided_slice %47 {offsets = [0, 64], sizes = [8, 64], strides = [1, 1]} : vector<8x192xf32> to vector<8x64xf32>
    %50 = vector.extract_strided_slice %47 {offsets = [0, 128], sizes = [8, 64], strides = [1, 1]} : vector<8x192xf32> to vector<8x64xf32>
    %51 = vector.extract_strided_slice %41 {offsets = [0, 192], sizes = [8, 64], strides = [1, 1]} : vector<8x256xf32> to vector<8x64xf32>
    %52 = math.tanh %51 : vector<8x64xf32>
    %53 = arith.mulf %49, %30 : vector<8x64xf32>
    %54 = arith.mulf %48, %52 : vector<8x64xf32>
    %55 = arith.addf %53, %54 : vector<8x64xf32>
    %56 = math.tanh %55 : vector<8x64xf32>
    %57 = arith.mulf %50, %56 : vector<8x64xf32>
    %cst_22 = arith.constant dense<0.000000e+00> : vector<8x32xf32>
    %58 = tpu.matmul %57, %8, %cst_22 {dimension_numbers = #tpu.dot_dimension_numbers<[1], [0], [0], [1], [0, 0, 1, 1], [], []>} : vector<8x64xf32>, vector<64x32xf32>, vector<8x32xf32> -> vector<8x32xf32>
    %59 = arith.index_cast %37 : i32 to index
    %c0_23 = arith.constant 0 : index
    %60 = vector.load %arg14[%59, %c0_23] : memref<64x32xf32, #tpu.memory_space<vmem>>, vector<8x32xf32>
    tpu.vector_store %arg14[%59, %c0_23], %58 {strides = array<i32>} : memref<64x32xf32, #tpu.memory_space<vmem>>, vector<8x32xf32>,
    %c2_i32 = arith.constant 2 : i32
    %c8_i32_24 = arith.constant 8 : i32
    %61 = arith.muli %c2_i32, %c8_i32_24 : i32
    %62 = tpu.assume_multiple %61, 8 : i32
    %63 = arith.index_cast %62 : i32 to index
    %c0_25 = arith.constant 0 : index
    %64 = vector.load %arg16[%63, %c0_25] : memref<64x256xf32, #tpu.memory_space<vmem>>, vector<8x256xf32>
    %cst_26 = arith.constant dense<0.000000e+00> : vector<8x256xf32>
    %65 = tpu.matmul %58, %7, %cst_26 {dimension_numbers = #tpu.dot_dimension_numbers<[1], [0], [0], [1], [0, 0, 1, 1], [], []>} : vector<8x32xf32>, vector<32x256xf32>, vector<8x256xf32> -> vector<8x256xf32>
    %66 = arith.addf %64, %65 : vector<8x256xf32>
    %67 = vector.extract_strided_slice %66 {offsets = [0, 0], sizes = [8, 192], strides = [1, 1]} : vector<8x256xf32> to vector<8x192xf32>
    %68 = arith.negf %67 : vector<8x192xf32>
    %69 = math.exp %68 : vector<8x192xf32>
    %cst_27 = arith.constant 1.000000e+00 : f32
    %70 = vector.broadcast %cst_27 : f32 to vector<8x192xf32>
    %71 = arith.addf %70, %69 : vector<8x192xf32>
    %72 = arith.divf %70, %71 : vector<8x192xf32>
    %73 = vector.extract_strided_slice %72 {offsets = [0, 0], sizes = [8, 64], strides = [1, 1]} : vector<8x192xf32> to vector<8x64xf32>
    %74 = vector.extract_strided_slice %72 {offsets = [0, 64], sizes = [8, 64], strides = [1, 1]} : vector<8x192xf32> to vector<8x64xf32>
    %75 = vector.extract_strided_slice %72 {offsets = [0, 128], sizes = [8, 64], strides = [1, 1]} : vector<8x192xf32> to vector<8x64xf32>
    %76 = vector.extract_strided_slice %66 {offsets = [0, 192], sizes = [8, 64], strides = [1, 1]} : vector<8x256xf32> to vector<8x64xf32>
    %77 = math.tanh %76 : vector<8x64xf32>
    %78 = arith.mulf %74, %55 : vector<8x64xf32>
    %79 = arith.mulf %73, %77 : vector<8x64xf32>
    %80 = arith.addf %78, %79 : vector<8x64xf32>
    %81 = math.tanh %80 : vector<8x64xf32>
    %82 = arith.mulf %75, %81 : vector<8x64xf32>
    %cst_28 = arith.constant dense<0.000000e+00> : vector<8x32xf32>
    %83 = tpu.matmul %82, %8, %cst_28 {dimension_numbers = #tpu.dot_dimension_numbers<[1], [0], [0], [1], [0, 0, 1, 1], [], []>} : vector<8x64xf32>, vector<64x32xf32>, vector<8x32xf32> -> vector<8x32xf32>
    %84 = arith.index_cast %62 : i32 to index
    %c0_29 = arith.constant 0 : index
    %85 = vector.load %arg14[%84, %c0_29] : memref<64x32xf32, #tpu.memory_space<vmem>>, vector<8x32xf32>
    tpu.vector_store %arg14[%84, %c0_29], %83 {strides = array<i32>} : memref<64x32xf32, #tpu.memory_space<vmem>>, vector<8x32xf32>,
    %c3_i32 = arith.constant 3 : i32
    %c8_i32_30 = arith.constant 8 : i32
    %86 = arith.muli %c3_i32, %c8_i32_30 : i32
    %87 = tpu.assume_multiple %86, 8 : i32
    %88 = arith.index_cast %87 : i32 to index
    %c0_31 = arith.constant 0 : index
    %89 = vector.load %arg16[%88, %c0_31] : memref<64x256xf32, #tpu.memory_space<vmem>>, vector<8x256xf32>
    %cst_32 = arith.constant dense<0.000000e+00> : vector<8x256xf32>
    %90 = tpu.matmul %83, %7, %cst_32 {dimension_numbers = #tpu.dot_dimension_numbers<[1], [0], [0], [1], [0, 0, 1, 1], [], []>} : vector<8x32xf32>, vector<32x256xf32>, vector<8x256xf32> -> vector<8x256xf32>
    %91 = arith.addf %89, %90 : vector<8x256xf32>
    %92 = vector.extract_strided_slice %91 {offsets = [0, 0], sizes = [8, 192], strides = [1, 1]} : vector<8x256xf32> to vector<8x192xf32>
    %93 = arith.negf %92 : vector<8x192xf32>
    %94 = math.exp %93 : vector<8x192xf32>
    %cst_33 = arith.constant 1.000000e+00 : f32
    %95 = vector.broadcast %cst_33 : f32 to vector<8x192xf32>
    %96 = arith.addf %95, %94 : vector<8x192xf32>
    %97 = arith.divf %95, %96 : vector<8x192xf32>
    %98 = vector.extract_strided_slice %97 {offsets = [0, 0], sizes = [8, 64], strides = [1, 1]} : vector<8x192xf32> to vector<8x64xf32>
    %99 = vector.extract_strided_slice %97 {offsets = [0, 64], sizes = [8, 64], strides = [1, 1]} : vector<8x192xf32> to vector<8x64xf32>
    %100 = vector.extract_strided_slice %97 {offsets = [0, 128], sizes = [8, 64], strides = [1, 1]} : vector<8x192xf32> to vector<8x64xf32>
    %101 = vector.extract_strided_slice %91 {offsets = [0, 192], sizes = [8, 64], strides = [1, 1]} : vector<8x256xf32> to vector<8x64xf32>
    %102 = math.tanh %101 : vector<8x64xf32>
    %103 = arith.mulf %99, %80 : vector<8x64xf32>
    %104 = arith.mulf %98, %102 : vector<8x64xf32>
    %105 = arith.addf %103, %104 : vector<8x64xf32>
    %106 = math.tanh %105 : vector<8x64xf32>
    %107 = arith.mulf %100, %106 : vector<8x64xf32>
    %cst_34 = arith.constant dense<0.000000e+00> : vector<8x32xf32>
    %108 = tpu.matmul %107, %8, %cst_34 {dimension_numbers = #tpu.dot_dimension_numbers<[1], [0], [0], [1], [0, 0, 1, 1], [], []>} : vector<8x64xf32>, vector<64x32xf32>, vector<8x32xf32> -> vector<8x32xf32>
    %109 = arith.index_cast %87 : i32 to index
    %c0_35 = arith.constant 0 : index
    %110 = vector.load %arg14[%109, %c0_35] : memref<64x32xf32, #tpu.memory_space<vmem>>, vector<8x32xf32>
    tpu.vector_store %arg14[%109, %c0_35], %108 {strides = array<i32>} : memref<64x32xf32, #tpu.memory_space<vmem>>, vector<8x32xf32>,
    %c4_i32 = arith.constant 4 : i32
    %c8_i32_36 = arith.constant 8 : i32
    %111 = arith.muli %c4_i32, %c8_i32_36 : i32
    %112 = tpu.assume_multiple %111, 8 : i32
    %113 = arith.index_cast %112 : i32 to index
    %c0_37 = arith.constant 0 : index
    %114 = vector.load %arg16[%113, %c0_37] : memref<64x256xf32, #tpu.memory_space<vmem>>, vector<8x256xf32>
    %cst_38 = arith.constant dense<0.000000e+00> : vector<8x256xf32>
    %115 = tpu.matmul %108, %7, %cst_38 {dimension_numbers = #tpu.dot_dimension_numbers<[1], [0], [0], [1], [0, 0, 1, 1], [], []>} : vector<8x32xf32>, vector<32x256xf32>, vector<8x256xf32> -> vector<8x256xf32>
    %116 = arith.addf %114, %115 : vector<8x256xf32>
    %117 = vector.extract_strided_slice %116 {offsets = [0, 0], sizes = [8, 192], strides = [1, 1]} : vector<8x256xf32> to vector<8x192xf32>
    %118 = arith.negf %117 : vector<8x192xf32>
    %119 = math.exp %118 : vector<8x192xf32>
    %cst_39 = arith.constant 1.000000e+00 : f32
    %120 = vector.broadcast %cst_39 : f32 to vector<8x192xf32>
    %121 = arith.addf %120, %119 : vector<8x192xf32>
    %122 = arith.divf %120, %121 : vector<8x192xf32>
    %123 = vector.extract_strided_slice %122 {offsets = [0, 0], sizes = [8, 64], strides = [1, 1]} : vector<8x192xf32> to vector<8x64xf32>
    %124 = vector.extract_strided_slice %122 {offsets = [0, 64], sizes = [8, 64], strides = [1, 1]} : vector<8x192xf32> to vector<8x64xf32>
    %125 = vector.extract_strided_slice %122 {offsets = [0, 128], sizes = [8, 64], strides = [1, 1]} : vector<8x192xf32> to vector<8x64xf32>
    %126 = vector.extract_strided_slice %116 {offsets = [0, 192], sizes = [8, 64], strides = [1, 1]} : vector<8x256xf32> to vector<8x64xf32>
    %127 = math.tanh %126 : vector<8x64xf32>
    %128 = arith.mulf %124, %105 : vector<8x64xf32>
    %129 = arith.mulf %123, %127 : vector<8x64xf32>
    %130 = arith.addf %128, %129 : vector<8x64xf32>
    %131 = math.tanh %130 : vector<8x64xf32>
    %132 = arith.mulf %125, %131 : vector<8x64xf32>
    %cst_40 = arith.constant dense<0.000000e+00> : vector<8x32xf32>
    %133 = tpu.matmul %132, %8, %cst_40 {dimension_numbers = #tpu.dot_dimension_numbers<[1], [0], [0], [1], [0, 0, 1, 1], [], []>} : vector<8x64xf32>, vector<64x32xf32>, vector<8x32xf32> -> vector<8x32xf32>
    %134 = arith.index_cast %112 : i32 to index
    %c0_41 = arith.constant 0 : index
    %135 = vector.load %arg14[%134, %c0_41] : memref<64x32xf32, #tpu.memory_space<vmem>>, vector<8x32xf32>
    tpu.vector_store %arg14[%134, %c0_41], %133 {strides = array<i32>} : memref<64x32xf32, #tpu.memory_space<vmem>>, vector<8x32xf32>,
    %c5_i32 = arith.constant 5 : i32
    %c8_i32_42 = arith.constant 8 : i32
    %136 = arith.muli %c5_i32, %c8_i32_42 : i32
    %137 = tpu.assume_multiple %136, 8 : i32
    %138 = arith.index_cast %137 : i32 to index
    %c0_43 = arith.constant 0 : index
    %139 = vector.load %arg16[%138, %c0_43] : memref<64x256xf32, #tpu.memory_space<vmem>>, vector<8x256xf32>
    %cst_44 = arith.constant dense<0.000000e+00> : vector<8x256xf32>
    %140 = tpu.matmul %133, %7, %cst_44 {dimension_numbers = #tpu.dot_dimension_numbers<[1], [0], [0], [1], [0, 0, 1, 1], [], []>} : vector<8x32xf32>, vector<32x256xf32>, vector<8x256xf32> -> vector<8x256xf32>
    %141 = arith.addf %139, %140 : vector<8x256xf32>
    %142 = vector.extract_strided_slice %141 {offsets = [0, 0], sizes = [8, 192], strides = [1, 1]} : vector<8x256xf32> to vector<8x192xf32>
    %143 = arith.negf %142 : vector<8x192xf32>
    %144 = math.exp %143 : vector<8x192xf32>
    %cst_45 = arith.constant 1.000000e+00 : f32
    %145 = vector.broadcast %cst_45 : f32 to vector<8x192xf32>
    %146 = arith.addf %145, %144 : vector<8x192xf32>
    %147 = arith.divf %145, %146 : vector<8x192xf32>
    %148 = vector.extract_strided_slice %147 {offsets = [0, 0], sizes = [8, 64], strides = [1, 1]} : vector<8x192xf32> to vector<8x64xf32>
    %149 = vector.extract_strided_slice %147 {offsets = [0, 64], sizes = [8, 64], strides = [1, 1]} : vector<8x192xf32> to vector<8x64xf32>
    %150 = vector.extract_strided_slice %147 {offsets = [0, 128], sizes = [8, 64], strides = [1, 1]} : vector<8x192xf32> to vector<8x64xf32>
    %151 = vector.extract_strided_slice %141 {offsets = [0, 192], sizes = [8, 64], strides = [1, 1]} : vector<8x256xf32> to vector<8x64xf32>
    %152 = math.tanh %151 : vector<8x64xf32>
    %153 = arith.mulf %149, %130 : vector<8x64xf32>
    %154 = arith.mulf %148, %152 : vector<8x64xf32>
    %155 = arith.addf %153, %154 : vector<8x64xf32>
    %156 = math.tanh %155 : vector<8x64xf32>
    %157 = arith.mulf %150, %156 : vector<8x64xf32>
    %cst_46 = arith.constant dense<0.000000e+00> : vector<8x32xf32>
    %158 = tpu.matmul %157, %8, %cst_46 {dimension_numbers = #tpu.dot_dimension_numbers<[1], [0], [0], [1], [0, 0, 1, 1], [], []>} : vector<8x64xf32>, vector<64x32xf32>, vector<8x32xf32> -> vector<8x32xf32>
    %159 = arith.index_cast %137 : i32 to index
    %c0_47 = arith.constant 0 : index
    %160 = vector.load %arg14[%159, %c0_47] : memref<64x32xf32, #tpu.memory_space<vmem>>, vector<8x32xf32>
    tpu.vector_store %arg14[%159, %c0_47], %158 {strides = array<i32>} : memref<64x32xf32, #tpu.memory_space<vmem>>, vector<8x32xf32>,
    %c6_i32 = arith.constant 6 : i32
    %c8_i32_48 = arith.constant 8 : i32
    %161 = arith.muli %c6_i32, %c8_i32_48 : i32
    %162 = tpu.assume_multiple %161, 8 : i32
    %163 = arith.index_cast %162 : i32 to index
    %c0_49 = arith.constant 0 : index
    %164 = vector.load %arg16[%163, %c0_49] : memref<64x256xf32, #tpu.memory_space<vmem>>, vector<8x256xf32>
    %cst_50 = arith.constant dense<0.000000e+00> : vector<8x256xf32>
    %165 = tpu.matmul %158, %7, %cst_50 {dimension_numbers = #tpu.dot_dimension_numbers<[1], [0], [0], [1], [0, 0, 1, 1], [], []>} : vector<8x32xf32>, vector<32x256xf32>, vector<8x256xf32> -> vector<8x256xf32>
    %166 = arith.addf %164, %165 : vector<8x256xf32>
    %167 = vector.extract_strided_slice %166 {offsets = [0, 0], sizes = [8, 192], strides = [1, 1]} : vector<8x256xf32> to vector<8x192xf32>
    %168 = arith.negf %167 : vector<8x192xf32>
    %169 = math.exp %168 : vector<8x192xf32>
    %cst_51 = arith.constant 1.000000e+00 : f32
    %170 = vector.broadcast %cst_51 : f32 to vector<8x192xf32>
    %171 = arith.addf %170, %169 : vector<8x192xf32>
    %172 = arith.divf %170, %171 : vector<8x192xf32>
    %173 = vector.extract_strided_slice %172 {offsets = [0, 0], sizes = [8, 64], strides = [1, 1]} : vector<8x192xf32> to vector<8x64xf32>
    %174 = vector.extract_strided_slice %172 {offsets = [0, 64], sizes = [8, 64], strides = [1, 1]} : vector<8x192xf32> to vector<8x64xf32>
    %175 = vector.extract_strided_slice %172 {offsets = [0, 128], sizes = [8, 64], strides = [1, 1]} : vector<8x192xf32> to vector<8x64xf32>
    %176 = vector.extract_strided_slice %166 {offsets = [0, 192], sizes = [8, 64], strides = [1, 1]} : vector<8x256xf32> to vector<8x64xf32>
    %177 = math.tanh %176 : vector<8x64xf32>
    %178 = arith.mulf %174, %155 : vector<8x64xf32>
    %179 = arith.mulf %173, %177 : vector<8x64xf32>
    %180 = arith.addf %178, %179 : vector<8x64xf32>
    %181 = math.tanh %180 : vector<8x64xf32>
    %182 = arith.mulf %175, %181 : vector<8x64xf32>
    %cst_52 = arith.constant dense<0.000000e+00> : vector<8x32xf32>
    %183 = tpu.matmul %182, %8, %cst_52 {dimension_numbers = #tpu.dot_dimension_numbers<[1], [0], [0], [1], [0, 0, 1, 1], [], []>} : vector<8x64xf32>, vector<64x32xf32>, vector<8x32xf32> -> vector<8x32xf32>
    %184 = arith.index_cast %162 : i32 to index
    %c0_53 = arith.constant 0 : index
    %185 = vector.load %arg14[%184, %c0_53] : memref<64x32xf32, #tpu.memory_space<vmem>>, vector<8x32xf32>
    tpu.vector_store %arg14[%184, %c0_53], %183 {strides = array<i32>} : memref<64x32xf32, #tpu.memory_space<vmem>>, vector<8x32xf32>,
    %c7_i32 = arith.constant 7 : i32
    %c8_i32_54 = arith.constant 8 : i32
    %186 = arith.muli %c7_i32, %c8_i32_54 : i32
    %187 = tpu.assume_multiple %186, 8 : i32
    %188 = arith.index_cast %187 : i32 to index
    %c0_55 = arith.constant 0 : index
    %189 = vector.load %arg16[%188, %c0_55] : memref<64x256xf32, #tpu.memory_space<vmem>>, vector<8x256xf32>
    %cst_56 = arith.constant dense<0.000000e+00> : vector<8x256xf32>
    %190 = tpu.matmul %183, %7, %cst_56 {dimension_numbers = #tpu.dot_dimension_numbers<[1], [0], [0], [1], [0, 0, 1, 1], [], []>} : vector<8x32xf32>, vector<32x256xf32>, vector<8x256xf32> -> vector<8x256xf32>
    %191 = arith.addf %189, %190 : vector<8x256xf32>
    %192 = vector.extract_strided_slice %191 {offsets = [0, 0], sizes = [8, 192], strides = [1, 1]} : vector<8x256xf32> to vector<8x192xf32>
    %193 = arith.negf %192 : vector<8x192xf32>
    %194 = math.exp %193 : vector<8x192xf32>
    %cst_57 = arith.constant 1.000000e+00 : f32
    %195 = vector.broadcast %cst_57 : f32 to vector<8x192xf32>
    %196 = arith.addf %195, %194 : vector<8x192xf32>
    %197 = arith.divf %195, %196 : vector<8x192xf32>
    %198 = vector.extract_strided_slice %197 {offsets = [0, 0], sizes = [8, 64], strides = [1, 1]} : vector<8x192xf32> to vector<8x64xf32>
    %199 = vector.extract_strided_slice %197 {offsets = [0, 64], sizes = [8, 64], strides = [1, 1]} : vector<8x192xf32> to vector<8x64xf32>
    %200 = vector.extract_strided_slice %197 {offsets = [0, 128], sizes = [8, 64], strides = [1, 1]} : vector<8x192xf32> to vector<8x64xf32>
    %201 = vector.extract_strided_slice %191 {offsets = [0, 192], sizes = [8, 64], strides = [1, 1]} : vector<8x256xf32> to vector<8x64xf32>
    %202 = math.tanh %201 : vector<8x64xf32>
    %203 = arith.mulf %199, %180 : vector<8x64xf32>
    %204 = arith.mulf %198, %202 : vector<8x64xf32>
    %205 = arith.addf %203, %204 : vector<8x64xf32>
    %206 = math.tanh %205 : vector<8x64xf32>
    %207 = arith.mulf %200, %206 : vector<8x64xf32>
    %cst_58 = arith.constant dense<0.000000e+00> : vector<8x32xf32>
    %208 = tpu.matmul %207, %8, %cst_58 {dimension_numbers = #tpu.dot_dimension_numbers<[1], [0], [0], [1], [0, 0, 1, 1], [], []>} : vector<8x64xf32>, vector<64x32xf32>, vector<8x32xf32> -> vector<8x32xf32>
    %209 = arith.index_cast %187 : i32 to index
    %c0_59 = arith.constant 0 : index
    %210 = vector.load %arg14[%209, %c0_59] : memref<64x32xf32, #tpu.memory_space<vmem>>, vector<8x32xf32>
    tpu.vector_store %arg14[%209, %c0_59], %208 {strides = array<i32>} : memref<64x32xf32, #tpu.memory_space<vmem>>, vector<8x32xf32>,
    %c8_i32_60 = arith.constant 8 : i32
    %c0_61 = arith.constant 0 : index
    %c0_62 = arith.constant 0 : index
    %211 = vector.load %arg14[%c0_61, %c0_62] : memref<64x32xf32, #tpu.memory_space<vmem>>, vector<64x32xf32>
    %c0_63 = arith.constant 0 : index
    %c0_64 = arith.constant 0 : index
    %212 = vector.load %arg5[%c0_63, %c0_64] : memref<32x256xf32, #tpu.memory_space<vmem>>, vector<32x256xf32>
    %cst_65 = arith.constant dense<0.000000e+00> : vector<64x256xf32>
    %213 = tpu.matmul %211, %212, %cst_65 {dimension_numbers = #tpu.dot_dimension_numbers<[1], [0], [0], [1], [0, 0, 1, 1], [], []>} : vector<64x32xf32>, vector<32x256xf32>, vector<64x256xf32> -> vector<64x256xf32>
    %c0_66 = arith.constant 0 : index
    %c0_67 = arith.constant 0 : index
    %214 = vector.load %arg7[%c0_66, %c0_67] : memref<1x256xf32, #tpu.memory_space<vmem>>, vector<1x256xf32>
    %215 = vector.broadcast %214 : vector<1x256xf32> to vector<64x256xf32>
    %216 = arith.addf %213, %215 : vector<64x256xf32>
    %c0_68 = arith.constant 0 : index
    %c0_69 = arith.constant 0 : index
    %217 = vector.load %arg16[%c0_68, %c0_69] : memref<64x256xf32, #tpu.memory_space<vmem>>, vector<64x256xf32>
    tpu.vector_store %arg16[%c0_68, %c0_69], %216 {strides = array<i32>} : memref<64x256xf32, #tpu.memory_space<vmem>>, vector<64x256xf32>,
    %c0_70 = arith.constant 0 : index
    %c0_71 = arith.constant 0 : index
    %218 = vector.load %arg6[%c0_70, %c0_71] : memref<32x256xf32, #tpu.memory_space<vmem>>, vector<32x256xf32>
    %cst_72 = arith.constant dense<0.000000e+00> : vector<64x256xf32>
    %219 = tpu.matmul %211, %218, %cst_72 {dimension_numbers = #tpu.dot_dimension_numbers<[1], [0], [0], [1], [0, 0, 1, 1], [], []>} : vector<64x32xf32>, vector<32x256xf32>, vector<64x256xf32> -> vector<64x256xf32>
    %c0_73 = arith.constant 0 : index
    %c0_74 = arith.constant 0 : index
    %220 = vector.load %arg17[%c0_73, %c0_74] : memref<64x256xf32, #tpu.memory_space<vmem>>, vector<64x256xf32>
    tpu.vector_store %arg17[%c0_73, %c0_74], %219 {strides = array<i32>} : memref<64x256xf32, #tpu.memory_space<vmem>>, vector<64x256xf32>,
    %c0_75 = arith.constant 0 : index
    %c0_76 = arith.constant 0 : index
    %221 = vector.load %arg8[%c0_75, %c0_76] : memref<32x256xf32, #tpu.memory_space<vmem>>, vector<32x256xf32>
    %c0_77 = arith.constant 0 : index
    %c0_78 = arith.constant 0 : index
    %222 = vector.load %arg9[%c0_77, %c0_78] : memref<64x32xf32, #tpu.memory_space<vmem>>, vector<64x32xf32>
    %cst_79 = arith.constant 0.000000e+00 : f32
    %223 = vector.broadcast %cst_79 : f32 to vector<8x32xf32>
    %cst_80 = arith.constant 0.000000e+00 : f32
    %224 = vector.broadcast %cst_80 : f32 to vector<8x64xf32>
    %c0_i32_81 = arith.constant 0 : i32
    %c8_i32_82 = arith.constant 8 : i32
    %225 = arith.muli %c0_i32_81, %c8_i32_82 : i32
    %226 = tpu.assume_multiple %225, 8 : i32
    %227 = arith.index_cast %226 : i32 to index
    %c0_83 = arith.constant 0 : index
    %228 = vector.load %arg16[%227, %c0_83] : memref<64x256xf32, #tpu.memory_space<vmem>>, vector<8x256xf32>
    %c7_i32_84 = arith.constant 7 : i32
    %229 = arith.subi %c7_i32_84, %c0_i32_81 : i32
    %c8_i32_85 = arith.constant 8 : i32
    %230 = arith.muli %229, %c8_i32_85 : i32
    %231 = tpu.assume_multiple %230, 8 : i32
    %232 = arith.index_cast %231 : i32 to index
    %c0_86 = arith.constant 0 : index
    %233 = vector.load %arg17[%232, %c0_86] : memref<64x256xf32, #tpu.memory_space<vmem>>, vector<8x256xf32>
    %234 = arith.addf %228, %233 : vector<8x256xf32>
    %cst_87 = arith.constant dense<0.000000e+00> : vector<8x256xf32>
    %235 = tpu.matmul %223, %221, %cst_87 {dimension_numbers = #tpu.dot_dimension_numbers<[1], [0], [0], [1], [0, 0, 1, 1], [], []>} : vector<8x32xf32>, vector<32x256xf32>, vector<8x256xf32> -> vector<8x256xf32>
    %236 = arith.addf %234, %235 : vector<8x256xf32>
    %237 = vector.extract_strided_slice %236 {offsets = [0, 0], sizes = [8, 192], strides = [1, 1]} : vector<8x256xf32> to vector<8x192xf32>
    %238 = arith.negf %237 : vector<8x192xf32>
    %239 = math.exp %238 : vector<8x192xf32>
    %cst_88 = arith.constant 1.000000e+00 : f32
    %240 = vector.broadcast %cst_88 : f32 to vector<8x192xf32>
    %241 = arith.addf %240, %239 : vector<8x192xf32>
    %242 = arith.divf %240, %241 : vector<8x192xf32>
    %243 = vector.extract_strided_slice %242 {offsets = [0, 0], sizes = [8, 64], strides = [1, 1]} : vector<8x192xf32> to vector<8x64xf32>
    %244 = vector.extract_strided_slice %242 {offsets = [0, 64], sizes = [8, 64], strides = [1, 1]} : vector<8x192xf32> to vector<8x64xf32>
    %245 = vector.extract_strided_slice %242 {offsets = [0, 128], sizes = [8, 64], strides = [1, 1]} : vector<8x192xf32> to vector<8x64xf32>
    %246 = vector.extract_strided_slice %236 {offsets = [0, 192], sizes = [8, 64], strides = [1, 1]} : vector<8x256xf32> to vector<8x64xf32>
    %247 = math.tanh %246 : vector<8x64xf32>
    %248 = arith.mulf %244, %224 : vector<8x64xf32>
    %249 = arith.mulf %243, %247 : vector<8x64xf32>
    %250 = arith.addf %248, %249 : vector<8x64xf32>
    %251 = math.tanh %250 : vector<8x64xf32>
    %252 = arith.mulf %245, %251 : vector<8x64xf32>
    %cst_89 = arith.constant dense<0.000000e+00> : vector<8x32xf32>
    %253 = tpu.matmul %252, %222, %cst_89 {dimension_numbers = #tpu.dot_dimension_numbers<[1], [0], [0], [1], [0, 0, 1, 1], [], []>} : vector<8x64xf32>, vector<64x32xf32>, vector<8x32xf32> -> vector<8x32xf32>
    %254 = arith.index_cast %226 : i32 to index
    %c0_90 = arith.constant 0 : index
    %255 = vector.load %arg15[%254, %c0_90] : memref<64x32xf32, #tpu.memory_space<vmem>>, vector<8x32xf32>
    tpu.vector_store %arg15[%254, %c0_90], %253 {strides = array<i32>} : memref<64x32xf32, #tpu.memory_space<vmem>>, vector<8x32xf32>,
    %c1_i32_91 = arith.constant 1 : i32
    %c8_i32_92 = arith.constant 8 : i32
    %256 = arith.muli %c1_i32_91, %c8_i32_92 : i32
    %257 = tpu.assume_multiple %256, 8 : i32
    %258 = arith.index_cast %257 : i32 to index
    %c0_93 = arith.constant 0 : index
    %259 = vector.load %arg16[%258, %c0_93] : memref<64x256xf32, #tpu.memory_space<vmem>>, vector<8x256xf32>
    %c7_i32_94 = arith.constant 7 : i32
    %260 = arith.subi %c7_i32_94, %c1_i32_91 : i32
    %c8_i32_95 = arith.constant 8 : i32
    %261 = arith.muli %260, %c8_i32_95 : i32
    %262 = tpu.assume_multiple %261, 8 : i32
    %263 = arith.index_cast %262 : i32 to index
    %c0_96 = arith.constant 0 : index
    %264 = vector.load %arg17[%263, %c0_96] : memref<64x256xf32, #tpu.memory_space<vmem>>, vector<8x256xf32>
    %265 = arith.addf %259, %264 : vector<8x256xf32>
    %cst_97 = arith.constant dense<0.000000e+00> : vector<8x256xf32>
    %266 = tpu.matmul %253, %221, %cst_97 {dimension_numbers = #tpu.dot_dimension_numbers<[1], [0], [0], [1], [0, 0, 1, 1], [], []>} : vector<8x32xf32>, vector<32x256xf32>, vector<8x256xf32> -> vector<8x256xf32>
    %267 = arith.addf %265, %266 : vector<8x256xf32>
    %268 = vector.extract_strided_slice %267 {offsets = [0, 0], sizes = [8, 192], strides = [1, 1]} : vector<8x256xf32> to vector<8x192xf32>
    %269 = arith.negf %268 : vector<8x192xf32>
    %270 = math.exp %269 : vector<8x192xf32>
    %cst_98 = arith.constant 1.000000e+00 : f32
    %271 = vector.broadcast %cst_98 : f32 to vector<8x192xf32>
    %272 = arith.addf %271, %270 : vector<8x192xf32>
    %273 = arith.divf %271, %272 : vector<8x192xf32>
    %274 = vector.extract_strided_slice %273 {offsets = [0, 0], sizes = [8, 64], strides = [1, 1]} : vector<8x192xf32> to vector<8x64xf32>
    %275 = vector.extract_strided_slice %273 {offsets = [0, 64], sizes = [8, 64], strides = [1, 1]} : vector<8x192xf32> to vector<8x64xf32>
    %276 = vector.extract_strided_slice %273 {offsets = [0, 128], sizes = [8, 64], strides = [1, 1]} : vector<8x192xf32> to vector<8x64xf32>
    %277 = vector.extract_strided_slice %267 {offsets = [0, 192], sizes = [8, 64], strides = [1, 1]} : vector<8x256xf32> to vector<8x64xf32>
    %278 = math.tanh %277 : vector<8x64xf32>
    %279 = arith.mulf %275, %250 : vector<8x64xf32>
    %280 = arith.mulf %274, %278 : vector<8x64xf32>
    %281 = arith.addf %279, %280 : vector<8x64xf32>
    %282 = math.tanh %281 : vector<8x64xf32>
    %283 = arith.mulf %276, %282 : vector<8x64xf32>
    %cst_99 = arith.constant dense<0.000000e+00> : vector<8x32xf32>
    %284 = tpu.matmul %283, %222, %cst_99 {dimension_numbers = #tpu.dot_dimension_numbers<[1], [0], [0], [1], [0, 0, 1, 1], [], []>} : vector<8x64xf32>, vector<64x32xf32>, vector<8x32xf32> -> vector<8x32xf32>
    %285 = arith.index_cast %257 : i32 to index
    %c0_100 = arith.constant 0 : index
    %286 = vector.load %arg15[%285, %c0_100] : memref<64x32xf32, #tpu.memory_space<vmem>>, vector<8x32xf32>
    tpu.vector_store %arg15[%285, %c0_100], %284 {strides = array<i32>} : memref<64x32xf32, #tpu.memory_space<vmem>>, vector<8x32xf32>,
    %c2_i32_101 = arith.constant 2 : i32
    %c8_i32_102 = arith.constant 8 : i32
    %287 = arith.muli %c2_i32_101, %c8_i32_102 : i32
    %288 = tpu.assume_multiple %287, 8 : i32
    %289 = arith.index_cast %288 : i32 to index
    %c0_103 = arith.constant 0 : index
    %290 = vector.load %arg16[%289, %c0_103] : memref<64x256xf32, #tpu.memory_space<vmem>>, vector<8x256xf32>
    %c7_i32_104 = arith.constant 7 : i32
    %291 = arith.subi %c7_i32_104, %c2_i32_101 : i32
    %c8_i32_105 = arith.constant 8 : i32
    %292 = arith.muli %291, %c8_i32_105 : i32
    %293 = tpu.assume_multiple %292, 8 : i32
    %294 = arith.index_cast %293 : i32 to index
    %c0_106 = arith.constant 0 : index
    %295 = vector.load %arg17[%294, %c0_106] : memref<64x256xf32, #tpu.memory_space<vmem>>, vector<8x256xf32>
    %296 = arith.addf %290, %295 : vector<8x256xf32>
    %cst_107 = arith.constant dense<0.000000e+00> : vector<8x256xf32>
    %297 = tpu.matmul %284, %221, %cst_107 {dimension_numbers = #tpu.dot_dimension_numbers<[1], [0], [0], [1], [0, 0, 1, 1], [], []>} : vector<8x32xf32>, vector<32x256xf32>, vector<8x256xf32> -> vector<8x256xf32>
    %298 = arith.addf %296, %297 : vector<8x256xf32>
    %299 = vector.extract_strided_slice %298 {offsets = [0, 0], sizes = [8, 192], strides = [1, 1]} : vector<8x256xf32> to vector<8x192xf32>
    %300 = arith.negf %299 : vector<8x192xf32>
    %301 = math.exp %300 : vector<8x192xf32>
    %cst_108 = arith.constant 1.000000e+00 : f32
    %302 = vector.broadcast %cst_108 : f32 to vector<8x192xf32>
    %303 = arith.addf %302, %301 : vector<8x192xf32>
    %304 = arith.divf %302, %303 : vector<8x192xf32>
    %305 = vector.extract_strided_slice %304 {offsets = [0, 0], sizes = [8, 64], strides = [1, 1]} : vector<8x192xf32> to vector<8x64xf32>
    %306 = vector.extract_strided_slice %304 {offsets = [0, 64], sizes = [8, 64], strides = [1, 1]} : vector<8x192xf32> to vector<8x64xf32>
    %307 = vector.extract_strided_slice %304 {offsets = [0, 128], sizes = [8, 64], strides = [1, 1]} : vector<8x192xf32> to vector<8x64xf32>
    %308 = vector.extract_strided_slice %298 {offsets = [0, 192], sizes = [8, 64], strides = [1, 1]} : vector<8x256xf32> to vector<8x64xf32>
    %309 = math.tanh %308 : vector<8x64xf32>
    %310 = arith.mulf %306, %281 : vector<8x64xf32>
    %311 = arith.mulf %305, %309 : vector<8x64xf32>
    %312 = arith.addf %310, %311 : vector<8x64xf32>
    %313 = math.tanh %312 : vector<8x64xf32>
    %314 = arith.mulf %307, %313 : vector<8x64xf32>
    %cst_109 = arith.constant dense<0.000000e+00> : vector<8x32xf32>
    %315 = tpu.matmul %314, %222, %cst_109 {dimension_numbers = #tpu.dot_dimension_numbers<[1], [0], [0], [1], [0, 0, 1, 1], [], []>} : vector<8x64xf32>, vector<64x32xf32>, vector<8x32xf32> -> vector<8x32xf32>
    %316 = arith.index_cast %288 : i32 to index
    %c0_110 = arith.constant 0 : index
    %317 = vector.load %arg15[%316, %c0_110] : memref<64x32xf32, #tpu.memory_space<vmem>>, vector<8x32xf32>
    tpu.vector_store %arg15[%316, %c0_110], %315 {strides = array<i32>} : memref<64x32xf32, #tpu.memory_space<vmem>>, vector<8x32xf32>,
    %c3_i32_111 = arith.constant 3 : i32
    %c8_i32_112 = arith.constant 8 : i32
    %318 = arith.muli %c3_i32_111, %c8_i32_112 : i32
    %319 = tpu.assume_multiple %318, 8 : i32
    %320 = arith.index_cast %319 : i32 to index
    %c0_113 = arith.constant 0 : index
    %321 = vector.load %arg16[%320, %c0_113] : memref<64x256xf32, #tpu.memory_space<vmem>>, vector<8x256xf32>
    %c7_i32_114 = arith.constant 7 : i32
    %322 = arith.subi %c7_i32_114, %c3_i32_111 : i32
    %c8_i32_115 = arith.constant 8 : i32
    %323 = arith.muli %322, %c8_i32_115 : i32
    %324 = tpu.assume_multiple %323, 8 : i32
    %325 = arith.index_cast %324 : i32 to index
    %c0_116 = arith.constant 0 : index
    %326 = vector.load %arg17[%325, %c0_116] : memref<64x256xf32, #tpu.memory_space<vmem>>, vector<8x256xf32>
    %327 = arith.addf %321, %326 : vector<8x256xf32>
    %cst_117 = arith.constant dense<0.000000e+00> : vector<8x256xf32>
    %328 = tpu.matmul %315, %221, %cst_117 {dimension_numbers = #tpu.dot_dimension_numbers<[1], [0], [0], [1], [0, 0, 1, 1], [], []>} : vector<8x32xf32>, vector<32x256xf32>, vector<8x256xf32> -> vector<8x256xf32>
    %329 = arith.addf %327, %328 : vector<8x256xf32>
    %330 = vector.extract_strided_slice %329 {offsets = [0, 0], sizes = [8, 192], strides = [1, 1]} : vector<8x256xf32> to vector<8x192xf32>
    %331 = arith.negf %330 : vector<8x192xf32>
    %332 = math.exp %331 : vector<8x192xf32>
    %cst_118 = arith.constant 1.000000e+00 : f32
    %333 = vector.broadcast %cst_118 : f32 to vector<8x192xf32>
    %334 = arith.addf %333, %332 : vector<8x192xf32>
    %335 = arith.divf %333, %334 : vector<8x192xf32>
    %336 = vector.extract_strided_slice %335 {offsets = [0, 0], sizes = [8, 64], strides = [1, 1]} : vector<8x192xf32> to vector<8x64xf32>
    %337 = vector.extract_strided_slice %335 {offsets = [0, 64], sizes = [8, 64], strides = [1, 1]} : vector<8x192xf32> to vector<8x64xf32>
    %338 = vector.extract_strided_slice %335 {offsets = [0, 128], sizes = [8, 64], strides = [1, 1]} : vector<8x192xf32> to vector<8x64xf32>
    %339 = vector.extract_strided_slice %329 {offsets = [0, 192], sizes = [8, 64], strides = [1, 1]} : vector<8x256xf32> to vector<8x64xf32>
    %340 = math.tanh %339 : vector<8x64xf32>
    %341 = arith.mulf %337, %312 : vector<8x64xf32>
    %342 = arith.mulf %336, %340 : vector<8x64xf32>
    %343 = arith.addf %341, %342 : vector<8x64xf32>
    %344 = math.tanh %343 : vector<8x64xf32>
    %345 = arith.mulf %338, %344 : vector<8x64xf32>
    %cst_119 = arith.constant dense<0.000000e+00> : vector<8x32xf32>
    %346 = tpu.matmul %345, %222, %cst_119 {dimension_numbers = #tpu.dot_dimension_numbers<[1], [0], [0], [1], [0, 0, 1, 1], [], []>} : vector<8x64xf32>, vector<64x32xf32>, vector<8x32xf32> -> vector<8x32xf32>
    %347 = arith.index_cast %319 : i32 to index
    %c0_120 = arith.constant 0 : index
    %348 = vector.load %arg15[%347, %c0_120] : memref<64x32xf32, #tpu.memory_space<vmem>>, vector<8x32xf32>
    tpu.vector_store %arg15[%347, %c0_120], %346 {strides = array<i32>} : memref<64x32xf32, #tpu.memory_space<vmem>>, vector<8x32xf32>,
    %c4_i32_121 = arith.constant 4 : i32
    %c8_i32_122 = arith.constant 8 : i32
    %349 = arith.muli %c4_i32_121, %c8_i32_122 : i32
    %350 = tpu.assume_multiple %349, 8 : i32
    %351 = arith.index_cast %350 : i32 to index
    %c0_123 = arith.constant 0 : index
    %352 = vector.load %arg16[%351, %c0_123] : memref<64x256xf32, #tpu.memory_space<vmem>>, vector<8x256xf32>
    %c7_i32_124 = arith.constant 7 : i32
    %353 = arith.subi %c7_i32_124, %c4_i32_121 : i32
    %c8_i32_125 = arith.constant 8 : i32
    %354 = arith.muli %353, %c8_i32_125 : i32
    %355 = tpu.assume_multiple %354, 8 : i32
    %356 = arith.index_cast %355 : i32 to index
    %c0_126 = arith.constant 0 : index
    %357 = vector.load %arg17[%356, %c0_126] : memref<64x256xf32, #tpu.memory_space<vmem>>, vector<8x256xf32>
    %358 = arith.addf %352, %357 : vector<8x256xf32>
    %cst_127 = arith.constant dense<0.000000e+00> : vector<8x256xf32>
    %359 = tpu.matmul %346, %221, %cst_127 {dimension_numbers = #tpu.dot_dimension_numbers<[1], [0], [0], [1], [0, 0, 1, 1], [], []>} : vector<8x32xf32>, vector<32x256xf32>, vector<8x256xf32> -> vector<8x256xf32>
    %360 = arith.addf %358, %359 : vector<8x256xf32>
    %361 = vector.extract_strided_slice %360 {offsets = [0, 0], sizes = [8, 192], strides = [1, 1]} : vector<8x256xf32> to vector<8x192xf32>
    %362 = arith.negf %361 : vector<8x192xf32>
    %363 = math.exp %362 : vector<8x192xf32>
    %cst_128 = arith.constant 1.000000e+00 : f32
    %364 = vector.broadcast %cst_128 : f32 to vector<8x192xf32>
    %365 = arith.addf %364, %363 : vector<8x192xf32>
    %366 = arith.divf %364, %365 : vector<8x192xf32>
    %367 = vector.extract_strided_slice %366 {offsets = [0, 0], sizes = [8, 64], strides = [1, 1]} : vector<8x192xf32> to vector<8x64xf32>
    %368 = vector.extract_strided_slice %366 {offsets = [0, 64], sizes = [8, 64], strides = [1, 1]} : vector<8x192xf32> to vector<8x64xf32>
    %369 = vector.extract_strided_slice %366 {offsets = [0, 128], sizes = [8, 64], strides = [1, 1]} : vector<8x192xf32> to vector<8x64xf32>
    %370 = vector.extract_strided_slice %360 {offsets = [0, 192], sizes = [8, 64], strides = [1, 1]} : vector<8x256xf32> to vector<8x64xf32>
    %371 = math.tanh %370 : vector<8x64xf32>
    %372 = arith.mulf %368, %343 : vector<8x64xf32>
    %373 = arith.mulf %367, %371 : vector<8x64xf32>
    %374 = arith.addf %372, %373 : vector<8x64xf32>
    %375 = math.tanh %374 : vector<8x64xf32>
    %376 = arith.mulf %369, %375 : vector<8x64xf32>
    %cst_129 = arith.constant dense<0.000000e+00> : vector<8x32xf32>
    %377 = tpu.matmul %376, %222, %cst_129 {dimension_numbers = #tpu.dot_dimension_numbers<[1], [0], [0], [1], [0, 0, 1, 1], [], []>} : vector<8x64xf32>, vector<64x32xf32>, vector<8x32xf32> -> vector<8x32xf32>
    %378 = arith.index_cast %350 : i32 to index
    %c0_130 = arith.constant 0 : index
    %379 = vector.load %arg15[%378, %c0_130] : memref<64x32xf32, #tpu.memory_space<vmem>>, vector<8x32xf32>
    tpu.vector_store %arg15[%378, %c0_130], %377 {strides = array<i32>} : memref<64x32xf32, #tpu.memory_space<vmem>>, vector<8x32xf32>,
    %c5_i32_131 = arith.constant 5 : i32
    %c8_i32_132 = arith.constant 8 : i32
    %380 = arith.muli %c5_i32_131, %c8_i32_132 : i32
    %381 = tpu.assume_multiple %380, 8 : i32
    %382 = arith.index_cast %381 : i32 to index
    %c0_133 = arith.constant 0 : index
    %383 = vector.load %arg16[%382, %c0_133] : memref<64x256xf32, #tpu.memory_space<vmem>>, vector<8x256xf32>
    %c7_i32_134 = arith.constant 7 : i32
    %384 = arith.subi %c7_i32_134, %c5_i32_131 : i32
    %c8_i32_135 = arith.constant 8 : i32
    %385 = arith.muli %384, %c8_i32_135 : i32
    %386 = tpu.assume_multiple %385, 8 : i32
    %387 = arith.index_cast %386 : i32 to index
    %c0_136 = arith.constant 0 : index
    %388 = vector.load %arg17[%387, %c0_136] : memref<64x256xf32, #tpu.memory_space<vmem>>, vector<8x256xf32>
    %389 = arith.addf %383, %388 : vector<8x256xf32>
    %cst_137 = arith.constant dense<0.000000e+00> : vector<8x256xf32>
    %390 = tpu.matmul %377, %221, %cst_137 {dimension_numbers = #tpu.dot_dimension_numbers<[1], [0], [0], [1], [0, 0, 1, 1], [], []>} : vector<8x32xf32>, vector<32x256xf32>, vector<8x256xf32> -> vector<8x256xf32>
    %391 = arith.addf %389, %390 : vector<8x256xf32>
    %392 = vector.extract_strided_slice %391 {offsets = [0, 0], sizes = [8, 192], strides = [1, 1]} : vector<8x256xf32> to vector<8x192xf32>
    %393 = arith.negf %392 : vector<8x192xf32>
    %394 = math.exp %393 : vector<8x192xf32>
    %cst_138 = arith.constant 1.000000e+00 : f32
    %395 = vector.broadcast %cst_138 : f32 to vector<8x192xf32>
    %396 = arith.addf %395, %394 : vector<8x192xf32>
    %397 = arith.divf %395, %396 : vector<8x192xf32>
    %398 = vector.extract_strided_slice %397 {offsets = [0, 0], sizes = [8, 64], strides = [1, 1]} : vector<8x192xf32> to vector<8x64xf32>
    %399 = vector.extract_strided_slice %397 {offsets = [0, 64], sizes = [8, 64], strides = [1, 1]} : vector<8x192xf32> to vector<8x64xf32>
    %400 = vector.extract_strided_slice %397 {offsets = [0, 128], sizes = [8, 64], strides = [1, 1]} : vector<8x192xf32> to vector<8x64xf32>
    %401 = vector.extract_strided_slice %391 {offsets = [0, 192], sizes = [8, 64], strides = [1, 1]} : vector<8x256xf32> to vector<8x64xf32>
    %402 = math.tanh %401 : vector<8x64xf32>
    %403 = arith.mulf %399, %374 : vector<8x64xf32>
    %404 = arith.mulf %398, %402 : vector<8x64xf32>
    %405 = arith.addf %403, %404 : vector<8x64xf32>
    %406 = math.tanh %405 : vector<8x64xf32>
    %407 = arith.mulf %400, %406 : vector<8x64xf32>
    %cst_139 = arith.constant dense<0.000000e+00> : vector<8x32xf32>
    %408 = tpu.matmul %407, %222, %cst_139 {dimension_numbers = #tpu.dot_dimension_numbers<[1], [0], [0], [1], [0, 0, 1, 1], [], []>} : vector<8x64xf32>, vector<64x32xf32>, vector<8x32xf32> -> vector<8x32xf32>
    %409 = arith.index_cast %381 : i32 to index
    %c0_140 = arith.constant 0 : index
    %410 = vector.load %arg15[%409, %c0_140] : memref<64x32xf32, #tpu.memory_space<vmem>>, vector<8x32xf32>
    tpu.vector_store %arg15[%409, %c0_140], %408 {strides = array<i32>} : memref<64x32xf32, #tpu.memory_space<vmem>>, vector<8x32xf32>,
    %c6_i32_141 = arith.constant 6 : i32
    %c8_i32_142 = arith.constant 8 : i32
    %411 = arith.muli %c6_i32_141, %c8_i32_142 : i32
    %412 = tpu.assume_multiple %411, 8 : i32
    %413 = arith.index_cast %412 : i32 to index
    %c0_143 = arith.constant 0 : index
    %414 = vector.load %arg16[%413, %c0_143] : memref<64x256xf32, #tpu.memory_space<vmem>>, vector<8x256xf32>
    %c7_i32_144 = arith.constant 7 : i32
    %415 = arith.subi %c7_i32_144, %c6_i32_141 : i32
    %c8_i32_145 = arith.constant 8 : i32
    %416 = arith.muli %415, %c8_i32_145 : i32
    %417 = tpu.assume_multiple %416, 8 : i32
    %418 = arith.index_cast %417 : i32 to index
    %c0_146 = arith.constant 0 : index
    %419 = vector.load %arg17[%418, %c0_146] : memref<64x256xf32, #tpu.memory_space<vmem>>, vector<8x256xf32>
    %420 = arith.addf %414, %419 : vector<8x256xf32>
    %cst_147 = arith.constant dense<0.000000e+00> : vector<8x256xf32>
    %421 = tpu.matmul %408, %221, %cst_147 {dimension_numbers = #tpu.dot_dimension_numbers<[1], [0], [0], [1], [0, 0, 1, 1], [], []>} : vector<8x32xf32>, vector<32x256xf32>, vector<8x256xf32> -> vector<8x256xf32>
    %422 = arith.addf %420, %421 : vector<8x256xf32>
    %423 = vector.extract_strided_slice %422 {offsets = [0, 0], sizes = [8, 192], strides = [1, 1]} : vector<8x256xf32> to vector<8x192xf32>
    %424 = arith.negf %423 : vector<8x192xf32>
    %425 = math.exp %424 : vector<8x192xf32>
    %cst_148 = arith.constant 1.000000e+00 : f32
    %426 = vector.broadcast %cst_148 : f32 to vector<8x192xf32>
    %427 = arith.addf %426, %425 : vector<8x192xf32>
    %428 = arith.divf %426, %427 : vector<8x192xf32>
    %429 = vector.extract_strided_slice %428 {offsets = [0, 0], sizes = [8, 64], strides = [1, 1]} : vector<8x192xf32> to vector<8x64xf32>
    %430 = vector.extract_strided_slice %428 {offsets = [0, 64], sizes = [8, 64], strides = [1, 1]} : vector<8x192xf32> to vector<8x64xf32>
    %431 = vector.extract_strided_slice %428 {offsets = [0, 128], sizes = [8, 64], strides = [1, 1]} : vector<8x192xf32> to vector<8x64xf32>
    %432 = vector.extract_strided_slice %422 {offsets = [0, 192], sizes = [8, 64], strides = [1, 1]} : vector<8x256xf32> to vector<8x64xf32>
    %433 = math.tanh %432 : vector<8x64xf32>
    %434 = arith.mulf %430, %405 : vector<8x64xf32>
    %435 = arith.mulf %429, %433 : vector<8x64xf32>
    %436 = arith.addf %434, %435 : vector<8x64xf32>
    %437 = math.tanh %436 : vector<8x64xf32>
    %438 = arith.mulf %431, %437 : vector<8x64xf32>
    %cst_149 = arith.constant dense<0.000000e+00> : vector<8x32xf32>
    %439 = tpu.matmul %438, %222, %cst_149 {dimension_numbers = #tpu.dot_dimension_numbers<[1], [0], [0], [1], [0, 0, 1, 1], [], []>} : vector<8x64xf32>, vector<64x32xf32>, vector<8x32xf32> -> vector<8x32xf32>
    %440 = arith.index_cast %412 : i32 to index
    %c0_150 = arith.constant 0 : index
    %441 = vector.load %arg15[%440, %c0_150] : memref<64x32xf32, #tpu.memory_space<vmem>>, vector<8x32xf32>
    tpu.vector_store %arg15[%440, %c0_150], %439 {strides = array<i32>} : memref<64x32xf32, #tpu.memory_space<vmem>>, vector<8x32xf32>,
    %c7_i32_151 = arith.constant 7 : i32
    %c8_i32_152 = arith.constant 8 : i32
    %442 = arith.muli %c7_i32_151, %c8_i32_152 : i32
    %443 = tpu.assume_multiple %442, 8 : i32
    %444 = arith.index_cast %443 : i32 to index
    %c0_153 = arith.constant 0 : index
    %445 = vector.load %arg16[%444, %c0_153] : memref<64x256xf32, #tpu.memory_space<vmem>>, vector<8x256xf32>
    %c7_i32_154 = arith.constant 7 : i32
    %446 = arith.subi %c7_i32_154, %c7_i32_151 : i32
    %c8_i32_155 = arith.constant 8 : i32
    %447 = arith.muli %446, %c8_i32_155 : i32
    %448 = tpu.assume_multiple %447, 8 : i32
    %449 = arith.index_cast %448 : i32 to index
    %c0_156 = arith.constant 0 : index
    %450 = vector.load %arg17[%449, %c0_156] : memref<64x256xf32, #tpu.memory_space<vmem>>, vector<8x256xf32>
    %451 = arith.addf %445, %450 : vector<8x256xf32>
    %cst_157 = arith.constant dense<0.000000e+00> : vector<8x256xf32>
    %452 = tpu.matmul %439, %221, %cst_157 {dimension_numbers = #tpu.dot_dimension_numbers<[1], [0], [0], [1], [0, 0, 1, 1], [], []>} : vector<8x32xf32>, vector<32x256xf32>, vector<8x256xf32> -> vector<8x256xf32>
    %453 = arith.addf %451, %452 : vector<8x256xf32>
    %454 = vector.extract_strided_slice %453 {offsets = [0, 0], sizes = [8, 192], strides = [1, 1]} : vector<8x256xf32> to vector<8x192xf32>
    %455 = arith.negf %454 : vector<8x192xf32>
    %456 = math.exp %455 : vector<8x192xf32>
    %cst_158 = arith.constant 1.000000e+00 : f32
    %457 = vector.broadcast %cst_158 : f32 to vector<8x192xf32>
    %458 = arith.addf %457, %456 : vector<8x192xf32>
    %459 = arith.divf %457, %458 : vector<8x192xf32>
    %460 = vector.extract_strided_slice %459 {offsets = [0, 0], sizes = [8, 64], strides = [1, 1]} : vector<8x192xf32> to vector<8x64xf32>
    %461 = vector.extract_strided_slice %459 {offsets = [0, 64], sizes = [8, 64], strides = [1, 1]} : vector<8x192xf32> to vector<8x64xf32>
    %462 = vector.extract_strided_slice %459 {offsets = [0, 128], sizes = [8, 64], strides = [1, 1]} : vector<8x192xf32> to vector<8x64xf32>
    %463 = vector.extract_strided_slice %453 {offsets = [0, 192], sizes = [8, 64], strides = [1, 1]} : vector<8x256xf32> to vector<8x64xf32>
    %464 = math.tanh %463 : vector<8x64xf32>
    %465 = arith.mulf %461, %436 : vector<8x64xf32>
    %466 = arith.mulf %460, %464 : vector<8x64xf32>
    %467 = arith.addf %465, %466 : vector<8x64xf32>
    %468 = math.tanh %467 : vector<8x64xf32>
    %469 = arith.mulf %462, %468 : vector<8x64xf32>
    %cst_159 = arith.constant dense<0.000000e+00> : vector<8x32xf32>
    %470 = tpu.matmul %469, %222, %cst_159 {dimension_numbers = #tpu.dot_dimension_numbers<[1], [0], [0], [1], [0, 0, 1, 1], [], []>} : vector<8x64xf32>, vector<64x32xf32>, vector<8x32xf32> -> vector<8x32xf32>
    %471 = arith.index_cast %443 : i32 to index
    %c0_160 = arith.constant 0 : index
    %472 = vector.load %arg15[%471, %c0_160] : memref<64x32xf32, #tpu.memory_space<vmem>>, vector<8x32xf32>
    tpu.vector_store %arg15[%471, %c0_160], %470 {strides = array<i32>} : memref<64x32xf32, #tpu.memory_space<vmem>>, vector<8x32xf32>,
    %c8_i32_161 = arith.constant 8 : i32
    %c56 = arith.constant 56 : index
    %c0_162 = arith.constant 0 : index
    %473 = vector.load %arg15[%c56, %c0_162] : memref<64x32xf32, #tpu.memory_space<vmem>>, vector<8x32xf32>
    %c0_163 = arith.constant 0 : index
    %c0_164 = arith.constant 0 : index
    %474 = vector.load %arg15[%c0_163, %c0_164] : memref<64x32xf32, #tpu.memory_space<vmem>>, vector<8x32xf32>
    %c0_165 = arith.constant 0 : index
    %c0_166 = arith.constant 0 : index
    %475 = vector.load %arg10[%c0_165, %c0_166] : memref<32x3xf32, #tpu.memory_space<vmem>>, vector<32x3xf32>
    %cst_167 = arith.constant dense<0.000000e+00> : vector<8x3xf32>
    %476 = tpu.matmul %473, %475, %cst_167 {dimension_numbers = #tpu.dot_dimension_numbers<[1], [0], [0], [1], [0, 0, 1, 1], [], []>} : vector<8x32xf32>, vector<32x3xf32>, vector<8x3xf32> -> vector<8x3xf32>
    %c0_168 = arith.constant 0 : index
    %c0_169 = arith.constant 0 : index
    %477 = vector.load %arg11[%c0_168, %c0_169] : memref<32x3xf32, #tpu.memory_space<vmem>>, vector<32x3xf32>
    %cst_170 = arith.constant dense<0.000000e+00> : vector<8x3xf32>
    %478 = tpu.matmul %474, %477, %cst_170 {dimension_numbers = #tpu.dot_dimension_numbers<[1], [0], [0], [1], [0, 0, 1, 1], [], []>} : vector<8x32xf32>, vector<32x3xf32>, vector<8x3xf32> -> vector<8x3xf32>
    %479 = arith.addf %476, %478 : vector<8x3xf32>
    %c0_171 = arith.constant 0 : index
    %c0_172 = arith.constant 0 : index
    %480 = vector.load %arg12[%c0_171, %c0_172] : memref<1x3xf32, #tpu.memory_space<vmem>>, vector<1x3xf32>
    %481 = vector.broadcast %480 : vector<1x3xf32> to vector<8x3xf32>
    %482 = arith.addf %479, %481 : vector<8x3xf32>
    %c0_173 = arith.constant 0 : index
    %c0_174 = arith.constant 0 : index
    %483 = vector.load %arg13[%c0_173, %c0_174] : memref<8x3xf32, #tpu.memory_space<vmem>>, vector<8x3xf32>
    tpu.vector_store %arg13[%c0_173, %c0_174], %482 {strides = array<i32>} : memref<8x3xf32, #tpu.memory_space<vmem>>, vector<8x3xf32>,
    return
  }
}

</mosaic_0001>

<llo_original>
// kernel: tpu_custom_call.1
$region0: #{tpu_custom_call.1}
  #allocation0 [shape = 'u32[]', space=smem, size = 0x4, offset = 0x4, fixed_abs, tag = 'smem constant byte address 0x4 - core index']
  #allocation1 [shape = 'u32[144,128]{1,0:T(1,128)}', space=vmem, size = 0x12000, scoped, tag = 'internal scratch']
  #allocation2 [shape = 'f32[64,32]{1,0:T(8,128)}', space=vmem, size = 0x8000, scoped, tag = 'scratch operand']
  #allocation3 [shape = 'f32[64,32]{1,0:T(8,128)}', space=vmem, size = 0x8000, scoped, tag = 'scratch operand']
  #allocation4 [shape = 'f32[64,256]{1,0:T(8,128)}', space=vmem, size = 0x10000, scoped, tag = 'scratch operand']
  #allocation5 [shape = 'f32[64,256]{1,0:T(8,128)}', space=vmem, size = 0x10000, scoped, tag = 'scratch operand']
  %s0 = inlined_call_operand.vmem [shape: f32[64,16], index: 0, kind: input, shape index: {}]
  %s1 = inlined_call_operand.hbm [shape: f32[16,256], index: 1, kind: input, shape index: {}]
  %s2 = inlined_call_operand.vmem [shape: f32[1,256], index: 2, kind: input, shape index: {}]
  %s3 = inlined_call_operand.vmem [shape: f32[32,256], index: 3, kind: input, shape index: {}]
  %s4 = inlined_call_operand.vmem [shape: f32[64,32], index: 4, kind: input, shape index: {}]
  %s5 = inlined_call_operand.vmem [shape: f32[32,256], index: 5, kind: input, shape index: {}]
  %s6 = inlined_call_operand.vmem [shape: f32[32,256], index: 6, kind: input, shape index: {}]
  %s7 = inlined_call_operand.vmem [shape: f32[1,256], index: 7, kind: input, shape index: {}]
  %s8 = inlined_call_operand.vmem [shape: f32[32,256], index: 8, kind: input, shape index: {}]
  %s9 = inlined_call_operand.vmem [shape: f32[64,32], index: 9, kind: input, shape index: {}]
  %s10 = inlined_call_operand.vmem [shape: f32[32,3], index: 10, kind: input, shape index: {}]
  %s11 = inlined_call_operand.vmem [shape: f32[32,3], index: 11, kind: input, shape index: {}]
  %s12 = inlined_call_operand.vmem [shape: f32[1,3], index: 12, kind: input, shape index: {}]
  %s13 = inlined_call_operand.vmem [shape: f32[8,3], index: 13, kind: output, shape index: {}]
  %s14 = sld [smem:[#allocation0]]
  $region66: #{tpu_custom_call.1} parent=0
    _
  %s16 = ssub.s32 1, %s14
  %s17 = scalar_select 0, %s16, %s14
  $region1: #{tpu_custom_call.1} parent=0
    #allocation6 [shape = 'u8[16384]{0}', space=vmem, size = 0x4000, scoped, tag = 'input window, operand 1, single buffered']
    #allocation7 [shape = 's32[1]{0}', space=sflag, size = 0x4, scoped, tag = 'scoped memory for tpu_custom_call.1']
    %18 = vsyncpa [#allocation7], 0
    // Predicated region
    $region2: #{tpu_custom_call.1} parent=1 // pred_check
      _
    $region3: #{tpu_custom_call.1} parent=1 // pred_check_branch
      %20 = sbr.rel (0) target = $region5
    $region4: #{tpu_custom_call.1} parent=1 // pred_region
      _
    $region5: #{tpu_custom_call.1} parent=1 // pred_fallthru
      _
    // Predicated region
    $region6: #{tpu_custom_call.1} parent=1 // pred_check
      _
    $region7: #{tpu_custom_call.1} parent=1 // pred_check_branch
      %22 = sbr.rel (0) target = $region9
    $region8: #{tpu_custom_call.1} parent=1 // pred_region
      %s24 = ssub.s32 512, 512
      %25 = vsyncadd [#allocation7], %s24
      %s26 = sshll.u32 [#allocation6], 4
      %s27 = int_to_ptr.vmem [resolvable:$true] %s26
      %32 = dma.hbm_to_vmem [thread:$0]  %s1, 512, %s27, [#allocation7], 256, 256, 16
    $region9: #{tpu_custom_call.1} parent=1 // pred_fallthru
      _
    // Predicated region
    $region10: #{tpu_custom_call.1} parent=1 // pred_check
      _
    $region11: #{tpu_custom_call.1} parent=1 // pred_check_branch
      %34 = sbr.rel (0) target = $region13
    $region12: #{tpu_custom_call.1} parent=1 // pred_region
      _
    $region13: #{tpu_custom_call.1} parent=1 // pred_fallthru
      _
    // Predicated region
    $region14: #{tpu_custom_call.1} parent=1 // pred_check
      _
    $region15: #{tpu_custom_call.1} parent=1 // pred_check_branch
      %36 = sbr.rel (0) target = $region17
    $region16: #{tpu_custom_call.1} parent=1 // pred_region
      _
    $region17: #{tpu_custom_call.1} parent=1 // pred_fallthru
      _
    // Predicated region
    $region18: #{tpu_custom_call.1} parent=1 // pred_check
      _
    $region19: #{tpu_custom_call.1} parent=1 // pred_check_branch
      %38 = sbr.rel (0) target = $region21
    $region20: #{tpu_custom_call.1} parent=1 // pred_region
      _
    $region21: #{tpu_custom_call.1} parent=1 // pred_fallthru
      _
    // Predicated region
    $region22: #{tpu_custom_call.1} parent=1 // pred_check
      _
    $region23: #{tpu_custom_call.1} parent=1 // pred_check_branch
      %40 = sbr.rel (0) target = $region25
    $region24: #{tpu_custom_call.1} parent=1 // pred_region
      _
    $region25: #{tpu_custom_call.1} parent=1 // pred_fallthru
      _
    // Predicated region
    $region26: #{tpu_custom_call.1} parent=1 // pred_check
      _
    $region27: #{tpu_custom_call.1} parent=1 // pred_check_branch
      %42 = sbr.rel (0) target = $region29
    $region28: #{tpu_custom_call.1} parent=1 // pred_region
      _
    $region29: #{tpu_custom_call.1} parent=1 // pred_fallthru
      _
    // Predicated region
    $region30: #{tpu_custom_call.1} parent=1 // pred_check
      _
    $region31: #{tpu_custom_call.1} parent=1 // pred_check_branch
      %44 = sbr.rel (0) target = $region33
    $region32: #{tpu_custom_call.1} parent=1 // pred_region
      _
    $region33: #{tpu_custom_call.1} parent=1 // pred_fallthru
      _
    // Predicated region
    $region34: #{tpu_custom_call.1} parent=1 // pred_check
      _
    $region35: #{tpu_custom_call.1} parent=1 // pred_check_branch
      %46 = sbr.rel (0) target = $region37
    $region36: #{tpu_custom_call.1} parent=1 // pred_region
      _
    $region37: #{tpu_custom_call.1} parent=1 // pred_fallthru
      _
    // Predicated region
    $region38: #{tpu_custom_call.1} parent=1 // pred_check
      _
    $region39: #{tpu_custom_call.1} parent=1 // pred_check_branch
      %48 = sbr.rel (0) target = $region41
    $region40: #{tpu_custom_call.1} parent=1 // pred_region
      _
    $region41: #{tpu_custom_call.1} parent=1 // pred_fallthru
      _
    // Predicated region
    $region42: #{tpu_custom_call.1} parent=1 // pred_check
      _
    $region43: #{tpu_custom_call.1} parent=1 // pred_check_branch
      %50 = sbr.rel (0) target = $region45
    $region44: #{tpu_custom_call.1} parent=1 // pred_region
      _
    $region45: #{tpu_custom_call.1} parent=1 // pred_fallthru
      _
    // Predicated region
    $region46: #{tpu_custom_call.1} parent=1 // pred_check
      _
    $region47: #{tpu_custom_call.1} parent=1 // pred_check_branch
      %52 = sbr.rel (0) target = $region49
    $region48: #{tpu_custom_call.1} parent=1 // pred_region
      _
    $region49: #{tpu_custom_call.1} parent=1 // pred_fallthru
      _
    // Predicated region
    $region50: #{tpu_custom_call.1} parent=1 // pred_check
      _
    $region51: #{tpu_custom_call.1} parent=1 // pred_check_branch
      %54 = sbr.rel (0) target = $region53
    $region52: #{tpu_custom_call.1} parent=1 // pred_region
      _
    $region53: #{tpu_custom_call.1} parent=1 // pred_fallthru
      _
    // Predicated region
    $region54: #{tpu_custom_call.1} parent=1 // pred_check
      _
    $region55: #{tpu_custom_call.1} parent=1 // pred_check_branch
      %56 = sbr.rel (0) target = $region57
    $region56: #{tpu_custom_call.1} parent=1 // pred_region
      %57 = dma.done [#allocation7], 512
    $region57: #{tpu_custom_call.1} parent=1 // pred_fallthru
      _
    %v58 = vld [vmem:[%s0] sm:$0xff]
    %v59 = vld [vmem:[%s0 + $0x8] sm:$0xff]
    %v60 = vld [vmem:[%s0 + $0x10] sm:$0xff]
    %v61 = vld [vmem:[%s0 + $0x18] sm:$0xff]
    %v62 = vld [vmem:[%s0 + $0x20] sm:$0xff]
    %v63 = vld [vmem:[%s0 + $0x28] sm:$0xff]
    %v64 = vld [vmem:[%s0 + $0x30] sm:$0xff]
    %v65 = vld [vmem:[%s0 + $0x38] sm:$0xff]
    %v66 = vld [vmem:[#allocation6] sm:$0xff]
    %v67 = vld [vmem:[#allocation6 + $0x8] sm:$0xff]
    %v68 = vld [vmem:[#allocation6 + $0x10] sm:$0xff]
    %v69 = vld [vmem:[#allocation6 + $0x18] sm:$0xff]
    %v70 = vld [vmem:[%s2] sm:$0x3]
    %v72 = vlaneseq
    %v73 = vshrl.u32 %v72, 7
    %v74 = vsub.s32 0, %v73
    %v75 = vrot.slane %v70, %v74
    %v76 = vlaneseq
    %v77 = vshrl.u32 %v76, 7
    %v78 = vsub.s32 1, %v77
    %v79 = vrot.slane %v70, %v78
    %vm82 = vcmask 130048
    %v84 = vsel %vm82, %v58, 0
    %v87 = vsel %vm82, %v59, 0
    %v90 = vsel %vm82, %v60, 0
    %v93 = vsel %vm82, %v61, 0
    %v96 = vsel %vm82, %v62, 0
    %v99 = vsel %vm82, %v63, 0
    %v102 = vsel %vm82, %v64, 0
    %v105 = vsel %vm82, %v65, 0
    %107 = vmatprep.subr.mxu0 %v67
    %108 = vmatpush1.msra.mxu0 %v66
    %109 = vmatprep.subr.mxu0 %v69
    %110 = vmatpush1.msra.mxu0 %v68
    %111 = vmatprep.subr.mxu0 0.0
    %112 = vmatpush1.msra.mxu0 0.0
    %113 = vmatprep.subr.mxu0 0.0
    %114 = vmatpush1.msra.mxu0 0.0
    %115 = vmatprep.subr.mxu0 0.0
    %116 = vmatpush1.msra.mxu0 0.0
    %117 = vmatprep.subr.mxu0 0.0
    %118 = vmatpush1.msra.mxu0 0.0
    %119 = vmatprep.subr.mxu0 0.0
    %120 = vmatpush1.msra.mxu0 0.0
    %121 = vmatprep.subr.mxu0 0.0
    %122 = vmatpush1.msra.mxu0 0.0
    %123 = vmatprep.subr.mxu0 0.0
    %124 = vmatpush1.msra.mxu0 0.0
    %125 = vmatprep.subr.mxu0 0.0
    %126 = vmatpush1.msra.mxu0 0.0
    %127 = vmatprep.subr.mxu0 0.0
    %128 = vmatpush1.msra.mxu0 0.0
    %129 = vmatprep.subr.mxu0 0.0
    %130 = vmatpush1.msra.mxu0 0.0
    %131 = vmatprep.subr.mxu0 0.0
    %132 = vmatpush1.msra.mxu0 0.0
    %133 = vmatprep.subr.mxu0 0.0
    %134 = vmatpush1.msra.mxu0 0.0
    %135 = vmatprep.subr.mxu0 0.0
    %136 = vmatpush1.msra.mxu0 0.0
    %137 = vmatprep.subr.mxu0 0.0
    %138 = vmatpush1.msra.mxu0 0.0
    %139 = vmatprep.subr.mxu0 0.0
    %140 = vmatpush1.msra.mxu0 0.0
    %141 = vmatprep.subr.mxu0 0.0
    %142 = vmatpush1.msra.mxu0 0.0
    %143 = vmatprep.subr.mxu0 0.0
    %144 = vmatpush1.msra.mxu0 0.0
    %145 = vmatprep.subr.mxu0 0.0
    %146 = vmatpush1.msra.mxu0 0.0
    %147 = vmatprep.subr.mxu0 0.0
    %148 = vmatpush1.msra.mxu0 0.0
    %149 = vmatprep.subr.mxu0 0.0
    %150 = vmatpush1.msra.mxu0 0.0
    %151 = vmatprep.subr.mxu0 0.0
    %152 = vmatpush1.msra.mxu0 0.0
    %153 = vmatprep.subr.mxu0 0.0
    %154 = vmatpush1.msra.mxu0 0.0
    %155 = vmatprep.subr.mxu0 0.0
    %156 = vmatpush1.msra.mxu0 0.0
    %157 = vmatprep.subr.mxu0 0.0
    %158 = vmatpush1.msra.mxu0 0.0
    %159 = vmatprep.subr.mxu0 0.0
    %160 = vmatpush1.msra.mxu0 0.0
    %161 = vmatprep.subr.mxu0 0.0
    %162 = vmatpush1.msra.mxu0 0.0
    %163 = vmatprep.subr.mxu0 0.0
    %164 = vmatpush1.msra.mxu0 0.0
    %165 = vmatprep.subr.mxu0 0.0
    %166 = vmatpush1.msra.mxu0 0.0
    %167 = vmatprep.subr.mxu0 0.0
    %168 = vmatpush1.msra.mxu0 0.0
    %169 = vmatprep.subr.mxu0 0.0
    %170 = vmatpush1.msra.mxu0 0.0
    %171 = vmatprep.mubr.f32.mxu0 0.0
    %172 = vmatmul.mubr.f32.gmra.mrb[0].mxu0 %v84
    %v173 = vpop.f32.mrb[0].mxu0
    %v174 = vadd.f32 %v75, %v173
    %v175 = vpop.f32.mrb[0].mxu0
    %v176 = vadd.f32 %v79, %v175
    %177 = vmatprep.mubr.f32.mxu0 0.0
    %178 = vmatmul.mubr.f32.gmra.mrb[0].mxu0 %v87
    %v179 = vpop.f32.mrb[0].mxu0
    %v180 = vadd.f32 %v75, %v179
    %v181 = vpop.f32.mrb[0].mxu0
    %v182 = vadd.f32 %v79, %v181
    %183 = vmatprep.mubr.f32.mxu0 0.0
    %184 = vmatmul.mubr.f32.gmra.mrb[0].mxu0 %v90
    %v185 = vpop.f32.mrb[0].mxu0
    %v186 = vadd.f32 %v75, %v185
    %v187 = vpop.f32.mrb[0].mxu0
    %v188 = vadd.f32 %v79, %v187
    %189 = vmatprep.mubr.f32.mxu0 0.0
    %190 = vmatmul.mubr.f32.gmra.mrb[0].mxu0 %v93
    %v191 = vpop.f32.mrb[0].mxu0
    %v192 = vadd.f32 %v75, %v191
    %v193 = vpop.f32.mrb[0].mxu0
    %v194 = vadd.f32 %v79, %v193
    %195 = vmatprep.mubr.f32.mxu0 0.0
    %196 = vmatmul.mubr.f32.gmra.mrb[0].mxu0 %v96
    %v197 = vpop.f32.mrb[0].mxu0
    %v198 = vadd.f32 %v75, %v197
    %v199 = vpop.f32.mrb[0].mxu0
    %v200 = vadd.f32 %v79, %v199
    %201 = vmatprep.mubr.f32.mxu0 0.0
    %202 = vmatmul.mubr.f32.gmra.mrb[0].mxu0 %v99
    %v203 = vpop.f32.mrb[0].mxu0
    %v204 = vadd.f32 %v75, %v203
    %v205 = vpop.f32.mrb[0].mxu0
    %v206 = vadd.f32 %v79, %v205
    %207 = vmatprep.mubr.f32.mxu0 0.0
    %208 = vmatmul.mubr.f32.gmra.mrb[0].mxu0 %v102
    %v209 = vpop.f32.mrb[0].mxu0
    %v210 = vadd.f32 %v75, %v209
    %v211 = vpop.f32.mrb[0].mxu0
    %v212 = vadd.f32 %v79, %v211
    %213 = vmatprep.mubr.f32.mxu0 0.0
    %214 = vmatmul.mubr.f32.gmra.mrb[0].mxu0 %v105
    %v215 = vpop.f32.mrb[0].mxu0
    %v216 = vadd.f32 %v75, %v215
    %v217 = vpop.f32.mrb[0].mxu0
    %v218 = vadd.f32 %v79, %v217
    %219 = vdwg.mxu0
    %220 = vst [vmem:[#allocation4] sm:$0xff] %v174
    %221 = vst [vmem:[#allocation4 + $0x8] sm:$0xff] %v176
    %222 = vst [vmem:[#allocation4 + $0x10] sm:$0xff] %v180
    %223 = vst [vmem:[#allocation4 + $0x18] sm:$0xff] %v182
    %224 = vst [vmem:[#allocation4 + $0x20] sm:$0xff] %v186
    %225 = vst [vmem:[#allocation4 + $0x28] sm:$0xff] %v188
    %226 = vst [vmem:[#allocation4 + $0x30] sm:$0xff] %v192
    %227 = vst [vmem:[#allocation4 + $0x38] sm:$0xff] %v194
    %228 = vst [vmem:[#allocation4 + $0x40] sm:$0xff] %v198
    %229 = vst [vmem:[#allocation4 + $0x48] sm:$0xff] %v200
    %230 = vst [vmem:[#allocation4 + $0x50] sm:$0xff] %v204
    %231 = vst [vmem:[#allocation4 + $0x58] sm:$0xff] %v206
    %232 = vst [vmem:[#allocation4 + $0x60] sm:$0xff] %v210
    %233 = vst [vmem:[#allocation4 + $0x68] sm:$0xff] %v212
    %234 = vst [vmem:[#allocation4 + $0x70] sm:$0xff] %v216
    %235 = vst [vmem:[#allocation4 + $0x78] sm:$0xff] %v218
    %v236 = vld [vmem:[%s3] sm:$0xff]
    %v237 = vld [vmem:[%s3 + $0x8] sm:$0xff]
    %v238 = vld [vmem:[%s3 + $0x10] sm:$0xff]
    %v239 = vld [vmem:[%s3 + $0x18] sm:$0xff]
    %v240 = vld [vmem:[%s3 + $0x20] sm:$0xff]
    %v241 = vld [vmem:[%s3 + $0x28] sm:$0xff]
    %v242 = vld [vmem:[%s3 + $0x30] sm:$0xff]
    %v243 = vld [vmem:[%s3 + $0x38] sm:$0xff]
    %v244 = vld [vmem:[%s4] sm:$0xff]
    %v245 = vld [vmem:[%s4 + $0x8] sm:$0xff]
    %v246 = vld [vmem:[%s4 + $0x10] sm:$0xff]
    %v247 = vld [vmem:[%s4 + $0x18] sm:$0xff]
    %v248 = vld [vmem:[%s4 + $0x20] sm:$0xff]
    %v249 = vld [vmem:[%s4 + $0x28] sm:$0xff]
    %v250 = vld [vmem:[%s4 + $0x30] sm:$0xff]
    %v251 = vld [vmem:[%s4 + $0x38] sm:$0xff]
    %s252 = smul.u32 0, 2
    %s253 = smul.addr %s252, 8
    %s254 = scalar_lea.vmem [#allocation4], %s253
    %v255 = vld [vmem:[%s254] sm:$0xff]
    %v256 = vld [vmem:[%s254 + $0x8] sm:$0xff]
    %vm257 = vcmask 261120
    %v259 = vsel %vm257, 0.0, 0
    %261 = vmatprep.subr.mxu0 %v237
    %262 = vmatpush1.msra.mxu0 %v236
    %263 = vmatprep.subr.mxu0 %v239
    %264 = vmatpush1.msra.mxu0 %v238
    %265 = vmatprep.subr.mxu0 %v241
    %266 = vmatpush1.msra.mxu0 %v240
    %267 = vmatprep.subr.mxu0 %v243
    %268 = vmatpush1.msra.mxu0 %v242
    %269 = vmatprep.subr.mxu0 0.0
    %270 = vmatpush1.msra.mxu0 0.0
    %271 = vmatprep.subr.mxu0 0.0
    %272 = vmatpush1.msra.mxu0 0.0
    %273 = vmatprep.subr.mxu0 0.0
    %274 = vmatpush1.msra.mxu0 0.0
    %275 = vmatprep.subr.mxu0 0.0
    %276 = vmatpush1.msra.mxu0 0.0
    %277 = vmatprep.subr.mxu0 0.0
    %278 = vmatpush1.msra.mxu0 0.0
    %279 = vmatprep.subr.mxu0 0.0
    %280 = vmatpush1.msra.mxu0 0.0
    %281 = vmatprep.subr.mxu0 0.0
    %282 = vmatpush1.msra.mxu0 0.0
    %283 = vmatprep.subr.mxu0 0.0
    %284 = vmatpush1.msra.mxu0 0.0
    %285 = vmatprep.subr.mxu0 0.0
    %286 = vmatpush1.msra.mxu0 0.0
    %287 = vmatprep.subr.mxu0 0.0
    %288 = vmatpush1.msra.mxu0 0.0
    %289 = vmatprep.subr.mxu0 0.0
    %290 = vmatpush1.msra.mxu0 0.0
    %291 = vmatprep.subr.mxu0 0.0
    %292 = vmatpush1.msra.mxu0 0.0
    %293 = vmatprep.subr.mxu0 0.0
    %294 = vmatpush1.msra.mxu0 0.0
    %295 = vmatprep.subr.mxu0 0.0
    %296 = vmatpush1.msra.mxu0 0.0
    %297 = vmatprep.subr.mxu0 0.0
    %298 = vmatpush1.msra.mxu0 0.0
    %299 = vmatprep.subr.mxu0 0.0
    %300 = vmatpush1.msra.mxu0 0.0
    %301 = vmatprep.subr.mxu0 0.0
    %302 = vmatpush1.msra.mxu0 0.0
    %303 = vmatprep.subr.mxu0 0.0
    %304 = vmatpush1.msra.mxu0 0.0
    %305 = vmatprep.subr.mxu0 0.0
    %306 = vmatpush1.msra.mxu0 0.0
    %307 = vmatprep.subr.mxu0 0.0
    %308 = vmatpush1.msra.mxu0 0.0
    %309 = vmatprep.subr.mxu0 0.0
    %310 = vmatpush1.msra.mxu0 0.0
    %311 = vmatprep.subr.mxu0 0.0
    %312 = vmatpush1.msra.mxu0 0.0
    %313 = vmatprep.subr.mxu0 0.0
    %314 = vmatpush1.msra.mxu0 0.0
    %315 = vmatprep.subr.mxu0 0.0
    %316 = vmatpush1.msra.mxu0 0.0
    %317 = vmatprep.subr.mxu0 0.0
    %318 = vmatpush1.msra.mxu0 0.0
    %319 = vmatprep.subr.mxu0 0.0
    %320 = vmatpush1.msra.mxu0 0.0
    %321 = vmatprep.subr.mxu0 0.0
    %322 = vmatpush1.msra.mxu0 0.0
    %323 = vmatprep.subr.mxu0 0.0
    %324 = vmatpush1.msra.mxu0 0.0
    %325 = vmatprep.mubr.f32.mxu0 0.0
    %326 = vmatmul.mubr.f32.gmra.mrb[0].mxu0 %v259
    %v327 = vpop.f32.mrb[0].mxu0
    %v328 = vadd.f32 0.0, %v327
    %v329 = vpop.f32.mrb[0].mxu0
    %v330 = vadd.f32 0.0, %v329
    %331 = vdwg.mxu0
    %v332 = vadd.f32 %v255, %v328
    %v333 = vadd.f32 %v256, %v330
    %v334 = vxor.u32 %v332, 2147483648
    %v335 = vxor.u32 %v333, 2147483648
    %v336 = vmul.f32 %v334, 1.442695
    %v337 = vpow.pop %v336
    %v338 = vmul.f32 %v335, 1.442695
    %v339 = vpow.pop %v338
    %v340 = vadd.f32 %v337, 1.0
    %v341 = vadd.f32 %v339, 1.0
    %v342 = vrcp.pop %v340
    %v343 = vmul.f32 1.0, %v342
    %v344 = vrcp.pop %v341
    %v345 = vmul.f32 1.0, %v344
    %v346 = vtanh.pop %v333
    %v347 = vmul.f32 %v343, 0.0
    %349 = vrot.lane.b32.xlu0 %v346, 64
    %v350 = vpop.permute.xlu0 %349
    %v352 = vmul.f32 %v343, %v350
    %354 = vrot.lane.b32.xlu0 %v352, 64
    %v355 = vpop.permute.xlu0 %354
    %v357 = vadd.f32 %v347, %v355
    %v358 = vtanh.pop %v357
    %360 = vrot.lane.b32.xlu0 %v358, 64
    %v361 = vpop.permute.xlu0 %360
    %v363 = vmul.f32 %v345, %v361
    %vm364 = vcmask 523264
    %v366 = vsel %vm364, %v363, 0
    %368 = vmatprep.subr.mxu0 0.0
    %369 = vmatpush1.msra.mxu0 %v244
    %370 = vmatprep.subr.mxu0 0.0
    %371 = vmatpush1.msra.mxu0 %v245
    %372 = vmatprep.subr.mxu0 0.0
    %373 = vmatpush1.msra.mxu0 %v246
    %374 = vmatprep.subr.mxu0 0.0
    %375 = vmatpush1.msra.mxu0 %v247
    %376 = vmatprep.subr.mxu0 0.0
    %377 = vmatpush1.msra.mxu0 %v248
    %378 = vmatprep.subr.mxu0 0.0
    %379 = vmatpush1.msra.mxu0 %v249
    %380 = vmatprep.subr.mxu0 0.0
    %381 = vmatpush1.msra.mxu0 %v250
    %382 = vmatprep.subr.mxu0 0.0
    %383 = vmatpush1.msra.mxu0 %v251
    %384 = vmatprep.subr.mxu0 0.0
    %385 = vmatpush1.msra.mxu0 0.0
    %386 = vmatprep.subr.mxu0 0.0
    %387 = vmatpush1.msra.mxu0 0.0
    %388 = vmatprep.subr.mxu0 0.0
    %389 = vmatpush1.msra.mxu0 0.0
    %390 = vmatprep.subr.mxu0 0.0
    %391 = vmatpush1.msra.mxu0 0.0
    %392 = vmatprep.subr.mxu0 0.0
    %393 = vmatpush1.msra.mxu0 0.0
    %394 = vmatprep.subr.mxu0 0.0
    %395 = vmatpush1.msra.mxu0 0.0
    %396 = vmatprep.subr.mxu0 0.0
    %397 = vmatpush1.msra.mxu0 0.0
    %398 = vmatprep.subr.mxu0 0.0
    %399 = vmatpush1.msra.mxu0 0.0
    %400 = vmatprep.subr.mxu0 0.0
    %401 = vmatpush1.msra.mxu0 0.0
    %402 = vmatprep.subr.mxu0 0.0
    %403 = vmatpush1.msra.mxu0 0.0
    %404 = vmatprep.subr.mxu0 0.0
    %405 = vmatpush1.msra.mxu0 0.0
    %406 = vmatprep.subr.mxu0 0.0
    %407 = vmatpush1.msra.mxu0 0.0
    %408 = vmatprep.subr.mxu0 0.0
    %409 = vmatpush1.msra.mxu0 0.0
    %410 = vmatprep.subr.mxu0 0.0
    %411 = vmatpush1.msra.mxu0 0.0
    %412 = vmatprep.subr.mxu0 0.0
    %413 = vmatpush1.msra.mxu0 0.0
    %414 = vmatprep.subr.mxu0 0.0
    %415 = vmatpush1.msra.mxu0 0.0
    %416 = vmatprep.subr.mxu0 0.0
    %417 = vmatpush1.msra.mxu0 0.0
    %418 = vmatprep.subr.mxu0 0.0
    %419 = vmatpush1.msra.mxu0 0.0
    %420 = vmatprep.subr.mxu0 0.0
    %421 = vmatpush1.msra.mxu0 0.0
    %422 = vmatprep.subr.mxu0 0.0
    %423 = vmatpush1.msra.mxu0 0.0
    %424 = vmatprep.subr.mxu0 0.0
    %425 = vmatpush1.msra.mxu0 0.0
    %426 = vmatprep.subr.mxu0 0.0
    %427 = vmatpush1.msra.mxu0 0.0
    %428 = vmatprep.subr.mxu0 0.0
    %429 = vmatpush1.msra.mxu0 0.0
    %430 = vmatprep.subr.mxu0 0.0
    %431 = vmatpush1.msra.mxu0 0.0
    %432 = vmatprep.mubr.f32.mxu0 0.0
    %433 = vmatmul.mubr.f32.gmra.mrb[0].mxu0 %v366
    %v434 = vpop.f32.mrb[0].mxu0
    %v435 = vadd.f32 0.0, %v434
    %v436 = vpop.f32.mrb[0].mxu0
    %437 = vdwg.mxu0
    %438 = vst.msk [vmem:[#allocation2] sm:$0xff] %vm257, %v435
    %s439 = smul.u32 1, 2
    %s440 = smul.addr %s439, 8
    %s441 = scalar_lea.vmem [#allocation4], %s440
    %v442 = vld [vmem:[%s441] sm:$0xff]
    %v443 = vld [vmem:[%s441 + $0x8] sm:$0xff]
    %v445 = vsel %vm257, %v435, 0
    %447 = vmatprep.subr.mxu0 %v237
    %448 = vmatpush1.msra.mxu0 %v236
    %449 = vmatprep.subr.mxu0 %v239
    %450 = vmatpush1.msra.mxu0 %v238
    %451 = vmatprep.subr.mxu0 %v241
    %452 = vmatpush1.msra.mxu0 %v240
    %453 = vmatprep.subr.mxu0 %v243
    %454 = vmatpush1.msra.mxu0 %v242
    %455 = vmatprep.subr.mxu0 0.0
    %456 = vmatpush1.msra.mxu0 0.0
    %457 = vmatprep.subr.mxu0 0.0
    %458 = vmatpush1.msra.mxu0 0.0
    %459 = vmatprep.subr.mxu0 0.0
    %460 = vmatpush1.msra.mxu0 0.0
    %461 = vmatprep.subr.mxu0 0.0
    %462 = vmatpush1.msra.mxu0 0.0
    %463 = vmatprep.subr.mxu0 0.0
    %464 = vmatpush1.msra.mxu0 0.0
    %465 = vmatprep.subr.mxu0 0.0
    %466 = vmatpush1.msra.mxu0 0.0
    %467 = vmatprep.subr.mxu0 0.0
    %468 = vmatpush1.msra.mxu0 0.0
    %469 = vmatprep.subr.mxu0 0.0
    %470 = vmatpush1.msra.mxu0 0.0
    %471 = vmatprep.subr.mxu0 0.0
    %472 = vmatpush1.msra.mxu0 0.0
    %473 = vmatprep.subr.mxu0 0.0
    %474 = vmatpush1.msra.mxu0 0.0
    %475 = vmatprep.subr.mxu0 0.0
    %476 = vmatpush1.msra.mxu0 0.0
    %477 = vmatprep.subr.mxu0 0.0
    %478 = vmatpush1.msra.mxu0 0.0
    %479 = vmatprep.subr.mxu0 0.0
    %480 = vmatpush1.msra.mxu0 0.0
    %481 = vmatprep.subr.mxu0 0.0
    %482 = vmatpush1.msra.mxu0 0.0
    %483 = vmatprep.subr.mxu0 0.0
    %484 = vmatpush1.msra.mxu0 0.0
    %485 = vmatprep.subr.mxu0 0.0
    %486 = vmatpush1.msra.mxu0 0.0
    %487 = vmatprep.subr.mxu0 0.0
    %488 = vmatpush1.msra.mxu0 0.0
    %489 = vmatprep.subr.mxu0 0.0
    %490 = vmatpush1.msra.mxu0 0.0
    %491 = vmatprep.subr.mxu0 0.0
    %492 = vmatpush1.msra.mxu0 0.0
    %493 = vmatprep.subr.mxu0 0.0
    %494 = vmatpush1.msra.mxu0 0.0
    %495 = vmatprep.subr.mxu0 0.0
    %496 = vmatpush1.msra.mxu0 0.0
    %497 = vmatprep.subr.mxu0 0.0
    %498 = vmatpush1.msra.mxu0 0.0
    %499 = vmatprep.subr.mxu0 0.0
    %500 = vmatpush1.msra.mxu0 0.0
    %501 = vmatprep.subr.mxu0 0.0
    %502 = vmatpush1.msra.mxu0 0.0
    %503 = vmatprep.subr.mxu0 0.0
    %504 = vmatpush1.msra.mxu0 0.0
    %505 = vmatprep.subr.mxu0 0.0
    %506 = vmatpush1.msra.mxu0 0.0
    %507 = vmatprep.subr.mxu0 0.0
    %508 = vmatpush1.msra.mxu0 0.0
    %509 = vmatprep.subr.mxu0 0.0
    %510 = vmatpush1.msra.mxu0 0.0
    %511 = vmatprep.mubr.f32.mxu0 0.0
    %512 = vmatmul.mubr.f32.gmra.mrb[0].mxu0 %v445
    %v513 = vpop.f32.mrb[0].mxu0
    %v514 = vadd.f32 0.0, %v513
    %v515 = vpop.f32.mrb[0].mxu0
    %v516 = vadd.f32 0.0, %v515
    %517 = vdwg.mxu0
    %v518 = vadd.f32 %v442, %v514
    %v519 = vadd.f32 %v443, %v516
    %v520 = vxor.u32 %v518, 2147483648
    %v521 = vxor.u32 %v519, 2147483648
    %v522 = vmul.f32 %v520, 1.442695
    %v523 = vpow.pop %v522
    %v524 = vmul.f32 %v521, 1.442695
    %v525 = vpow.pop %v524
    %v526 = vadd.f32 %v523, 1.0
    %v527 = vadd.f32 %v525, 1.0
    %v528 = vrcp.pop %v526
    %v529 = vmul.f32 1.0, %v528
    %v530 = vrcp.pop %v527
    %v531 = vmul.f32 1.0, %v530
    %v532 = vtanh.pop %v519
    %v533 = vmul.f32 %v529, %v357
    %535 = vrot.lane.b32.xlu0 %v532, 64
    %v536 = vpop.permute.xlu0 %535
    %v538 = vmul.f32 %v529, %v536
    %540 = vrot.lane.b32.xlu0 %v538, 64
    %v541 = vpop.permute.xlu0 %540
    %v543 = vadd.f32 %v533, %v541
    %v544 = vtanh.pop %v543
    %546 = vrot.lane.b32.xlu0 %v544, 64
    %v547 = vpop.permute.xlu0 %546
    %v549 = vmul.f32 %v531, %v547
    %v551 = vsel %vm364, %v549, 0
    %553 = vmatprep.subr.mxu0 0.0
    %554 = vmatpush1.msra.mxu0 %v244
    %555 = vmatprep.subr.mxu0 0.0
    %556 = vmatpush1.msra.mxu0 %v245
    %557 = vmatprep.subr.mxu0 0.0
    %558 = vmatpush1.msra.mxu0 %v246
    %559 = vmatprep.subr.mxu0 0.0
    %560 = vmatpush1.msra.mxu0 %v247
    %561 = vmatprep.subr.mxu0 0.0
    %562 = vmatpush1.msra.mxu0 %v248
    %563 = vmatprep.subr.mxu0 0.0
    %564 = vmatpush1.msra.mxu0 %v249
    %565 = vmatprep.subr.mxu0 0.0
    %566 = vmatpush1.msra.mxu0 %v250
    %567 = vmatprep.subr.mxu0 0.0
    %568 = vmatpush1.msra.mxu0 %v251
    %569 = vmatprep.subr.mxu0 0.0
    %570 = vmatpush1.msra.mxu0 0.0
    %571 = vmatprep.subr.mxu0 0.0
    %572 = vmatpush1.msra.mxu0 0.0
    %573 = vmatprep.subr.mxu0 0.0
    %574 = vmatpush1.msra.mxu0 0.0
    %575 = vmatprep.subr.mxu0 0.0
    %576 = vmatpush1.msra.mxu0 0.0
    %577 = vmatprep.subr.mxu0 0.0
    %578 = vmatpush1.msra.mxu0 0.0
    %579 = vmatprep.subr.mxu0 0.0
    %580 = vmatpush1.msra.mxu0 0.0
    %581 = vmatprep.subr.mxu0 0.0
    %582 = vmatpush1.msra.mxu0 0.0
    %583 = vmatprep.subr.mxu0 0.0
    %584 = vmatpush1.msra.mxu0 0.0
    %585 = vmatprep.subr.mxu0 0.0
    %586 = vmatpush1.msra.mxu0 0.0
    %587 = vmatprep.subr.mxu0 0.0
    %588 = vmatpush1.msra.mxu0 0.0
    %589 = vmatprep.subr.mxu0 0.0
    %590 = vmatpush1.msra.mxu0 0.0
    %591 = vmatprep.subr.mxu0 0.0
    %592 = vmatpush1.msra.mxu0 0.0
    %593 = vmatprep.subr.mxu0 0.0
    %594 = vmatpush1.msra.mxu0 0.0
    %595 = vmatprep.subr.mxu0 0.0
    %596 = vmatpush1.msra.mxu0 0.0
    %597 = vmatprep.subr.mxu0 0.0
    %598 = vmatpush1.msra.mxu0 0.0
    %599 = vmatprep.subr.mxu0 0.0
    %600 = vmatpush1.msra.mxu0 0.0
    %601 = vmatprep.subr.mxu0 0.0
    %602 = vmatpush1.msra.mxu0 0.0
    %603 = vmatprep.subr.mxu0 0.0
    %604 = vmatpush1.msra.mxu0 0.0
    %605 = vmatprep.subr.mxu0 0.0
    %606 = vmatpush1.msra.mxu0 0.0
    %607 = vmatprep.subr.mxu0 0.0
    %608 = vmatpush1.msra.mxu0 0.0
    %609 = vmatprep.subr.mxu0 0.0
    %610 = vmatpush1.msra.mxu0 0.0
    %611 = vmatprep.subr.mxu0 0.0
    %612 = vmatpush1.msra.mxu0 0.0
    %613 = vmatprep.subr.mxu0 0.0
    %614 = vmatpush1.msra.mxu0 0.0
    %615 = vmatprep.subr.mxu0 0.0
    %616 = vmatpush1.msra.mxu0 0.0
    %617 = vmatprep.mubr.f32.mxu0 0.0
    %618 = vmatmul.mubr.f32.gmra.mrb[0].mxu0 %v551
    %v619 = vpop.f32.mrb[0].mxu0
    %v620 = vadd.f32 0.0, %v619
    %v621 = vpop.f32.mrb[0].mxu0
    %622 = vdwg.mxu0
    %s623 = scalar_lea.vmem [#allocation2], 8
    %624 = vst.msk [vmem:[%s623] sm:$0xff] %vm257, %v620
    %s625 = smul.u32 2, 2
    %s626 = smul.addr %s625, 8
    %s627 = scalar_lea.vmem [#allocation4], %s626
    %v628 = vld [vmem:[%s627] sm:$0xff]
    %v629 = vld [vmem:[%s627 + $0x8] sm:$0xff]
    %v631 = vsel %vm257, %v620, 0
    %633 = vmatprep.subr.mxu0 %v237
    %634 = vmatpush1.msra.mxu0 %v236
    %635 = vmatprep.subr.mxu0 %v239
    %636 = vmatpush1.msra.mxu0 %v238
    %637 = vmatprep.subr.mxu0 %v241
    %638 = vmatpush1.msra.mxu0 %v240
    %639 = vmatprep.subr.mxu0 %v243
    %640 = vmatpush1.msra.mxu0 %v242
    %641 = vmatprep.subr.mxu0 0.0
    %642 = vmatpush1.msra.mxu0 0.0
    %643 = vmatprep.subr.mxu0 0.0
    %644 = vmatpush1.msra.mxu0 0.0
    %645 = vmatprep.subr.mxu0 0.0
    %646 = vmatpush1.msra.mxu0 0.0
    %647 = vmatprep.subr.mxu0 0.0
    %648 = vmatpush1.msra.mxu0 0.0
    %649 = vmatprep.subr.mxu0 0.0
    %650 = vmatpush1.msra.mxu0 0.0
    %651 = vmatprep.subr.mxu0 0.0
    %652 = vmatpush1.msra.mxu0 0.0
    %653 = vmatprep.subr.mxu0 0.0
    %654 = vmatpush1.msra.mxu0 0.0
    %655 = vmatprep.subr.mxu0 0.0
    %656 = vmatpush1.msra.mxu0 0.0
    %657 = vmatprep.subr.mxu0 0.0
    %658 = vmatpush1.msra.mxu0 0.0
    %659 = vmatprep.subr.mxu0 0.0
    %660 = vmatpush1.msra.mxu0 0.0
    %661 = vmatprep.subr.mxu0 0.0
    %662 = vmatpush1.msra.mxu0 0.0
    %663 = vmatprep.subr.mxu0 0.0
    %664 = vmatpush1.msra.mxu0 0.0
    %665 = vmatprep.subr.mxu0 0.0
    %666 = vmatpush1.msra.mxu0 0.0
    %667 = vmatprep.subr.mxu0 0.0
    %668 = vmatpush1.msra.mxu0 0.0
    %669 = vmatprep.subr.mxu0 0.0
    %670 = vmatpush1.msra.mxu0 0.0
    %671 = vmatprep.subr.mxu0 0.0
    %672 = vmatpush1.msra.mxu0 0.0
    %673 = vmatprep.subr.mxu0 0.0
    %674 = vmatpush1.msra.mxu0 0.0
    %675 = vmatprep.subr.mxu0 0.0
    %676 = vmatpush1.msra.mxu0 0.0
    %677 = vmatprep.subr.mxu0 0.0
    %678 = vmatpush1.msra.mxu0 0.0
    %679 = vmatprep.subr.mxu0 0.0
    %680 = vmatpush1.msra.mxu0 0.0
    %681 = vmatprep.subr.mxu0 0.0
    %682 = vmatpush1.msra.mxu0 0.0
    %683 = vmatprep.subr.mxu0 0.0
    %684 = vmatpush1.msra.mxu0 0.0
    %685 = vmatprep.subr.mxu0 0.0
    %686 = vmatpush1.msra.mxu0 0.0
    %687 = vmatprep.subr.mxu0 0.0
    %688 = vmatpush1.msra.mxu0 0.0
    %689 = vmatprep.subr.mxu0 0.0
    %690 = vmatpush1.msra.mxu0 0.0
    %691 = vmatprep.subr.mxu0 0.0
    %692 = vmatpush1.msra.mxu0 0.0
    %693 = vmatprep.subr.mxu0 0.0
    %694 = vmatpush1.msra.mxu0 0.0
    %695 = vmatprep.subr.mxu0 0.0
    %696 = vmatpush1.msra.mxu0 0.0
    %697 = vmatprep.mubr.f32.mxu0 0.0
    %698 = vmatmul.mubr.f32.gmra.mrb[0].mxu0 %v631
    %v699 = vpop.f32.mrb[0].mxu0
    %v700 = vadd.f32 0.0, %v699
    %v701 = vpop.f32.mrb[0].mxu0
    %v702 = vadd.f32 0.0, %v701
    %703 = vdwg.mxu0
    %v704 = vadd.f32 %v628, %v700
    %v705 = vadd.f32 %v629, %v702
    %v706 = vxor.u32 %v704, 2147483648
    %v707 = vxor.u32 %v705, 2147483648
    %v708 = vmul.f32 %v706, 1.442695
    %v709 = vpow.pop %v708
    %v710 = vmul.f32 %v707, 1.442695
    %v711 = vpow.pop %v710
    %v712 = vadd.f32 %v709, 1.0
    %v713 = vadd.f32 %v711, 1.0
    %v714 = vrcp.pop %v712
    %v715 = vmul.f32 1.0, %v714
    %v716 = vrcp.pop %v713
    %v717 = vmul.f32 1.0, %v716
    %v718 = vtanh.pop %v705
    %v719 = vmul.f32 %v715, %v543
    %721 = vrot.lane.b32.xlu0 %v718, 64
    %v722 = vpop.permute.xlu0 %721
    %v724 = vmul.f32 %v715, %v722
    %726 = vrot.lane.b32.xlu0 %v724, 64
    %v727 = vpop.permute.xlu0 %726
    %v729 = vadd.f32 %v719, %v727
    %v730 = vtanh.pop %v729
    %732 = vrot.lane.b32.xlu0 %v730, 64
    %v733 = vpop.permute.xlu0 %732
    %v735 = vmul.f32 %v717, %v733
    %v737 = vsel %vm364, %v735, 0
    %739 = vmatprep.subr.mxu0 0.0
    %740 = vmatpush1.msra.mxu0 %v244
    %741 = vmatprep.subr.mxu0 0.0
    %742 = vmatpush1.msra.mxu0 %v245
    %743 = vmatprep.subr.mxu0 0.0
    %744 = vmatpush1.msra.mxu0 %v246
    %745 = vmatprep.subr.mxu0 0.0
    %746 = vmatpush1.msra.mxu0 %v247
    %747 = vmatprep.subr.mxu0 0.0
    %748 = vmatpush1.msra.mxu0 %v248
    %749 = vmatprep.subr.mxu0 0.0
    %750 = vmatpush1.msra.mxu0 %v249
    %751 = vmatprep.subr.mxu0 0.0
    %752 = vmatpush1.msra.mxu0 %v250
    %753 = vmatprep.subr.mxu0 0.0
    %754 = vmatpush1.msra.mxu0 %v251
    %755 = vmatprep.subr.mxu0 0.0
    %756 = vmatpush1.msra.mxu0 0.0
    %757 = vmatprep.subr.mxu0 0.0
    %758 = vmatpush1.msra.mxu0 0.0
    %759 = vmatprep.subr.mxu0 0.0
    %760 = vmatpush1.msra.mxu0 0.0
    %761 = vmatprep.subr.mxu0 0.0
    %762 = vmatpush1.msra.mxu0 0.0
    %763 = vmatprep.subr.mxu0 0.0
    %764 = vmatpush1.msra.mxu0 0.0
    %765 = vmatprep.subr.mxu0 0.0
    %766 = vmatpush1.msra.mxu0 0.0
    %767 = vmatprep.subr.mxu0 0.0
    %768 = vmatpush1.msra.mxu0 0.0
    %769 = vmatprep.subr.mxu0 0.0
    %770 = vmatpush1.msra.mxu0 0.0
    %771 = vmatprep.subr.mxu0 0.0
    %772 = vmatpush1.msra.mxu0 0.0
    %773 = vmatprep.subr.mxu0 0.0
    %774 = vmatpush1.msra.mxu0 0.0
    %775 = vmatprep.subr.mxu0 0.0
    %776 = vmatpush1.msra.mxu0 0.0
    %777 = vmatprep.subr.mxu0 0.0
    %778 = vmatpush1.msra.mxu0 0.0
    %779 = vmatprep.subr.mxu0 0.0
    %780 = vmatpush1.msra.mxu0 0.0
    %781 = vmatprep.subr.mxu0 0.0
    %782 = vmatpush1.msra.mxu0 0.0
    %783 = vmatprep.subr.mxu0 0.0
    %784 = vmatpush1.msra.mxu0 0.0
    %785 = vmatprep.subr.mxu0 0.0
    %786 = vmatpush1.msra.mxu0 0.0
    %787 = vmatprep.subr.mxu0 0.0
    %788 = vmatpush1.msra.mxu0 0.0
    %789 = vmatprep.subr.mxu0 0.0
    %790 = vmatpush1.msra.mxu0 0.0
    %791 = vmatprep.subr.mxu0 0.0
    %792 = vmatpush1.msra.mxu0 0.0
    %793 = vmatprep.subr.mxu0 0.0
    %794 = vmatpush1.msra.mxu0 0.0
    %795 = vmatprep.subr.mxu0 0.0
    %796 = vmatpush1.msra.mxu0 0.0
    %797 = vmatprep.subr.mxu0 0.0
    %798 = vmatpush1.msra.mxu0 0.0
    %799 = vmatprep.subr.mxu0 0.0
    %800 = vmatpush1.msra.mxu0 0.0
    %801 = vmatprep.subr.mxu0 0.0
    %802 = vmatpush1.msra.mxu0 0.0
    %803 = vmatprep.mubr.f32.mxu0 0.0
    %804 = vmatmul.mubr.f32.gmra.mrb[0].mxu0 %v737
    %v805 = vpop.f32.mrb[0].mxu0
    %v806 = vadd.f32 0.0, %v805
    %v807 = vpop.f32.mrb[0].mxu0
    %808 = vdwg.mxu0
    %s809 = scalar_lea.vmem [#allocation2], 16
    %810 = vst.msk [vmem:[%s809] sm:$0xff] %vm257, %v806
    %s811 = smul.u32 3, 2
    %s812 = smul.addr %s811, 8
    %s813 = scalar_lea.vmem [#allocation4], %s812
    %v814 = vld [vmem:[%s813] sm:$0xff]
    %v815 = vld [vmem:[%s813 + $0x8] sm:$0xff]
    %v817 = vsel %vm257, %v806, 0
    %819 = vmatprep.subr.mxu0 %v237
    %820 = vmatpush1.msra.mxu0 %v236
    %821 = vmatprep.subr.mxu0 %v239
    %822 = vmatpush1.msra.mxu0 %v238
    %823 = vmatprep.subr.mxu0 %v241
    %824 = vmatpush1.msra.mxu0 %v240
    %825 = vmatprep.subr.mxu0 %v243
    %826 = vmatpush1.msra.mxu0 %v242
    %827 = vmatprep.subr.mxu0 0.0
    %828 = vmatpush1.msra.mxu0 0.0
    %829 = vmatprep.subr.mxu0 0.0
    %830 = vmatpush1.msra.mxu0 0.0
    %831 = vmatprep.subr.mxu0 0.0
    %832 = vmatpush1.msra.mxu0 0.0
    %833 = vmatprep.subr.mxu0 0.0
    %834 = vmatpush1.msra.mxu0 0.0
    %835 = vmatprep.subr.mxu0 0.0
    %836 = vmatpush1.msra.mxu0 0.0
    %837 = vmatprep.subr.mxu0 0.0
    %838 = vmatpush1.msra.mxu0 0.0
    %839 = vmatprep.subr.mxu0 0.0
    %840 = vmatpush1.msra.mxu0 0.0
    %841 = vmatprep.subr.mxu0 0.0
    %842 = vmatpush1.msra.mxu0 0.0
    %843 = vmatprep.subr.mxu0 0.0
    %844 = vmatpush1.msra.mxu0 0.0
    %845 = vmatprep.subr.mxu0 0.0
    %846 = vmatpush1.msra.mxu0 0.0
    %847 = vmatprep.subr.mxu0 0.0
    %848 = vmatpush1.msra.mxu0 0.0
    %849 = vmatprep.subr.mxu0 0.0
    %850 = vmatpush1.msra.mxu0 0.0
    %851 = vmatprep.subr.mxu0 0.0
    %852 = vmatpush1.msra.mxu0 0.0
    %853 = vmatprep.subr.mxu0 0.0
    %854 = vmatpush1.msra.mxu0 0.0
    %855 = vmatprep.subr.mxu0 0.0
    %856 = vmatpush1.msra.mxu0 0.0
    %857 = vmatprep.subr.mxu0 0.0
    %858 = vmatpush1.msra.mxu0 0.0
    %859 = vmatprep.subr.mxu0 0.0
    %860 = vmatpush1.msra.mxu0 0.0
    %861 = vmatprep.subr.mxu0 0.0
    %862 = vmatpush1.msra.mxu0 0.0
    %863 = vmatprep.subr.mxu0 0.0
    %864 = vmatpush1.msra.mxu0 0.0
    %865 = vmatprep.subr.mxu0 0.0
    %866 = vmatpush1.msra.mxu0 0.0
    %867 = vmatprep.subr.mxu0 0.0
    %868 = vmatpush1.msra.mxu0 0.0
    %869 = vmatprep.subr.mxu0 0.0
    %870 = vmatpush1.msra.mxu0 0.0
    %871 = vmatprep.subr.mxu0 0.0
    %872 = vmatpush1.msra.mxu0 0.0
    %873 = vmatprep.subr.mxu0 0.0
    %874 = vmatpush1.msra.mxu0 0.0
    %875 = vmatprep.subr.mxu0 0.0
    %876 = vmatpush1.msra.mxu0 0.0
    %877 = vmatprep.subr.mxu0 0.0
    %878 = vmatpush1.msra.mxu0 0.0
    %879 = vmatprep.subr.mxu0 0.0
    %880 = vmatpush1.msra.mxu0 0.0
    %881 = vmatprep.subr.mxu0 0.0
    %882 = vmatpush1.msra.mxu0 0.0
    %883 = vmatprep.mubr.f32.mxu0 0.0
    %884 = vmatmul.mubr.f32.gmra.mrb[0].mxu0 %v817
    %v885 = vpop.f32.mrb[0].mxu0
    %v886 = vadd.f32 0.0, %v885
    %v887 = vpop.f32.mrb[0].mxu0
    %v888 = vadd.f32 0.0, %v887
    %889 = vdwg.mxu0
    %v890 = vadd.f32 %v814, %v886
    %v891 = vadd.f32 %v815, %v888
    %v892 = vxor.u32 %v890, 2147483648
    %v893 = vxor.u32 %v891, 2147483648
    %v894 = vmul.f32 %v892, 1.442695
    %v895 = vpow.pop %v894
    %v896 = vmul.f32 %v893, 1.442695
    %v897 = vpow.pop %v896
    %v898 = vadd.f32 %v895, 1.0
    %v899 = vadd.f32 %v897, 1.0
    %v900 = vrcp.pop %v898
    %v901 = vmul.f32 1.0, %v900
    %v902 = vrcp.pop %v899
    %v903 = vmul.f32 1.0, %v902
    %v904 = vtanh.pop %v891
    %v905 = vmul.f32 %v901, %v729
    %907 = vrot.lane.b32.xlu0 %v904, 64
    %v908 = vpop.permute.xlu0 %907
    %v910 = vmul.f32 %v901, %v908
    %912 = vrot.lane.b32.xlu0 %v910, 64
    %v913 = vpop.permute.xlu0 %912
    %v915 = vadd.f32 %v905, %v913
    %v916 = vtanh.pop %v915
    %918 = vrot.lane.b32.xlu0 %v916, 64
    %v919 = vpop.permute.xlu0 %918
    %v921 = vmul.f32 %v903, %v919
    %v923 = vsel %vm364, %v921, 0
    %925 = vmatprep.subr.mxu0 0.0
    %926 = vmatpush1.msra.mxu0 %v244
    %927 = vmatprep.subr.mxu0 0.0
    %928 = vmatpush1.msra.mxu0 %v245
    %929 = vmatprep.subr.mxu0 0.0
    %930 = vmatpush1.msra.mxu0 %v246
    %931 = vmatprep.subr.mxu0 0.0
    %932 = vmatpush1.msra.mxu0 %v247
    %933 = vmatprep.subr.mxu0 0.0
    %934 = vmatpush1.msra.mxu0 %v248
    %935 = vmatprep.subr.mxu0 0.0
    %936 = vmatpush1.msra.mxu0 %v249
    %937 = vmatprep.subr.mxu0 0.0
    %938 = vmatpush1.msra.mxu0 %v250
    %939 = vmatprep.subr.mxu0 0.0
    %940 = vmatpush1.msra.mxu0 %v251
    %941 = vmatprep.subr.mxu0 0.0
    %942 = vmatpush1.msra.mxu0 0.0
    %943 = vmatprep.subr.mxu0 0.0
    %944 = vmatpush1.msra.mxu0 0.0
    %945 = vmatprep.subr.mxu0 0.0
    %946 = vmatpush1.msra.mxu0 0.0
    %947 = vmatprep.subr.mxu0 0.0
    %948 = vmatpush1.msra.mxu0 0.0
    %949 = vmatprep.subr.mxu0 0.0
    %950 = vmatpush1.msra.mxu0 0.0
    %951 = vmatprep.subr.mxu0 0.0
    %952 = vmatpush1.msra.mxu0 0.0
    %953 = vmatprep.subr.mxu0 0.0
    %954 = vmatpush1.msra.mxu0 0.0
    %955 = vmatprep.subr.mxu0 0.0
    %956 = vmatpush1.msra.mxu0 0.0
    %957 = vmatprep.subr.mxu0 0.0
    %958 = vmatpush1.msra.mxu0 0.0
    %959 = vmatprep.subr.mxu0 0.0
    %960 = vmatpush1.msra.mxu0 0.0
    %961 = vmatprep.subr.mxu0 0.0
    %962 = vmatpush1.msra.mxu0 0.0
    %963 = vmatprep.subr.mxu0 0.0
    %964 = vmatpush1.msra.mxu0 0.0
    %965 = vmatprep.subr.mxu0 0.0
    %966 = vmatpush1.msra.mxu0 0.0
    %967 = vmatprep.subr.mxu0 0.0
    %968 = vmatpush1.msra.mxu0 0.0
    %969 = vmatprep.subr.mxu0 0.0
    %970 = vmatpush1.msra.mxu0 0.0
    %971 = vmatprep.subr.mxu0 0.0
    %972 = vmatpush1.msra.mxu0 0.0
    %973 = vmatprep.subr.mxu0 0.0
    %974 = vmatpush1.msra.mxu0 0.0
    %975 = vmatprep.subr.mxu0 0.0
    %976 = vmatpush1.msra.mxu0 0.0
    %977 = vmatprep.subr.mxu0 0.0
    %978 = vmatpush1.msra.mxu0 0.0
    %979 = vmatprep.subr.mxu0 0.0
    %980 = vmatpush1.msra.mxu0 0.0
    %981 = vmatprep.subr.mxu0 0.0
    %982 = vmatpush1.msra.mxu0 0.0
    %983 = vmatprep.subr.mxu0 0.0
    %984 = vmatpush1.msra.mxu0 0.0
    %985 = vmatprep.subr.mxu0 0.0
    %986 = vmatpush1.msra.mxu0 0.0
    %987 = vmatprep.subr.mxu0 0.0
    %988 = vmatpush1.msra.mxu0 0.0
    %989 = vmatprep.mubr.f32.mxu0 0.0
    %990 = vmatmul.mubr.f32.gmra.mrb[0].mxu0 %v923
    %v991 = vpop.f32.mrb[0].mxu0
    %v992 = vadd.f32 0.0, %v991
    %v993 = vpop.f32.mrb[0].mxu0
    %994 = vdwg.mxu0
    %s995 = scalar_lea.vmem [#allocation2], 24
    %996 = vst.msk [vmem:[%s995] sm:$0xff] %vm257, %v992
    %s997 = smul.u32 4, 2
    %s998 = smul.addr %s997, 8
    %s999 = scalar_lea.vmem [#allocation4], %s998
    %v1000 = vld [vmem:[%s999] sm:$0xff]
    %v1001 = vld [vmem:[%s999 + $0x8] sm:$0xff]
    %v1003 = vsel %vm257, %v992, 0
    %1005 = vmatprep.subr.mxu0 %v237
    %1006 = vmatpush1.msra.mxu0 %v236
    %1007 = vmatprep.subr.mxu0 %v239
    %1008 = vmatpush1.msra.mxu0 %v238
    %1009 = vmatprep.subr.mxu0 %v241
    %1010 = vmatpush1.msra.mxu0 %v240
    %1011 = vmatprep.subr.mxu0 %v243
    %1012 = vmatpush1.msra.mxu0 %v242
    %1013 = vmatprep.subr.mxu0 0.0
    %1014 = vmatpush1.msra.mxu0 0.0
    %1015 = vmatprep.subr.mxu0 0.0
    %1016 = vmatpush1.msra.mxu0 0.0
    %1017 = vmatprep.subr.mxu0 0.0
    %1018 = vmatpush1.msra.mxu0 0.0
    %1019 = vmatprep.subr.mxu0 0.0
    %1020 = vmatpush1.msra.mxu0 0.0
    %1021 = vmatprep.subr.mxu0 0.0
    %1022 = vmatpush1.msra.mxu0 0.0
    %1023 = vmatprep.subr.mxu0 0.0
    %1024 = vmatpush1.msra.mxu0 0.0
    %1025 = vmatprep.subr.mxu0 0.0
    %1026 = vmatpush1.msra.mxu0 0.0
    %1027 = vmatprep.subr.mxu0 0.0
    %1028 = vmatpush1.msra.mxu0 0.0
    %1029 = vmatprep.subr.mxu0 0.0
    %1030 = vmatpush1.msra.mxu0 0.0
    %1031 = vmatprep.subr.mxu0 0.0
    %1032 = vmatpush1.msra.mxu0 0.0
    %1033 = vmatprep.subr.mxu0 0.0
    %1034 = vmatpush1.msra.mxu0 0.0
    %1035 = vmatprep.subr.mxu0 0.0
    %1036 = vmatpush1.msra.mxu0 0.0
    %1037 = vmatprep.subr.mxu0 0.0
    %1038 = vmatpush1.msra.mxu0 0.0
    %1039 = vmatprep.subr.mxu0 0.0
    %1040 = vmatpush1.msra.mxu0 0.0
    %1041 = vmatprep.subr.mxu0 0.0
    %1042 = vmatpush1.msra.mxu0 0.0
    %1043 = vmatprep.subr.mxu0 0.0
    %1044 = vmatpush1.msra.mxu0 0.0
    %1045 = vmatprep.subr.mxu0 0.0
    %1046 = vmatpush1.msra.mxu0 0.0
    %1047 = vmatprep.subr.mxu0 0.0
    %1048 = vmatpush1.msra.mxu0 0.0
    %1049 = vmatprep.subr.mxu0 0.0
    %1050 = vmatpush1.msra.mxu0 0.0
    %1051 = vmatprep.subr.mxu0 0.0
    %1052 = vmatpush1.msra.mxu0 0.0
    %1053 = vmatprep.subr.mxu0 0.0
    %1054 = vmatpush1.msra.mxu0 0.0
    %1055 = vmatprep.subr.mxu0 0.0
    %1056 = vmatpush1.msra.mxu0 0.0
    %1057 = vmatprep.subr.mxu0 0.0
    %1058 = vmatpush1.msra.mxu0 0.0
    %1059 = vmatprep.subr.mxu0 0.0
    %1060 = vmatpush1.msra.mxu0 0.0
    %1061 = vmatprep.subr.mxu0 0.0
    %1062 = vmatpush1.msra.mxu0 0.0
    %1063 = vmatprep.subr.mxu0 0.0
    %1064 = vmatpush1.msra.mxu0 0.0
    %1065 = vmatprep.subr.mxu0 0.0
    %1066 = vmatpush1.msra.mxu0 0.0
    %1067 = vmatprep.subr.mxu0 0.0
    %1068 = vmatpush1.msra.mxu0 0.0
    %1069 = vmatprep.mubr.f32.mxu0 0.0
    %1070 = vmatmul.mubr.f32.gmra.mrb[0].mxu0 %v1003
    %v1071 = vpop.f32.mrb[0].mxu0
    %v1072 = vadd.f32 0.0, %v1071
    %v1073 = vpop.f32.mrb[0].mxu0
    %v1074 = vadd.f32 0.0, %v1073
    %1075 = vdwg.mxu0
    %v1076 = vadd.f32 %v1000, %v1072
    %v1077 = vadd.f32 %v1001, %v1074
    %v1078 = vxor.u32 %v1076, 2147483648
    %v1079 = vxor.u32 %v1077, 2147483648
    %v1080 = vmul.f32 %v1078, 1.442695
    %v1081 = vpow.pop %v1080
    %v1082 = vmul.f32 %v1079, 1.442695
    %v1083 = vpow.pop %v1082
    %v1084 = vadd.f32 %v1081, 1.0
    %v1085 = vadd.f32 %v1083, 1.0
    %v1086 = vrcp.pop %v1084
    %v1087 = vmul.f32 1.0, %v1086
    %v1088 = vrcp.pop %v1085
    %v1089 = vmul.f32 1.0, %v1088
    %v1090 = vtanh.pop %v1077
    %v1091 = vmul.f32 %v1087, %v915
    %1093 = vrot.lane.b32.xlu0 %v1090, 64
    %v1094 = vpop.permute.xlu0 %1093
    %v1096 = vmul.f32 %v1087, %v1094
    %1098 = vrot.lane.b32.xlu0 %v1096, 64
    %v1099 = vpop.permute.xlu0 %1098
    %v1101 = vadd.f32 %v1091, %v1099
    %v1102 = vtanh.pop %v1101
    %1104 = vrot.lane.b32.xlu0 %v1102, 64
    %v1105 = vpop.permute.xlu0 %1104
    %v1107 = vmul.f32 %v1089, %v1105
    %v1109 = vsel %vm364, %v1107, 0
    %1111 = vmatprep.subr.mxu0 0.0
    %1112 = vmatpush1.msra.mxu0 %v244
    %1113 = vmatprep.subr.mxu0 0.0
    %1114 = vmatpush1.msra.mxu0 %v245
    %1115 = vmatprep.subr.mxu0 0.0
    %1116 = vmatpush1.msra.mxu0 %v246
    %1117 = vmatprep.subr.mxu0 0.0
    %1118 = vmatpush1.msra.mxu0 %v247
    %1119 = vmatprep.subr.mxu0 0.0
    %1120 = vmatpush1.msra.mxu0 %v248
    %1121 = vmatprep.subr.mxu0 0.0
    %1122 = vmatpush1.msra.mxu0 %v249
    %1123 = vmatprep.subr.mxu0 0.0
    %1124 = vmatpush1.msra.mxu0 %v250
    %1125 = vmatprep.subr.mxu0 0.0
    %1126 = vmatpush1.msra.mxu0 %v251
    %1127 = vmatprep.subr.mxu0 0.0
    %1128 = vmatpush1.msra.mxu0 0.0
    %1129 = vmatprep.subr.mxu0 0.0
    %1130 = vmatpush1.msra.mxu0 0.0
    %1131 = vmatprep.subr.mxu0 0.0
    %1132 = vmatpush1.msra.mxu0 0.0
    %1133 = vmatprep.subr.mxu0 0.0
    %1134 = vmatpush1.msra.mxu0 0.0
    %1135 = vmatprep.subr.mxu0 0.0
    %1136 = vmatpush1.msra.mxu0 0.0
    %1137 = vmatprep.subr.mxu0 0.0
    %1138 = vmatpush1.msra.mxu0 0.0
    %1139 = vmatprep.subr.mxu0 0.0
    %1140 = vmatpush1.msra.mxu0 0.0
    %1141 = vmatprep.subr.mxu0 0.0
    %1142 = vmatpush1.msra.mxu0 0.0
    %1143 = vmatprep.subr.mxu0 0.0
    %1144 = vmatpush1.msra.mxu0 0.0
    %1145 = vmatprep.subr.mxu0 0.0
    %1146 = vmatpush1.msra.mxu0 0.0
    %1147 = vmatprep.subr.mxu0 0.0
    %1148 = vmatpush1.msra.mxu0 0.0
    %1149 = vmatprep.subr.mxu0 0.0
    %1150 = vmatpush1.msra.mxu0 0.0
    %1151 = vmatprep.subr.mxu0 0.0
    %1152 = vmatpush1.msra.mxu0 0.0
    %1153 = vmatprep.subr.mxu0 0.0
    %1154 = vmatpush1.msra.mxu0 0.0
    %1155 = vmatprep.subr.mxu0 0.0
    %1156 = vmatpush1.msra.mxu0 0.0
    %1157 = vmatprep.subr.mxu0 0.0
    %1158 = vmatpush1.msra.mxu0 0.0
    %1159 = vmatprep.subr.mxu0 0.0
    %1160 = vmatpush1.msra.mxu0 0.0
    %1161 = vmatprep.subr.mxu0 0.0
    %1162 = vmatpush1.msra.mxu0 0.0
    %1163 = vmatprep.subr.mxu0 0.0
    %1164 = vmatpush1.msra.mxu0 0.0
    %1165 = vmatprep.subr.mxu0 0.0
    %1166 = vmatpush1.msra.mxu0 0.0
    %1167 = vmatprep.subr.mxu0 0.0
    %1168 = vmatpush1.msra.mxu0 0.0
    %1169 = vmatprep.subr.mxu0 0.0
    %1170 = vmatpush1.msra.mxu0 0.0
    %1171 = vmatprep.subr.mxu0 0.0
    %1172 = vmatpush1.msra.mxu0 0.0
    %1173 = vmatprep.subr.mxu0 0.0
    %1174 = vmatpush1.msra.mxu0 0.0
    %1175 = vmatprep.mubr.f32.mxu0 0.0
    %1176 = vmatmul.mubr.f32.gmra.mrb[0].mxu0 %v1109
    %v1177 = vpop.f32.mrb[0].mxu0
    %v1178 = vadd.f32 0.0, %v1177
    %v1179 = vpop.f32.mrb[0].mxu0
    %1180 = vdwg.mxu0
    %s1181 = scalar_lea.vmem [#allocation2], 32
    %1182 = vst.msk [vmem:[%s1181] sm:$0xff] %vm257, %v1178
    %s1183 = smul.u32 5, 2
    %s1184 = smul.addr %s1183, 8
    %s1185 = scalar_lea.vmem [#allocation4], %s1184
    %v1186 = vld [vmem:[%s1185] sm:$0xff]
    %v1187 = vld [vmem:[%s1185 + $0x8] sm:$0xff]
    %v1189 = vsel %vm257, %v1178, 0
    %1191 = vmatprep.subr.mxu0 %v237
    %1192 = vmatpush1.msra.mxu0 %v236
    %1193 = vmatprep.subr.mxu0 %v239
    %1194 = vmatpush1.msra.mxu0 %v238
    %1195 = vmatprep.subr.mxu0 %v241
    %1196 = vmatpush1.msra.mxu0 %v240
    %1197 = vmatprep.subr.mxu0 %v243
    %1198 = vmatpush1.msra.mxu0 %v242
    %1199 = vmatprep.subr.mxu0 0.0
    %1200 = vmatpush1.msra.mxu0 0.0
    %1201 = vmatprep.subr.mxu0 0.0
    %1202 = vmatpush1.msra.mxu0 0.0
    %1203 = vmatprep.subr.mxu0 0.0
    %1204 = vmatpush1.msra.mxu0 0.0
    %1205 = vmatprep.subr.mxu0 0.0
    %1206 = vmatpush1.msra.mxu0 0.0
    %1207 = vmatprep.subr.mxu0 0.0
    %1208 = vmatpush1.msra.mxu0 0.0
    %1209 = vmatprep.subr.mxu0 0.0
    %1210 = vmatpush1.msra.mxu0 0.0
    %1211 = vmatprep.subr.mxu0 0.0
    %1212 = vmatpush1.msra.mxu0 0.0
    %1213 = vmatprep.subr.mxu0 0.0
    %1214 = vmatpush1.msra.mxu0 0.0
    %1215 = vmatprep.subr.mxu0 0.0
    %1216 = vmatpush1.msra.mxu0 0.0
    %1217 = vmatprep.subr.mxu0 0.0
    %1218 = vmatpush1.msra.mxu0 0.0
    %1219 = vmatprep.subr.mxu0 0.0
    %1220 = vmatpush1.msra.mxu0 0.0
    %1221 = vmatprep.subr.mxu0 0.0
    %1222 = vmatpush1.msra.mxu0 0.0
    %1223 = vmatprep.subr.mxu0 0.0
    %1224 = vmatpush1.msra.mxu0 0.0
    %1225 = vmatprep.subr.mxu0 0.0
    %1226 = vmatpush1.msra.mxu0 0.0
    %1227 = vmatprep.subr.mxu0 0.0
    %1228 = vmatpush1.msra.mxu0 0.0
    %1229 = vmatprep.subr.mxu0 0.0
    %1230 = vmatpush1.msra.mxu0 0.0
    %1231 = vmatprep.subr.mxu0 0.0
    %1232 = vmatpush1.msra.mxu0 0.0
    %1233 = vmatprep.subr.mxu0 0.0
    %1234 = vmatpush1.msra.mxu0 0.0
    %1235 = vmatprep.subr.mxu0 0.0
    %1236 = vmatpush1.msra.mxu0 0.0
    %1237 = vmatprep.subr.mxu0 0.0
    %1238 = vmatpush1.msra.mxu0 0.0
    %1239 = vmatprep.subr.mxu0 0.0
    %1240 = vmatpush1.msra.mxu0 0.0
    %1241 = vmatprep.subr.mxu0 0.0
    %1242 = vmatpush1.msra.mxu0 0.0
    %1243 = vmatprep.subr.mxu0 0.0
    %1244 = vmatpush1.msra.mxu0 0.0
    %1245 = vmatprep.subr.mxu0 0.0
    %1246 = vmatpush1.msra.mxu0 0.0
    %1247 = vmatprep.subr.mxu0 0.0
    %1248 = vmatpush1.msra.mxu0 0.0
    %1249 = vmatprep.subr.mxu0 0.0
    %1250 = vmatpush1.msra.mxu0 0.0
    %1251 = vmatprep.subr.mxu0 0.0
    %1252 = vmatpush1.msra.mxu0 0.0
    %1253 = vmatprep.subr.mxu0 0.0
    %1254 = vmatpush1.msra.mxu0 0.0
    %1255 = vmatprep.mubr.f32.mxu0 0.0
    %1256 = vmatmul.mubr.f32.gmra.mrb[0].mxu0 %v1189
    %v1257 = vpop.f32.mrb[0].mxu0
    %v1258 = vadd.f32 0.0, %v1257
    %v1259 = vpop.f32.mrb[0].mxu0
    %v1260 = vadd.f32 0.0, %v1259
    %1261 = vdwg.mxu0
    %v1262 = vadd.f32 %v1186, %v1258
    %v1263 = vadd.f32 %v1187, %v1260
    %v1264 = vxor.u32 %v1262, 2147483648
    %v1265 = vxor.u32 %v1263, 2147483648
    %v1266 = vmul.f32 %v1264, 1.442695
    %v1267 = vpow.pop %v1266
    %v1268 = vmul.f32 %v1265, 1.442695
    %v1269 = vpow.pop %v1268
    %v1270 = vadd.f32 %v1267, 1.0
    %v1271 = vadd.f32 %v1269, 1.0
    %v1272 = vrcp.pop %v1270
    %v1273 = vmul.f32 1.0, %v1272
    %v1274 = vrcp.pop %v1271
    %v1275 = vmul.f32 1.0, %v1274
    %v1276 = vtanh.pop %v1263
    %v1277 = vmul.f32 %v1273, %v1101
    %1279 = vrot.lane.b32.xlu0 %v1276, 64
    %v1280 = vpop.permute.xlu0 %1279
    %v1282 = vmul.f32 %v1273, %v1280
    %1284 = vrot.lane.b32.xlu0 %v1282, 64
    %v1285 = vpop.permute.xlu0 %1284
    %v1287 = vadd.f32 %v1277, %v1285
    %v1288 = vtanh.pop %v1287
    %1290 = vrot.lane.b32.xlu0 %v1288, 64
    %v1291 = vpop.permute.xlu0 %1290
    %v1293 = vmul.f32 %v1275, %v1291
    %v1295 = vsel %vm364, %v1293, 0
    %1297 = vmatprep.subr.mxu0 0.0
    %1298 = vmatpush1.msra.mxu0 %v244
    %1299 = vmatprep.subr.mxu0 0.0
    %1300 = vmatpush1.msra.mxu0 %v245
    %1301 = vmatprep.subr.mxu0 0.0
    %1302 = vmatpush1.msra.mxu0 %v246
    %1303 = vmatprep.subr.mxu0 0.0
    %1304 = vmatpush1.msra.mxu0 %v247
    %1305 = vmatprep.subr.mxu0 0.0
    %1306 = vmatpush1.msra.mxu0 %v248
    %1307 = vmatprep.subr.mxu0 0.0
    %1308 = vmatpush1.msra.mxu0 %v249
    %1309 = vmatprep.subr.mxu0 0.0
    %1310 = vmatpush1.msra.mxu0 %v250
    %1311 = vmatprep.subr.mxu0 0.0
    %1312 = vmatpush1.msra.mxu0 %v251
    %1313 = vmatprep.subr.mxu0 0.0
    %1314 = vmatpush1.msra.mxu0 0.0
    %1315 = vmatprep.subr.mxu0 0.0
    %1316 = vmatpush1.msra.mxu0 0.0
    %1317 = vmatprep.subr.mxu0 0.0
    %1318 = vmatpush1.msra.mxu0 0.0
    %1319 = vmatprep.subr.mxu0 0.0
    %1320 = vmatpush1.msra.mxu0 0.0
    %1321 = vmatprep.subr.mxu0 0.0
    %1322 = vmatpush1.msra.mxu0 0.0
    %1323 = vmatprep.subr.mxu0 0.0
    %1324 = vmatpush1.msra.mxu0 0.0
    %1325 = vmatprep.subr.mxu0 0.0
    %1326 = vmatpush1.msra.mxu0 0.0
    %1327 = vmatprep.subr.mxu0 0.0
    %1328 = vmatpush1.msra.mxu0 0.0
    %1329 = vmatprep.subr.mxu0 0.0
    %1330 = vmatpush1.msra.mxu0 0.0
    %1331 = vmatprep.subr.mxu0 0.0
    %1332 = vmatpush1.msra.mxu0 0.0
    %1333 = vmatprep.subr.mxu0 0.0
    %1334 = vmatpush1.msra.mxu0 0.0
    %1335 = vmatprep.subr.mxu0 0.0
    %1336 = vmatpush1.msra.mxu0 0.0
    %1337 = vmatprep.subr.mxu0 0.0
    %1338 = vmatpush1.msra.mxu0 0.0
    %1339 = vmatprep.subr.mxu0 0.0
    %1340 = vmatpush1.msra.mxu0 0.0
    %1341 = vmatprep.subr.mxu0 0.0
    %1342 = vmatpush1.msra.mxu0 0.0
    %1343 = vmatprep.subr.mxu0 0.0
    %1344 = vmatpush1.msra.mxu0 0.0
    %1345 = vmatprep.subr.mxu0 0.0
    %1346 = vmatpush1.msra.mxu0 0.0
    %1347 = vmatprep.subr.mxu0 0.0
    %1348 = vmatpush1.msra.mxu0 0.0
    %1349 = vmatprep.subr.mxu0 0.0
    %1350 = vmatpush1.msra.mxu0 0.0
    %1351 = vmatprep.subr.mxu0 0.0
    %1352 = vmatpush1.msra.mxu0 0.0
    %1353 = vmatprep.subr.mxu0 0.0
    %1354 = vmatpush1.msra.mxu0 0.0
    %1355 = vmatprep.subr.mxu0 0.0
    %1356 = vmatpush1.msra.mxu0 0.0
    %1357 = vmatprep.subr.mxu0 0.0
    %1358 = vmatpush1.msra.mxu0 0.0
    %1359 = vmatprep.subr.mxu0 0.0
    %1360 = vmatpush1.msra.mxu0 0.0
    %1361 = vmatprep.mubr.f32.mxu0 0.0
    %1362 = vmatmul.mubr.f32.gmra.mrb[0].mxu0 %v1295
    %v1363 = vpop.f32.mrb[0].mxu0
    %v1364 = vadd.f32 0.0, %v1363
    %v1365 = vpop.f32.mrb[0].mxu0
    %1366 = vdwg.mxu0
    %s1367 = scalar_lea.vmem [#allocation2], 40
    %1368 = vst.msk [vmem:[%s1367] sm:$0xff] %vm257, %v1364
    %s1369 = smul.u32 6, 2
    %s1370 = smul.addr %s1369, 8
    %s1371 = scalar_lea.vmem [#allocation4], %s1370
    %v1372 = vld [vmem:[%s1371] sm:$0xff]
    %v1373 = vld [vmem:[%s1371 + $0x8] sm:$0xff]
    %v1375 = vsel %vm257, %v1364, 0
    %1377 = vmatprep.subr.mxu0 %v237
    %1378 = vmatpush1.msra.mxu0 %v236
    %1379 = vmatprep.subr.mxu0 %v239
    %1380 = vmatpush1.msra.mxu0 %v238
    %1381 = vmatprep.subr.mxu0 %v241
    %1382 = vmatpush1.msra.mxu0 %v240
    %1383 = vmatprep.subr.mxu0 %v243
    %1384 = vmatpush1.msra.mxu0 %v242
    %1385 = vmatprep.subr.mxu0 0.0
    %1386 = vmatpush1.msra.mxu0 0.0
    %1387 = vmatprep.subr.mxu0 0.0
    %1388 = vmatpush1.msra.mxu0 0.0
    %1389 = vmatprep.subr.mxu0 0.0
    %1390 = vmatpush1.msra.mxu0 0.0
    %1391 = vmatprep.subr.mxu0 0.0
    %1392 = vmatpush1.msra.mxu0 0.0
    %1393 = vmatprep.subr.mxu0 0.0
    %1394 = vmatpush1.msra.mxu0 0.0
    %1395 = vmatprep.subr.mxu0 0.0
    %1396 = vmatpush1.msra.mxu0 0.0
    %1397 = vmatprep.subr.mxu0 0.0
    %1398 = vmatpush1.msra.mxu0 0.0
    %1399 = vmatprep.subr.mxu0 0.0
    %1400 = vmatpush1.msra.mxu0 0.0
    %1401 = vmatprep.subr.mxu0 0.0
    %1402 = vmatpush1.msra.mxu0 0.0
    %1403 = vmatprep.subr.mxu0 0.0
    %1404 = vmatpush1.msra.mxu0 0.0
    %1405 = vmatprep.subr.mxu0 0.0
    %1406 = vmatpush1.msra.mxu0 0.0
    %1407 = vmatprep.subr.mxu0 0.0
    %1408 = vmatpush1.msra.mxu0 0.0
    %1409 = vmatprep.subr.mxu0 0.0
    %1410 = vmatpush1.msra.mxu0 0.0
    %1411 = vmatprep.subr.mxu0 0.0
    %1412 = vmatpush1.msra.mxu0 0.0
    %1413 = vmatprep.subr.mxu0 0.0
    %1414 = vmatpush1.msra.mxu0 0.0
    %1415 = vmatprep.subr.mxu0 0.0
    %1416 = vmatpush1.msra.mxu0 0.0
    %1417 = vmatprep.subr.mxu0 0.0
    %1418 = vmatpush1.msra.mxu0 0.0
    %1419 = vmatprep.subr.mxu0 0.0
    %1420 = vmatpush1.msra.mxu0 0.0
    %1421 = vmatprep.subr.mxu0 0.0
    %1422 = vmatpush1.msra.mxu0 0.0
    %1423 = vmatprep.subr.mxu0 0.0
    %1424 = vmatpush1.msra.mxu0 0.0
    %1425 = vmatprep.subr.mxu0 0.0
    %1426 = vmatpush1.msra.mxu0 0.0
    %1427 = vmatprep.subr.mxu0 0.0
    %1428 = vmatpush1.msra.mxu0 0.0
    %1429 = vmatprep.subr.mxu0 0.0
    %1430 = vmatpush1.msra.mxu0 0.0
    %1431 = vmatprep.subr.mxu0 0.0
    %1432 = vmatpush1.msra.mxu0 0.0
    %1433 = vmatprep.subr.mxu0 0.0
    %1434 = vmatpush1.msra.mxu0 0.0
    %1435 = vmatprep.subr.mxu0 0.0
    %1436 = vmatpush1.msra.mxu0 0.0
    %1437 = vmatprep.subr.mxu0 0.0
    %1438 = vmatpush1.msra.mxu0 0.0
    %1439 = vmatprep.subr.mxu0 0.0
    %1440 = vmatpush1.msra.mxu0 0.0
    %1441 = vmatprep.mubr.f32.mxu0 0.0
    %1442 = vmatmul.mubr.f32.gmra.mrb[0].mxu0 %v1375
    %v1443 = vpop.f32.mrb[0].mxu0
    %v1444 = vadd.f32 0.0, %v1443
    %v1445 = vpop.f32.mrb[0].mxu0
    %v1446 = vadd.f32 0.0, %v1445
    %1447 = vdwg.mxu0
    %v1448 = vadd.f32 %v1372, %v1444
    %v1449 = vadd.f32 %v1373, %v1446
    %v1450 = vxor.u32 %v1448, 2147483648
    %v1451 = vxor.u32 %v1449, 2147483648
    %v1452 = vmul.f32 %v1450, 1.442695
    %v1453 = vpow.pop %v1452
    %v1454 = vmul.f32 %v1451, 1.442695
    %v1455 = vpow.pop %v1454
    %v1456 = vadd.f32 %v1453, 1.0
    %v1457 = vadd.f32 %v1455, 1.0
    %v1458 = vrcp.pop %v1456
    %v1459 = vmul.f32 1.0, %v1458
    %v1460 = vrcp.pop %v1457
    %v1461 = vmul.f32 1.0, %v1460
    %v1462 = vtanh.pop %v1449
    %v1463 = vmul.f32 %v1459, %v1287
    %1465 = vrot.lane.b32.xlu0 %v1462, 64
    %v1466 = vpop.permute.xlu0 %1465
    %v1468 = vmul.f32 %v1459, %v1466
    %1470 = vrot.lane.b32.xlu0 %v1468, 64
    %v1471 = vpop.permute.xlu0 %1470
    %v1473 = vadd.f32 %v1463, %v1471
    %v1474 = vtanh.pop %v1473
    %1476 = vrot.lane.b32.xlu0 %v1474, 64
    %v1477 = vpop.permute.xlu0 %1476
    %v1479 = vmul.f32 %v1461, %v1477
    %v1481 = vsel %vm364, %v1479, 0
    %1483 = vmatprep.subr.mxu0 0.0
    %1484 = vmatpush1.msra.mxu0 %v244
    %1485 = vmatprep.subr.mxu0 0.0
    %1486 = vmatpush1.msra.mxu0 %v245
    %1487 = vmatprep.subr.mxu0 0.0
    %1488 = vmatpush1.msra.mxu0 %v246
    %1489 = vmatprep.subr.mxu0 0.0
    %1490 = vmatpush1.msra.mxu0 %v247
    %1491 = vmatprep.subr.mxu0 0.0
    %1492 = vmatpush1.msra.mxu0 %v248
    %1493 = vmatprep.subr.mxu0 0.0
    %1494 = vmatpush1.msra.mxu0 %v249
    %1495 = vmatprep.subr.mxu0 0.0
    %1496 = vmatpush1.msra.mxu0 %v250
    %1497 = vmatprep.subr.mxu0 0.0
    %1498 = vmatpush1.msra.mxu0 %v251
    %1499 = vmatprep.subr.mxu0 0.0
    %1500 = vmatpush1.msra.mxu0 0.0
    %1501 = vmatprep.subr.mxu0 0.0
    %1502 = vmatpush1.msra.mxu0 0.0
    %1503 = vmatprep.subr.mxu0 0.0
    %1504 = vmatpush1.msra.mxu0 0.0
    %1505 = vmatprep.subr.mxu0 0.0
    %1506 = vmatpush1.msra.mxu0 0.0
    %1507 = vmatprep.subr.mxu0 0.0
    %1508 = vmatpush1.msra.mxu0 0.0
    %1509 = vmatprep.subr.mxu0 0.0
    %1510 = vmatpush1.msra.mxu0 0.0
    %1511 = vmatprep.subr.mxu0 0.0
    %1512 = vmatpush1.msra.mxu0 0.0
    %1513 = vmatprep.subr.mxu0 0.0
    %1514 = vmatpush1.msra.mxu0 0.0
    %1515 = vmatprep.subr.mxu0 0.0
    %1516 = vmatpush1.msra.mxu0 0.0
    %1517 = vmatprep.subr.mxu0 0.0
    %1518 = vmatpush1.msra.mxu0 0.0
    %1519 = vmatprep.subr.mxu0 0.0
    %1520 = vmatpush1.msra.mxu0 0.0
    %1521 = vmatprep.subr.mxu0 0.0
    %1522 = vmatpush1.msra.mxu0 0.0
    %1523 = vmatprep.subr.mxu0 0.0
    %1524 = vmatpush1.msra.mxu0 0.0
    %1525 = vmatprep.subr.mxu0 0.0
    %1526 = vmatpush1.msra.mxu0 0.0
    %1527 = vmatprep.subr.mxu0 0.0
    %1528 = vmatpush1.msra.mxu0 0.0
    %1529 = vmatprep.subr.mxu0 0.0
    %1530 = vmatpush1.msra.mxu0 0.0
    %1531 = vmatprep.subr.mxu0 0.0
    %1532 = vmatpush1.msra.mxu0 0.0
    %1533 = vmatprep.subr.mxu0 0.0
    %1534 = vmatpush1.msra.mxu0 0.0
    %1535 = vmatprep.subr.mxu0 0.0
    %1536 = vmatpush1.msra.mxu0 0.0
    %1537 = vmatprep.subr.mxu0 0.0
    %1538 = vmatpush1.msra.mxu0 0.0
    %1539 = vmatprep.subr.mxu0 0.0
    %1540 = vmatpush1.msra.mxu0 0.0
    %1541 = vmatprep.subr.mxu0 0.0
    %1542 = vmatpush1.msra.mxu0 0.0
    %1543 = vmatprep.subr.mxu0 0.0
    %1544 = vmatpush1.msra.mxu0 0.0
    %1545 = vmatprep.subr.mxu0 0.0
    %1546 = vmatpush1.msra.mxu0 0.0
    %1547 = vmatprep.mubr.f32.mxu0 0.0
    %1548 = vmatmul.mubr.f32.gmra.mrb[0].mxu0 %v1481
    %v1549 = vpop.f32.mrb[0].mxu0
    %v1550 = vadd.f32 0.0, %v1549
    %v1551 = vpop.f32.mrb[0].mxu0
    %1552 = vdwg.mxu0
    %s1553 = scalar_lea.vmem [#allocation2], 48
    %1554 = vst.msk [vmem:[%s1553] sm:$0xff] %vm257, %v1550
    %s1555 = smul.u32 7, 2
    %s1556 = smul.addr %s1555, 8
    %s1557 = scalar_lea.vmem [#allocation4], %s1556
    %v1558 = vld [vmem:[%s1557] sm:$0xff]
    %v1559 = vld [vmem:[%s1557 + $0x8] sm:$0xff]
    %v1561 = vsel %vm257, %v1550, 0
    %1563 = vmatprep.subr.mxu0 %v237
    %1564 = vmatpush1.msra.mxu0 %v236
    %1565 = vmatprep.subr.mxu0 %v239
    %1566 = vmatpush1.msra.mxu0 %v238
    %1567 = vmatprep.subr.mxu0 %v241
    %1568 = vmatpush1.msra.mxu0 %v240
    %1569 = vmatprep.subr.mxu0 %v243
    %1570 = vmatpush1.msra.mxu0 %v242
    %1571 = vmatprep.subr.mxu0 0.0
    %1572 = vmatpush1.msra.mxu0 0.0
    %1573 = vmatprep.subr.mxu0 0.0
    %1574 = vmatpush1.msra.mxu0 0.0
    %1575 = vmatprep.subr.mxu0 0.0
    %1576 = vmatpush1.msra.mxu0 0.0
    %1577 = vmatprep.subr.mxu0 0.0
    %1578 = vmatpush1.msra.mxu0 0.0
    %1579 = vmatprep.subr.mxu0 0.0
    %1580 = vmatpush1.msra.mxu0 0.0
    %1581 = vmatprep.subr.mxu0 0.0
    %1582 = vmatpush1.msra.mxu0 0.0
    %1583 = vmatprep.subr.mxu0 0.0
    %1584 = vmatpush1.msra.mxu0 0.0
    %1585 = vmatprep.subr.mxu0 0.0
    %1586 = vmatpush1.msra.mxu0 0.0
    %1587 = vmatprep.subr.mxu0 0.0
    %1588 = vmatpush1.msra.mxu0 0.0
    %1589 = vmatprep.subr.mxu0 0.0
    %1590 = vmatpush1.msra.mxu0 0.0
    %1591 = vmatprep.subr.mxu0 0.0
    %1592 = vmatpush1.msra.mxu0 0.0
    %1593 = vmatprep.subr.mxu0 0.0
    %1594 = vmatpush1.msra.mxu0 0.0
    %1595 = vmatprep.subr.mxu0 0.0
    %1596 = vmatpush1.msra.mxu0 0.0
    %1597 = vmatprep.subr.mxu0 0.0
    %1598 = vmatpush1.msra.mxu0 0.0
    %1599 = vmatprep.subr.mxu0 0.0
    %1600 = vmatpush1.msra.mxu0 0.0
    %1601 = vmatprep.subr.mxu0 0.0
    %1602 = vmatpush1.msra.mxu0 0.0
    %1603 = vmatprep.subr.mxu0 0.0
    %1604 = vmatpush1.msra.mxu0 0.0
    %1605 = vmatprep.subr.mxu0 0.0
    %1606 = vmatpush1.msra.mxu0 0.0
    %1607 = vmatprep.subr.mxu0 0.0
    %1608 = vmatpush1.msra.mxu0 0.0
    %1609 = vmatprep.subr.mxu0 0.0
    %1610 = vmatpush1.msra.mxu0 0.0
    %1611 = vmatprep.subr.mxu0 0.0
    %1612 = vmatpush1.msra.mxu0 0.0
    %1613 = vmatprep.subr.mxu0 0.0
    %1614 = vmatpush1.msra.mxu0 0.0
    %1615 = vmatprep.subr.mxu0 0.0
    %1616 = vmatpush1.msra.mxu0 0.0
    %1617 = vmatprep.subr.mxu0 0.0
    %1618 = vmatpush1.msra.mxu0 0.0
    %1619 = vmatprep.subr.mxu0 0.0
    %1620 = vmatpush1.msra.mxu0 0.0
    %1621 = vmatprep.subr.mxu0 0.0
    %1622 = vmatpush1.msra.mxu0 0.0
    %1623 = vmatprep.subr.mxu0 0.0
    %1624 = vmatpush1.msra.mxu0 0.0
    %1625 = vmatprep.subr.mxu0 0.0
    %1626 = vmatpush1.msra.mxu0 0.0
    %1627 = vmatprep.mubr.f32.mxu0 0.0
    %1628 = vmatmul.mubr.f32.gmra.mrb[0].mxu0 %v1561
    %v1629 = vpop.f32.mrb[0].mxu0
    %v1630 = vadd.f32 0.0, %v1629
    %v1631 = vpop.f32.mrb[0].mxu0
    %v1632 = vadd.f32 0.0, %v1631
    %1633 = vdwg.mxu0
    %v1634 = vadd.f32 %v1558, %v1630
    %v1635 = vadd.f32 %v1559, %v1632
    %v1636 = vxor.u32 %v1634, 2147483648
    %v1637 = vxor.u32 %v1635, 2147483648
    %v1638 = vmul.f32 %v1636, 1.442695
    %v1639 = vpow.pop %v1638
    %v1640 = vmul.f32 %v1637, 1.442695
    %v1641 = vpow.pop %v1640
    %v1642 = vadd.f32 %v1639, 1.0
    %v1643 = vadd.f32 %v1641, 1.0
    %v1644 = vrcp.pop %v1642
    %v1645 = vmul.f32 1.0, %v1644
    %v1646 = vrcp.pop %v1643
    %v1647 = vmul.f32 1.0, %v1646
    %v1648 = vtanh.pop %v1635
    %v1649 = vmul.f32 %v1645, %v1473
    %1651 = vrot.lane.b32.xlu0 %v1648, 64
    %v1652 = vpop.permute.xlu0 %1651
    %v1654 = vmul.f32 %v1645, %v1652
    %1656 = vrot.lane.b32.xlu0 %v1654, 64
    %v1657 = vpop.permute.xlu0 %1656
    %v1659 = vadd.f32 %v1649, %v1657
    %v1660 = vtanh.pop %v1659
    %1662 = vrot.lane.b32.xlu0 %v1660, 64
    %v1663 = vpop.permute.xlu0 %1662
    %v1665 = vmul.f32 %v1647, %v1663
    %v1667 = vsel %vm364, %v1665, 0
    %1669 = vmatprep.subr.mxu0 0.0
    %1670 = vmatpush1.msra.mxu0 %v244
    %1671 = vmatprep.subr.mxu0 0.0
    %1672 = vmatpush1.msra.mxu0 %v245
    %1673 = vmatprep.subr.mxu0 0.0
    %1674 = vmatpush1.msra.mxu0 %v246
    %1675 = vmatprep.subr.mxu0 0.0
    %1676 = vmatpush1.msra.mxu0 %v247
    %1677 = vmatprep.subr.mxu0 0.0
    %1678 = vmatpush1.msra.mxu0 %v248
    %1679 = vmatprep.subr.mxu0 0.0
    %1680 = vmatpush1.msra.mxu0 %v249
    %1681 = vmatprep.subr.mxu0 0.0
    %1682 = vmatpush1.msra.mxu0 %v250
    %1683 = vmatprep.subr.mxu0 0.0
    %1684 = vmatpush1.msra.mxu0 %v251
    %1685 = vmatprep.subr.mxu0 0.0
    %1686 = vmatpush1.msra.mxu0 0.0
    %1687 = vmatprep.subr.mxu0 0.0
    %1688 = vmatpush1.msra.mxu0 0.0
    %1689 = vmatprep.subr.mxu0 0.0
    %1690 = vmatpush1.msra.mxu0 0.0
    %1691 = vmatprep.subr.mxu0 0.0
    %1692 = vmatpush1.msra.mxu0 0.0
    %1693 = vmatprep.subr.mxu0 0.0
    %1694 = vmatpush1.msra.mxu0 0.0
    %1695 = vmatprep.subr.mxu0 0.0
    %1696 = vmatpush1.msra.mxu0 0.0
    %1697 = vmatprep.subr.mxu0 0.0
    %1698 = vmatpush1.msra.mxu0 0.0
    %1699 = vmatprep.subr.mxu0 0.0
    %1700 = vmatpush1.msra.mxu0 0.0
    %1701 = vmatprep.subr.mxu0 0.0
    %1702 = vmatpush1.msra.mxu0 0.0
    %1703 = vmatprep.subr.mxu0 0.0
    %1704 = vmatpush1.msra.mxu0 0.0
    %1705 = vmatprep.subr.mxu0 0.0
    %1706 = vmatpush1.msra.mxu0 0.0
    %1707 = vmatprep.subr.mxu0 0.0
    %1708 = vmatpush1.msra.mxu0 0.0
    %1709 = vmatprep.subr.mxu0 0.0
    %1710 = vmatpush1.msra.mxu0 0.0
    %1711 = vmatprep.subr.mxu0 0.0
    %1712 = vmatpush1.msra.mxu0 0.0
    %1713 = vmatprep.subr.mxu0 0.0
    %1714 = vmatpush1.msra.mxu0 0.0
    %1715 = vmatprep.subr.mxu0 0.0
    %1716 = vmatpush1.msra.mxu0 0.0
    %1717 = vmatprep.subr.mxu0 0.0
    %1718 = vmatpush1.msra.mxu0 0.0
    %1719 = vmatprep.subr.mxu0 0.0
    %1720 = vmatpush1.msra.mxu0 0.0
    %1721 = vmatprep.subr.mxu0 0.0
    %1722 = vmatpush1.msra.mxu0 0.0
    %1723 = vmatprep.subr.mxu0 0.0
    %1724 = vmatpush1.msra.mxu0 0.0
    %1725 = vmatprep.subr.mxu0 0.0
    %1726 = vmatpush1.msra.mxu0 0.0
    %1727 = vmatprep.subr.mxu0 0.0
    %1728 = vmatpush1.msra.mxu0 0.0
    %1729 = vmatprep.subr.mxu0 0.0
    %1730 = vmatpush1.msra.mxu0 0.0
    %1731 = vmatprep.subr.mxu0 0.0
    %1732 = vmatpush1.msra.mxu0 0.0
    %1733 = vmatprep.mubr.f32.mxu0 0.0
    %1734 = vmatmul.mubr.f32.gmra.mrb[0].mxu0 %v1667
    %v1735 = vpop.f32.mrb[0].mxu0
    %v1736 = vadd.f32 0.0, %v1735
    %v1737 = vpop.f32.mrb[0].mxu0
    %1738 = vdwg.mxu0
    %s1739 = scalar_lea.vmem [#allocation2], 56
    %1740 = vst.msk [vmem:[%s1739] sm:$0xff] %vm257, %v1736
    %v1741 = vld [vmem:[#allocation2] sm:$0xff]
    %v1742 = vld [vmem:[#allocation2 + $0x8] sm:$0xff]
    %v1743 = vld [vmem:[#allocation2 + $0x10] sm:$0xff]
    %v1744 = vld [vmem:[#allocation2 + $0x18] sm:$0xff]
    %v1745 = vld [vmem:[#allocation2 + $0x20] sm:$0xff]
    %v1746 = vld [vmem:[#allocation2 + $0x28] sm:$0xff]
    %v1747 = vld [vmem:[#allocation2 + $0x30] sm:$0xff]
    %v1748 = vld [vmem:[#allocation2 + $0x38] sm:$0xff]
    %v1749 = vld [vmem:[%s5] sm:$0xff]
    %v1750 = vld [vmem:[%s5 + $0x8] sm:$0xff]
    %v1751 = vld [vmem:[%s5 + $0x10] sm:$0xff]
    %v1752 = vld [vmem:[%s5 + $0x18] sm:$0xff]
    %v1753 = vld [vmem:[%s5 + $0x20] sm:$0xff]
    %v1754 = vld [vmem:[%s5 + $0x28] sm:$0xff]
    %v1755 = vld [vmem:[%s5 + $0x30] sm:$0xff]
    %v1756 = vld [vmem:[%s5 + $0x38] sm:$0xff]
    %v1757 = vld [vmem:[%s7] sm:$0x3]
    %v1759 = vlaneseq
    %v1760 = vshrl.u32 %v1759, 7
    %v1761 = vsub.s32 0, %v1760
    %v1762 = vrot.slane %v1757, %v1761
    %v1763 = vlaneseq
    %v1764 = vshrl.u32 %v1763, 7
    %v1765 = vsub.s32 1, %v1764
    %v1766 = vrot.slane %v1757, %v1765
    %v1770 = vsel %vm257, %v1741, 0
    %v1773 = vsel %vm257, %v1742, 0
    %v1776 = vsel %vm257, %v1743, 0
    %v1779 = vsel %vm257, %v1744, 0
    %v1782 = vsel %vm257, %v1745, 0
    %v1785 = vsel %vm257, %v1746, 0
    %v1788 = vsel %vm257, %v1747, 0
    %v1791 = vsel %vm257, %v1748, 0
    %1793 = vmatprep.subr.mxu0 %v1750
    %1794 = vmatpush1.msra.mxu0 %v1749
    %1795 = vmatprep.subr.mxu0 %v1752
    %1796 = vmatpush1.msra.mxu0 %v1751
    %1797 = vmatprep.subr.mxu0 %v1754
    %1798 = vmatpush1.msra.mxu0 %v1753
    %1799 = vmatprep.subr.mxu0 %v1756
    %1800 = vmatpush1.msra.mxu0 %v1755
    %1801 = vmatprep.subr.mxu0 0.0
    %1802 = vmatpush1.msra.mxu0 0.0
    %1803 = vmatprep.subr.mxu0 0.0
    %1804 = vmatpush1.msra.mxu0 0.0
    %1805 = vmatprep.subr.mxu0 0.0
    %1806 = vmatpush1.msra.mxu0 0.0
    %1807 = vmatprep.subr.mxu0 0.0
    %1808 = vmatpush1.msra.mxu0 0.0
    %1809 = vmatprep.subr.mxu0 0.0
    %1810 = vmatpush1.msra.mxu0 0.0
    %1811 = vmatprep.subr.mxu0 0.0
    %1812 = vmatpush1.msra.mxu0 0.0
    %1813 = vmatprep.subr.mxu0 0.0
    %1814 = vmatpush1.msra.mxu0 0.0
    %1815 = vmatprep.subr.mxu0 0.0
    %1816 = vmatpush1.msra.mxu0 0.0
    %1817 = vmatprep.subr.mxu0 0.0
    %1818 = vmatpush1.msra.mxu0 0.0
    %1819 = vmatprep.subr.mxu0 0.0
    %1820 = vmatpush1.msra.mxu0 0.0
    %1821 = vmatprep.subr.mxu0 0.0
    %1822 = vmatpush1.msra.mxu0 0.0
    %1823 = vmatprep.subr.mxu0 0.0
    %1824 = vmatpush1.msra.mxu0 0.0
    %1825 = vmatprep.subr.mxu0 0.0
    %1826 = vmatpush1.msra.mxu0 0.0
    %1827 = vmatprep.subr.mxu0 0.0
    %1828 = vmatpush1.msra.mxu0 0.0
    %1829 = vmatprep.subr.mxu0 0.0
    %1830 = vmatpush1.msra.mxu0 0.0
    %1831 = vmatprep.subr.mxu0 0.0
    %1832 = vmatpush1.msra.mxu0 0.0
    %1833 = vmatprep.subr.mxu0 0.0
    %1834 = vmatpush1.msra.mxu0 0.0
    %1835 = vmatprep.subr.mxu0 0.0
    %1836 = vmatpush1.msra.mxu0 0.0
    %1837 = vmatprep.subr.mxu0 0.0
    %1838 = vmatpush1.msra.mxu0 0.0
    %1839 = vmatprep.subr.mxu0 0.0
    %1840 = vmatpush1.msra.mxu0 0.0
    %1841 = vmatprep.subr.mxu0 0.0
    %1842 = vmatpush1.msra.mxu0 0.0
    %1843 = vmatprep.subr.mxu0 0.0
    %1844 = vmatpush1.msra.mxu0 0.0
    %1845 = vmatprep.subr.mxu0 0.0
    %1846 = vmatpush1.msra.mxu0 0.0
    %1847 = vmatprep.subr.mxu0 0.0
    %1848 = vmatpush1.msra.mxu0 0.0
    %1849 = vmatprep.subr.mxu0 0.0
    %1850 = vmatpush1.msra.mxu0 0.0
    %1851 = vmatprep.subr.mxu0 0.0
    %1852 = vmatpush1.msra.mxu0 0.0
    %1853 = vmatprep.subr.mxu0 0.0
    %1854 = vmatpush1.msra.mxu0 0.0
    %1855 = vmatprep.subr.mxu0 0.0
    %1856 = vmatpush1.msra.mxu0 0.0
    %1857 = vmatprep.mubr.f32.mxu0 0.0
    %1858 = vmatmul.mubr.f32.gmra.mrb[0].mxu0 %v1770
    %v1859 = vpop.f32.mrb[0].mxu0
    %v1860 = vadd.f32 %v1762, %v1859
    %v1861 = vpop.f32.mrb[0].mxu0
    %v1862 = vadd.f32 %v1766, %v1861
    %1863 = vmatprep.mubr.f32.mxu0 0.0
    %1864 = vmatmul.mubr.f32.gmra.mrb[0].mxu0 %v1773
    %v1865 = vpop.f32.mrb[0].mxu0
    %v1866 = vadd.f32 %v1762, %v1865
    %v1867 = vpop.f32.mrb[0].mxu0
    %v1868 = vadd.f32 %v1766, %v1867
    %1869 = vmatprep.mubr.f32.mxu0 0.0
    %1870 = vmatmul.mubr.f32.gmra.mrb[0].mxu0 %v1776
    %v1871 = vpop.f32.mrb[0].mxu0
    %v1872 = vadd.f32 %v1762, %v1871
    %v1873 = vpop.f32.mrb[0].mxu0
    %v1874 = vadd.f32 %v1766, %v1873
    %1875 = vmatprep.mubr.f32.mxu0 0.0
    %1876 = vmatmul.mubr.f32.gmra.mrb[0].mxu0 %v1779
    %v1877 = vpop.f32.mrb[0].mxu0
    %v1878 = vadd.f32 %v1762, %v1877
    %v1879 = vpop.f32.mrb[0].mxu0
    %v1880 = vadd.f32 %v1766, %v1879
    %1881 = vmatprep.mubr.f32.mxu0 0.0
    %1882 = vmatmul.mubr.f32.gmra.mrb[0].mxu0 %v1782
    %v1883 = vpop.f32.mrb[0].mxu0
    %v1884 = vadd.f32 %v1762, %v1883
    %v1885 = vpop.f32.mrb[0].mxu0
    %v1886 = vadd.f32 %v1766, %v1885
    %1887 = vmatprep.mubr.f32.mxu0 0.0
    %1888 = vmatmul.mubr.f32.gmra.mrb[0].mxu0 %v1785
    %v1889 = vpop.f32.mrb[0].mxu0
    %v1890 = vadd.f32 %v1762, %v1889
    %v1891 = vpop.f32.mrb[0].mxu0
    %v1892 = vadd.f32 %v1766, %v1891
    %1893 = vmatprep.mubr.f32.mxu0 0.0
    %1894 = vmatmul.mubr.f32.gmra.mrb[0].mxu0 %v1788
    %v1895 = vpop.f32.mrb[0].mxu0
    %v1896 = vadd.f32 %v1762, %v1895
    %v1897 = vpop.f32.mrb[0].mxu0
    %v1898 = vadd.f32 %v1766, %v1897
    %1899 = vmatprep.mubr.f32.mxu0 0.0
    %1900 = vmatmul.mubr.f32.gmra.mrb[0].mxu0 %v1791
    %v1901 = vpop.f32.mrb[0].mxu0
    %v1902 = vadd.f32 %v1762, %v1901
    %v1903 = vpop.f32.mrb[0].mxu0
    %v1904 = vadd.f32 %v1766, %v1903
    %1905 = vdwg.mxu0
    %1906 = vst [vmem:[#allocation4] sm:$0xff] %v1860
    %1907 = vst [vmem:[#allocation4 + $0x8] sm:$0xff] %v1862
    %1908 = vst [vmem:[#allocation4 + $0x10] sm:$0xff] %v1866
    %1909 = vst [vmem:[#allocation4 + $0x18] sm:$0xff] %v1868
    %1910 = vst [vmem:[#allocation4 + $0x20] sm:$0xff] %v1872
    %1911 = vst [vmem:[#allocation4 + $0x28] sm:$0xff] %v1874
    %1912 = vst [vmem:[#allocation4 + $0x30] sm:$0xff] %v1878
    %1913 = vst [vmem:[#allocation4 + $0x38] sm:$0xff] %v1880
    %1914 = vst [vmem:[#allocation4 + $0x40] sm:$0xff] %v1884
    %1915 = vst [vmem:[#allocation4 + $0x48] sm:$0xff] %v1886
    %1916 = vst [vmem:[#allocation4 + $0x50] sm:$0xff] %v1890
    %1917 = vst [vmem:[#allocation4 + $0x58] sm:$0xff] %v1892
    %1918 = vst [vmem:[#allocation4 + $0x60] sm:$0xff] %v1896
    %1919 = vst [vmem:[#allocation4 + $0x68] sm:$0xff] %v1898
    %1920 = vst [vmem:[#allocation4 + $0x70] sm:$0xff] %v1902
    %1921 = vst [vmem:[#allocation4 + $0x78] sm:$0xff] %v1904
    %v1922 = vld [vmem:[%s6] sm:$0xff]
    %v1923 = vld [vmem:[%s6 + $0x8] sm:$0xff]
    %v1924 = vld [vmem:[%s6 + $0x10] sm:$0xff]
    %v1925 = vld [vmem:[%s6 + $0x18] sm:$0xff]
    %v1926 = vld [vmem:[%s6 + $0x20] sm:$0xff]
    %v1927 = vld [vmem:[%s6 + $0x28] sm:$0xff]
    %v1928 = vld [vmem:[%s6 + $0x30] sm:$0xff]
    %v1929 = vld [vmem:[%s6 + $0x38] sm:$0xff]
    %1930 = vmatprep.subr.mxu0 %v1923
    %1931 = vmatpush1.msra.mxu0 %v1922
    %1932 = vmatprep.subr.mxu0 %v1925
    %1933 = vmatpush1.msra.mxu0 %v1924
    %1934 = vmatprep.subr.mxu0 %v1927
    %1935 = vmatpush1.msra.mxu0 %v1926
    %1936 = vmatprep.subr.mxu0 %v1929
    %1937 = vmatpush1.msra.mxu0 %v1928
    %1938 = vmatprep.subr.mxu0 0.0
    %1939 = vmatpush1.msra.mxu0 0.0
    %1940 = vmatprep.subr.mxu0 0.0
    %1941 = vmatpush1.msra.mxu0 0.0
    %1942 = vmatprep.subr.mxu0 0.0
    %1943 = vmatpush1.msra.mxu0 0.0
    %1944 = vmatprep.subr.mxu0 0.0
    %1945 = vmatpush1.msra.mxu0 0.0
    %1946 = vmatprep.subr.mxu0 0.0
    %1947 = vmatpush1.msra.mxu0 0.0
    %1948 = vmatprep.subr.mxu0 0.0
    %1949 = vmatpush1.msra.mxu0 0.0
    %1950 = vmatprep.subr.mxu0 0.0
    %1951 = vmatpush1.msra.mxu0 0.0
    %1952 = vmatprep.subr.mxu0 0.0
    %1953 = vmatpush1.msra.mxu0 0.0
    %1954 = vmatprep.subr.mxu0 0.0
    %1955 = vmatpush1.msra.mxu0 0.0
    %1956 = vmatprep.subr.mxu0 0.0
    %1957 = vmatpush1.msra.mxu0 0.0
    %1958 = vmatprep.subr.mxu0 0.0
    %1959 = vmatpush1.msra.mxu0 0.0
    %1960 = vmatprep.subr.mxu0 0.0
    %1961 = vmatpush1.msra.mxu0 0.0
    %1962 = vmatprep.subr.mxu0 0.0
    %1963 = vmatpush1.msra.mxu0 0.0
    %1964 = vmatprep.subr.mxu0 0.0
    %1965 = vmatpush1.msra.mxu0 0.0
    %1966 = vmatprep.subr.mxu0 0.0
    %1967 = vmatpush1.msra.mxu0 0.0
    %1968 = vmatprep.subr.mxu0 0.0
    %1969 = vmatpush1.msra.mxu0 0.0
    %1970 = vmatprep.subr.mxu0 0.0
    %1971 = vmatpush1.msra.mxu0 0.0
    %1972 = vmatprep.subr.mxu0 0.0
    %1973 = vmatpush1.msra.mxu0 0.0
    %1974 = vmatprep.subr.mxu0 0.0
    %1975 = vmatpush1.msra.mxu0 0.0
    %1976 = vmatprep.subr.mxu0 0.0
    %1977 = vmatpush1.msra.mxu0 0.0
    %1978 = vmatprep.subr.mxu0 0.0
    %1979 = vmatpush1.msra.mxu0 0.0
    %1980 = vmatprep.subr.mxu0 0.0
    %1981 = vmatpush1.msra.mxu0 0.0
    %1982 = vmatprep.subr.mxu0 0.0
    %1983 = vmatpush1.msra.mxu0 0.0
    %1984 = vmatprep.subr.mxu0 0.0
    %1985 = vmatpush1.msra.mxu0 0.0
    %1986 = vmatprep.subr.mxu0 0.0
    %1987 = vmatpush1.msra.mxu0 0.0
    %1988 = vmatprep.subr.mxu0 0.0
    %1989 = vmatpush1.msra.mxu0 0.0
    %1990 = vmatprep.subr.mxu0 0.0
    %1991 = vmatpush1.msra.mxu0 0.0
    %1992 = vmatprep.subr.mxu0 0.0
    %1993 = vmatpush1.msra.mxu0 0.0
    %1994 = vmatprep.mubr.f32.mxu0 0.0
    %1995 = vmatmul.mubr.f32.gmra.mrb[0].mxu0 %v1770
    %v1996 = vpop.f32.mrb[0].mxu0
    %v1997 = vadd.f32 0.0, %v1996
    %v1998 = vpop.f32.mrb[0].mxu0
    %v1999 = vadd.f32 0.0, %v1998
    %2000 = vmatprep.mubr.f32.mxu0 0.0
    %2001 = vmatmul.mubr.f32.gmra.mrb[0].mxu0 %v1773
    %v2002 = vpop.f32.mrb[0].mxu0
    %v2003 = vadd.f32 0.0, %v2002
    %v2004 = vpop.f32.mrb[0].mxu0
    %v2005 = vadd.f32 0.0, %v2004
    %2006 = vmatprep.mubr.f32.mxu0 0.0
    %2007 = vmatmul.mubr.f32.gmra.mrb[0].mxu0 %v1776
    %v2008 = vpop.f32.mrb[0].mxu0
    %v2009 = vadd.f32 0.0, %v2008
    %v2010 = vpop.f32.mrb[0].mxu0
    %v2011 = vadd.f32 0.0, %v2010
    %2012 = vmatprep.mubr.f32.mxu0 0.0
    %2013 = vmatmul.mubr.f32.gmra.mrb[0].mxu0 %v1779
    %v2014 = vpop.f32.mrb[0].mxu0
    %v2015 = vadd.f32 0.0, %v2014
    %v2016 = vpop.f32.mrb[0].mxu0
    %v2017 = vadd.f32 0.0, %v2016
    %2018 = vmatprep.mubr.f32.mxu0 0.0
    %2019 = vmatmul.mubr.f32.gmra.mrb[0].mxu0 %v1782
    %v2020 = vpop.f32.mrb[0].mxu0
    %v2021 = vadd.f32 0.0, %v2020
    %v2022 = vpop.f32.mrb[0].mxu0
    %v2023 = vadd.f32 0.0, %v2022
    %2024 = vmatprep.mubr.f32.mxu0 0.0
    %2025 = vmatmul.mubr.f32.gmra.mrb[0].mxu0 %v1785
    %v2026 = vpop.f32.mrb[0].mxu0
    %v2027 = vadd.f32 0.0, %v2026
    %v2028 = vpop.f32.mrb[0].mxu0
    %v2029 = vadd.f32 0.0, %v2028
    %2030 = vmatprep.mubr.f32.mxu0 0.0
    %2031 = vmatmul.mubr.f32.gmra.mrb[0].mxu0 %v1788
    %v2032 = vpop.f32.mrb[0].mxu0
    %v2033 = vadd.f32 0.0, %v2032
    %v2034 = vpop.f32.mrb[0].mxu0
    %v2035 = vadd.f32 0.0, %v2034
    %2036 = vmatprep.mubr.f32.mxu0 0.0
    %2037 = vmatmul.mubr.f32.gmra.mrb[0].mxu0 %v1791
    %v2038 = vpop.f32.mrb[0].mxu0
    %v2039 = vadd.f32 0.0, %v2038
    %v2040 = vpop.f32.mrb[0].mxu0
    %v2041 = vadd.f32 0.0, %v2040
    %2042 = vdwg.mxu0
    %2043 = vst [vmem:[#allocation5] sm:$0xff] %v1997
    %2044 = vst [vmem:[#allocation5 + $0x8] sm:$0xff] %v1999
    %2045 = vst [vmem:[#allocation5 + $0x10] sm:$0xff] %v2003
    %2046 = vst [vmem:[#allocation5 + $0x18] sm:$0xff] %v2005
    %2047 = vst [vmem:[#allocation5 + $0x20] sm:$0xff] %v2009
    %2048 = vst [vmem:[#allocation5 + $0x28] sm:$0xff] %v2011
    %2049 = vst [vmem:[#allocation5 + $0x30] sm:$0xff] %v2015
    %2050 = vst [vmem:[#allocation5 + $0x38] sm:$0xff] %v2017
    %2051 = vst [vmem:[#allocation5 + $0x40] sm:$0xff] %v2021
    %2052 = vst [vmem:[#allocation5 + $0x48] sm:$0xff] %v2023
    %2053 = vst [vmem:[#allocation5 + $0x50] sm:$0xff] %v2027
    %2054 = vst [vmem:[#allocation5 + $0x58] sm:$0xff] %v2029
    %2055 = vst [vmem:[#allocation5 + $0x60] sm:$0xff] %v2033
    %2056 = vst [vmem:[#allocation5 + $0x68] sm:$0xff] %v2035
    %2057 = vst [vmem:[#allocation5 + $0x70] sm:$0xff] %v2039
    %2058 = vst [vmem:[#allocation5 + $0x78] sm:$0xff] %v2041
    %v2059 = vld [vmem:[%s8] sm:$0xff]
    %v2060 = vld [vmem:[%s8 + $0x8] sm:$0xff]
    %v2061 = vld [vmem:[%s8 + $0x10] sm:$0xff]
    %v2062 = vld [vmem:[%s8 + $0x18] sm:$0xff]
    %v2063 = vld [vmem:[%s8 + $0x20] sm:$0xff]
    %v2064 = vld [vmem:[%s8 + $0x28] sm:$0xff]
    %v2065 = vld [vmem:[%s8 + $0x30] sm:$0xff]
    %v2066 = vld [vmem:[%s8 + $0x38] sm:$0xff]
    %v2067 = vld [vmem:[%s9] sm:$0xff]
    %v2068 = vld [vmem:[%s9 + $0x8] sm:$0xff]
    %v2069 = vld [vmem:[%s9 + $0x10] sm:$0xff]
    %v2070 = vld [vmem:[%s9 + $0x18] sm:$0xff]
    %v2071 = vld [vmem:[%s9 + $0x20] sm:$0xff]
    %v2072 = vld [vmem:[%s9 + $0x28] sm:$0xff]
    %v2073 = vld [vmem:[%s9 + $0x30] sm:$0xff]
    %v2074 = vld [vmem:[%s9 + $0x38] sm:$0xff]
    %v2075 = vld [vmem:[%s254] sm:$0xff]
    %v2076 = vld [vmem:[%s254 + $0x8] sm:$0xff]
    %s2077 = smul.addr %s1555, 8
    %s2078 = scalar_lea.vmem [#allocation5], %s2077
    %v2079 = vld [vmem:[%s2078] sm:$0xff]
    %v2080 = vld [vmem:[%s2078 + $0x8] sm:$0xff]
    %v2081 = vadd.f32 %v2075, %v2079
    %v2082 = vadd.f32 %v2076, %v2080
    %2083 = vmatprep.subr.mxu0 %v2060
    %2084 = vmatpush1.msra.mxu0 %v2059
    %2085 = vmatprep.subr.mxu0 %v2062
    %2086 = vmatpush1.msra.mxu0 %v2061
    %2087 = vmatprep.subr.mxu0 %v2064
    %2088 = vmatpush1.msra.mxu0 %v2063
    %2089 = vmatprep.subr.mxu0 %v2066
    %2090 = vmatpush1.msra.mxu0 %v2065
    %2091 = vmatprep.subr.mxu0 0.0
    %2092 = vmatpush1.msra.mxu0 0.0
    %2093 = vmatprep.subr.mxu0 0.0
    %2094 = vmatpush1.msra.mxu0 0.0
    %2095 = vmatprep.subr.mxu0 0.0
    %2096 = vmatpush1.msra.mxu0 0.0
    %2097 = vmatprep.subr.mxu0 0.0
    %2098 = vmatpush1.msra.mxu0 0.0
    %2099 = vmatprep.subr.mxu0 0.0
    %2100 = vmatpush1.msra.mxu0 0.0
    %2101 = vmatprep.subr.mxu0 0.0
    %2102 = vmatpush1.msra.mxu0 0.0
    %2103 = vmatprep.subr.mxu0 0.0
    %2104 = vmatpush1.msra.mxu0 0.0
    %2105 = vmatprep.subr.mxu0 0.0
    %2106 = vmatpush1.msra.mxu0 0.0
    %2107 = vmatprep.subr.mxu0 0.0
    %2108 = vmatpush1.msra.mxu0 0.0
    %2109 = vmatprep.subr.mxu0 0.0
    %2110 = vmatpush1.msra.mxu0 0.0
    %2111 = vmatprep.subr.mxu0 0.0
    %2112 = vmatpush1.msra.mxu0 0.0
    %2113 = vmatprep.subr.mxu0 0.0
    %2114 = vmatpush1.msra.mxu0 0.0
    %2115 = vmatprep.subr.mxu0 0.0
    %2116 = vmatpush1.msra.mxu0 0.0
    %2117 = vmatprep.subr.mxu0 0.0
    %2118 = vmatpush1.msra.mxu0 0.0
    %2119 = vmatprep.subr.mxu0 0.0
    %2120 = vmatpush1.msra.mxu0 0.0
    %2121 = vmatprep.subr.mxu0 0.0
    %2122 = vmatpush1.msra.mxu0 0.0
    %2123 = vmatprep.subr.mxu0 0.0
    %2124 = vmatpush1.msra.mxu0 0.0
    %2125 = vmatprep.subr.mxu0 0.0
    %2126 = vmatpush1.msra.mxu0 0.0
    %2127 = vmatprep.subr.mxu0 0.0
    %2128 = vmatpush1.msra.mxu0 0.0
    %2129 = vmatprep.subr.mxu0 0.0
    %2130 = vmatpush1.msra.mxu0 0.0
    %2131 = vmatprep.subr.mxu0 0.0
    %2132 = vmatpush1.msra.mxu0 0.0
    %2133 = vmatprep.subr.mxu0 0.0
    %2134 = vmatpush1.msra.mxu0 0.0
    %2135 = vmatprep.subr.mxu0 0.0
    %2136 = vmatpush1.msra.mxu0 0.0
    %2137 = vmatprep.subr.mxu0 0.0
    %2138 = vmatpush1.msra.mxu0 0.0
    %2139 = vmatprep.subr.mxu0 0.0
    %2140 = vmatpush1.msra.mxu0 0.0
    %2141 = vmatprep.subr.mxu0 0.0
    %2142 = vmatpush1.msra.mxu0 0.0
    %2143 = vmatprep.subr.mxu0 0.0
    %2144 = vmatpush1.msra.mxu0 0.0
    %2145 = vmatprep.subr.mxu0 0.0
    %2146 = vmatpush1.msra.mxu0 0.0
    %2147 = vmatprep.mubr.f32.mxu0 0.0
    %2148 = vmatmul.mubr.f32.gmra.mrb[0].mxu0 %v259
    %v2149 = vpop.f32.mrb[0].mxu0
    %v2150 = vadd.f32 0.0, %v2149
    %v2151 = vpop.f32.mrb[0].mxu0
    %v2152 = vadd.f32 0.0, %v2151
    %2153 = vdwg.mxu0
    %v2154 = vadd.f32 %v2081, %v2150
    %v2155 = vadd.f32 %v2082, %v2152
    %v2156 = vxor.u32 %v2154, 2147483648
    %v2157 = vxor.u32 %v2155, 2147483648
    %v2158 = vmul.f32 %v2156, 1.442695
    %v2159 = vpow.pop %v2158
    %v2160 = vmul.f32 %v2157, 1.442695
    %v2161 = vpow.pop %v2160
    %v2162 = vadd.f32 %v2159, 1.0
    %v2163 = vadd.f32 %v2161, 1.0
    %v2164 = vrcp.pop %v2162
    %v2165 = vmul.f32 1.0, %v2164
    %v2166 = vrcp.pop %v2163
    %v2167 = vmul.f32 1.0, %v2166
    %v2168 = vtanh.pop %v2155
    %v2169 = vmul.f32 %v2165, 0.0
    %2171 = vrot.lane.b32.xlu0 %v2168, 64
    %v2172 = vpop.permute.xlu0 %2171
    %v2174 = vmul.f32 %v2165, %v2172
    %2176 = vrot.lane.b32.xlu0 %v2174, 64
    %v2177 = vpop.permute.xlu0 %2176
    %v2179 = vadd.f32 %v2169, %v2177
    %v2180 = vtanh.pop %v2179
    %2182 = vrot.lane.b32.xlu0 %v2180, 64
    %v2183 = vpop.permute.xlu0 %2182
    %v2185 = vmul.f32 %v2167, %v2183
    %v2187 = vsel %vm364, %v2185, 0
    %2189 = vmatprep.subr.mxu0 0.0
    %2190 = vmatpush1.msra.mxu0 %v2067
    %2191 = vmatprep.subr.mxu0 0.0
    %2192 = vmatpush1.msra.mxu0 %v2068
    %2193 = vmatprep.subr.mxu0 0.0
    %2194 = vmatpush1.msra.mxu0 %v2069
    %2195 = vmatprep.subr.mxu0 0.0
    %2196 = vmatpush1.msra.mxu0 %v2070
    %2197 = vmatprep.subr.mxu0 0.0
    %2198 = vmatpush1.msra.mxu0 %v2071
    %2199 = vmatprep.subr.mxu0 0.0
    %2200 = vmatpush1.msra.mxu0 %v2072
    %2201 = vmatprep.subr.mxu0 0.0
    %2202 = vmatpush1.msra.mxu0 %v2073
    %2203 = vmatprep.subr.mxu0 0.0
    %2204 = vmatpush1.msra.mxu0 %v2074
    %2205 = vmatprep.subr.mxu0 0.0
    %2206 = vmatpush1.msra.mxu0 0.0
    %2207 = vmatprep.subr.mxu0 0.0
    %2208 = vmatpush1.msra.mxu0 0.0
    %2209 = vmatprep.subr.mxu0 0.0
    %2210 = vmatpush1.msra.mxu0 0.0
    %2211 = vmatprep.subr.mxu0 0.0
    %2212 = vmatpush1.msra.mxu0 0.0
    %2213 = vmatprep.subr.mxu0 0.0
    %2214 = vmatpush1.msra.mxu0 0.0
    %2215 = vmatprep.subr.mxu0 0.0
    %2216 = vmatpush1.msra.mxu0 0.0
    %2217 = vmatprep.subr.mxu0 0.0
    %2218 = vmatpush1.msra.mxu0 0.0
    %2219 = vmatprep.subr.mxu0 0.0
    %2220 = vmatpush1.msra.mxu0 0.0
    %2221 = vmatprep.subr.mxu0 0.0
    %2222 = vmatpush1.msra.mxu0 0.0
    %2223 = vmatprep.subr.mxu0 0.0
    %2224 = vmatpush1.msra.mxu0 0.0
    %2225 = vmatprep.subr.mxu0 0.0
    %2226 = vmatpush1.msra.mxu0 0.0
    %2227 = vmatprep.subr.mxu0 0.0
    %2228 = vmatpush1.msra.mxu0 0.0
    %2229 = vmatprep.subr.mxu0 0.0
    %2230 = vmatpush1.msra.mxu0 0.0
    %2231 = vmatprep.subr.mxu0 0.0
    %2232 = vmatpush1.msra.mxu0 0.0
    %2233 = vmatprep.subr.mxu0 0.0
    %2234 = vmatpush1.msra.mxu0 0.0
    %2235 = vmatprep.subr.mxu0 0.0
    %2236 = vmatpush1.msra.mxu0 0.0
    %2237 = vmatprep.subr.mxu0 0.0
    %2238 = vmatpush1.msra.mxu0 0.0
    %2239 = vmatprep.subr.mxu0 0.0
    %2240 = vmatpush1.msra.mxu0 0.0
    %2241 = vmatprep.subr.mxu0 0.0
    %2242 = vmatpush1.msra.mxu0 0.0
    %2243 = vmatprep.subr.mxu0 0.0
    %2244 = vmatpush1.msra.mxu0 0.0
    %2245 = vmatprep.subr.mxu0 0.0
    %2246 = vmatpush1.msra.mxu0 0.0
    %2247 = vmatprep.subr.mxu0 0.0
    %2248 = vmatpush1.msra.mxu0 0.0
    %2249 = vmatprep.subr.mxu0 0.0
    %2250 = vmatpush1.msra.mxu0 0.0
    %2251 = vmatprep.subr.mxu0 0.0
    %2252 = vmatpush1.msra.mxu0 0.0
    %2253 = vmatprep.mubr.f32.mxu0 0.0
    %2254 = vmatmul.mubr.f32.gmra.mrb[0].mxu0 %v2187
    %v2255 = vpop.f32.mrb[0].mxu0
    %v2256 = vadd.f32 0.0, %v2255
    %v2257 = vpop.f32.mrb[0].mxu0
    %2258 = vdwg.mxu0
    %2259 = vst.msk [vmem:[#allocation3] sm:$0xff] %vm257, %v2256
    %v2260 = vld [vmem:[%s441] sm:$0xff]
    %v2261 = vld [vmem:[%s441 + $0x8] sm:$0xff]
    %s2262 = smul.addr %s1369, 8
    %s2263 = scalar_lea.vmem [#allocation5], %s2262
    %v2264 = vld [vmem:[%s2263] sm:$0xff]
    %v2265 = vld [vmem:[%s2263 + $0x8] sm:$0xff]
    %v2266 = vadd.f32 %v2260, %v2264
    %v2267 = vadd.f32 %v2261, %v2265
    %v2269 = vsel %vm257, %v2256, 0
    %2271 = vmatprep.subr.mxu0 %v2060
    %2272 = vmatpush1.msra.mxu0 %v2059
    %2273 = vmatprep.subr.mxu0 %v2062
    %2274 = vmatpush1.msra.mxu0 %v2061
    %2275 = vmatprep.subr.mxu0 %v2064
    %2276 = vmatpush1.msra.mxu0 %v2063
    %2277 = vmatprep.subr.mxu0 %v2066
    %2278 = vmatpush1.msra.mxu0 %v2065
    %2279 = vmatprep.subr.mxu0 0.0
    %2280 = vmatpush1.msra.mxu0 0.0
    %2281 = vmatprep.subr.mxu0 0.0
    %2282 = vmatpush1.msra.mxu0 0.0
    %2283 = vmatprep.subr.mxu0 0.0
    %2284 = vmatpush1.msra.mxu0 0.0
    %2285 = vmatprep.subr.mxu0 0.0
    %2286 = vmatpush1.msra.mxu0 0.0
    %2287 = vmatprep.subr.mxu0 0.0
    %2288 = vmatpush1.msra.mxu0 0.0
    %2289 = vmatprep.subr.mxu0 0.0
    %2290 = vmatpush1.msra.mxu0 0.0
    %2291 = vmatprep.subr.mxu0 0.0
    %2292 = vmatpush1.msra.mxu0 0.0
    %2293 = vmatprep.subr.mxu0 0.0
    %2294 = vmatpush1.msra.mxu0 0.0
    %2295 = vmatprep.subr.mxu0 0.0
    %2296 = vmatpush1.msra.mxu0 0.0
    %2297 = vmatprep.subr.mxu0 0.0
    %2298 = vmatpush1.msra.mxu0 0.0
    %2299 = vmatprep.subr.mxu0 0.0
    %2300 = vmatpush1.msra.mxu0 0.0
    %2301 = vmatprep.subr.mxu0 0.0
    %2302 = vmatpush1.msra.mxu0 0.0
    %2303 = vmatprep.subr.mxu0 0.0
    %2304 = vmatpush1.msra.mxu0 0.0
    %2305 = vmatprep.subr.mxu0 0.0
    %2306 = vmatpush1.msra.mxu0 0.0
    %2307 = vmatprep.subr.mxu0 0.0
    %2308 = vmatpush1.msra.mxu0 0.0
    %2309 = vmatprep.subr.mxu0 0.0
    %2310 = vmatpush1.msra.mxu0 0.0
    %2311 = vmatprep.subr.mxu0 0.0
    %2312 = vmatpush1.msra.mxu0 0.0
    %2313 = vmatprep.subr.mxu0 0.0
    %2314 = vmatpush1.msra.mxu0 0.0
    %2315 = vmatprep.subr.mxu0 0.0
    %2316 = vmatpush1.msra.mxu0 0.0
    %2317 = vmatprep.subr.mxu0 0.0
    %2318 = vmatpush1.msra.mxu0 0.0
    %2319 = vmatprep.subr.mxu0 0.0
    %2320 = vmatpush1.msra.mxu0 0.0
    %2321 = vmatprep.subr.mxu0 0.0
    %2322 = vmatpush1.msra.mxu0 0.0
    %2323 = vmatprep.subr.mxu0 0.0
    %2324 = vmatpush1.msra.mxu0 0.0
    %2325 = vmatprep.subr.mxu0 0.0
    %2326 = vmatpush1.msra.mxu0 0.0
    %2327 = vmatprep.subr.mxu0 0.0
    %2328 = vmatpush1.msra.mxu0 0.0
    %2329 = vmatprep.subr.mxu0 0.0
    %2330 = vmatpush1.msra.mxu0 0.0
    %2331 = vmatprep.subr.mxu0 0.0
    %2332 = vmatpush1.msra.mxu0 0.0
    %2333 = vmatprep.subr.mxu0 0.0
    %2334 = vmatpush1.msra.mxu0 0.0
    %2335 = vmatprep.mubr.f32.mxu0 0.0
    %2336 = vmatmul.mubr.f32.gmra.mrb[0].mxu0 %v2269
    %v2337 = vpop.f32.mrb[0].mxu0
    %v2338 = vadd.f32 0.0, %v2337
    %v2339 = vpop.f32.mrb[0].mxu0
    %v2340 = vadd.f32 0.0, %v2339
    %2341 = vdwg.mxu0
    %v2342 = vadd.f32 %v2266, %v2338
    %v2343 = vadd.f32 %v2267, %v2340
    %v2344 = vxor.u32 %v2342, 2147483648
    %v2345 = vxor.u32 %v2343, 2147483648
    %v2346 = vmul.f32 %v2344, 1.442695
    %v2347 = vpow.pop %v2346
    %v2348 = vmul.f32 %v2345, 1.442695
    %v2349 = vpow.pop %v2348
    %v2350 = vadd.f32 %v2347, 1.0
    %v2351 = vadd.f32 %v2349, 1.0
    %v2352 = vrcp.pop %v2350
    %v2353 = vmul.f32 1.0, %v2352
    %v2354 = vrcp.pop %v2351
    %v2355 = vmul.f32 1.0, %v2354
    %v2356 = vtanh.pop %v2343
    %v2357 = vmul.f32 %v2353, %v2179
    %2359 = vrot.lane.b32.xlu0 %v2356, 64
    %v2360 = vpop.permute.xlu0 %2359
    %v2362 = vmul.f32 %v2353, %v2360
    %2364 = vrot.lane.b32.xlu0 %v2362, 64
    %v2365 = vpop.permute.xlu0 %2364
    %v2367 = vadd.f32 %v2357, %v2365
    %v2368 = vtanh.pop %v2367
    %2370 = vrot.lane.b32.xlu0 %v2368, 64
    %v2371 = vpop.permute.xlu0 %2370
    %v2373 = vmul.f32 %v2355, %v2371
    %v2375 = vsel %vm364, %v2373, 0
    %2377 = vmatprep.subr.mxu0 0.0
    %2378 = vmatpush1.msra.mxu0 %v2067
    %2379 = vmatprep.subr.mxu0 0.0
    %2380 = vmatpush1.msra.mxu0 %v2068
    %2381 = vmatprep.subr.mxu0 0.0
    %2382 = vmatpush1.msra.mxu0 %v2069
    %2383 = vmatprep.subr.mxu0 0.0
    %2384 = vmatpush1.msra.mxu0 %v2070
    %2385 = vmatprep.subr.mxu0 0.0
    %2386 = vmatpush1.msra.mxu0 %v2071
    %2387 = vmatprep.subr.mxu0 0.0
    %2388 = vmatpush1.msra.mxu0 %v2072
    %2389 = vmatprep.subr.mxu0 0.0
    %2390 = vmatpush1.msra.mxu0 %v2073
    %2391 = vmatprep.subr.mxu0 0.0
    %2392 = vmatpush1.msra.mxu0 %v2074
    %2393 = vmatprep.subr.mxu0 0.0
    %2394 = vmatpush1.msra.mxu0 0.0
    %2395 = vmatprep.subr.mxu0 0.0
    %2396 = vmatpush1.msra.mxu0 0.0
    %2397 = vmatprep.subr.mxu0 0.0
    %2398 = vmatpush1.msra.mxu0 0.0
    %2399 = vmatprep.subr.mxu0 0.0
    %2400 = vmatpush1.msra.mxu0 0.0
    %2401 = vmatprep.subr.mxu0 0.0
    %2402 = vmatpush1.msra.mxu0 0.0
    %2403 = vmatprep.subr.mxu0 0.0
    %2404 = vmatpush1.msra.mxu0 0.0
    %2405 = vmatprep.subr.mxu0 0.0
    %2406 = vmatpush1.msra.mxu0 0.0
    %2407 = vmatprep.subr.mxu0 0.0
    %2408 = vmatpush1.msra.mxu0 0.0
    %2409 = vmatprep.subr.mxu0 0.0
    %2410 = vmatpush1.msra.mxu0 0.0
    %2411 = vmatprep.subr.mxu0 0.0
    %2412 = vmatpush1.msra.mxu0 0.0
    %2413 = vmatprep.subr.mxu0 0.0
    %2414 = vmatpush1.msra.mxu0 0.0
    %2415 = vmatprep.subr.mxu0 0.0
    %2416 = vmatpush1.msra.mxu0 0.0
    %2417 = vmatprep.subr.mxu0 0.0
    %2418 = vmatpush1.msra.mxu0 0.0
    %2419 = vmatprep.subr.mxu0 0.0
    %2420 = vmatpush1.msra.mxu0 0.0
    %2421 = vmatprep.subr.mxu0 0.0
    %2422 = vmatpush1.msra.mxu0 0.0
    %2423 = vmatprep.subr.mxu0 0.0
    %2424 = vmatpush1.msra.mxu0 0.0
    %2425 = vmatprep.subr.mxu0 0.0
    %2426 = vmatpush1.msra.mxu0 0.0
    %2427 = vmatprep.subr.mxu0 0.0
    %2428 = vmatpush1.msra.mxu0 0.0
    %2429 = vmatprep.subr.mxu0 0.0
    %2430 = vmatpush1.msra.mxu0 0.0
    %2431 = vmatprep.subr.mxu0 0.0
    %2432 = vmatpush1.msra.mxu0 0.0
    %2433 = vmatprep.subr.mxu0 0.0
    %2434 = vmatpush1.msra.mxu0 0.0
    %2435 = vmatprep.subr.mxu0 0.0
    %2436 = vmatpush1.msra.mxu0 0.0
    %2437 = vmatprep.subr.mxu0 0.0
    %2438 = vmatpush1.msra.mxu0 0.0
    %2439 = vmatprep.subr.mxu0 0.0
    %2440 = vmatpush1.msra.mxu0 0.0
    %2441 = vmatprep.mubr.f32.mxu0 0.0
    %2442 = vmatmul.mubr.f32.gmra.mrb[0].mxu0 %v2375
    %v2443 = vpop.f32.mrb[0].mxu0
    %v2444 = vadd.f32 0.0, %v2443
    %v2445 = vpop.f32.mrb[0].mxu0
    %2446 = vdwg.mxu0
    %s2447 = scalar_lea.vmem [#allocation3], 8
    %2448 = vst.msk [vmem:[%s2447] sm:$0xff] %vm257, %v2444
    %v2449 = vld [vmem:[%s627] sm:$0xff]
    %v2450 = vld [vmem:[%s627 + $0x8] sm:$0xff]
    %s2451 = smul.addr %s1183, 8
    %s2452 = scalar_lea.vmem [#allocation5], %s2451
    %v2453 = vld [vmem:[%s2452] sm:$0xff]
    %v2454 = vld [vmem:[%s2452 + $0x8] sm:$0xff]
    %v2455 = vadd.f32 %v2449, %v2453
    %v2456 = vadd.f32 %v2450, %v2454
    %v2458 = vsel %vm257, %v2444, 0
    %2460 = vmatprep.subr.mxu0 %v2060
    %2461 = vmatpush1.msra.mxu0 %v2059
    %2462 = vmatprep.subr.mxu0 %v2062
    %2463 = vmatpush1.msra.mxu0 %v2061
    %2464 = vmatprep.subr.mxu0 %v2064
    %2465 = vmatpush1.msra.mxu0 %v2063
    %2466 = vmatprep.subr.mxu0 %v2066
    %2467 = vmatpush1.msra.mxu0 %v2065
    %2468 = vmatprep.subr.mxu0 0.0
    %2469 = vmatpush1.msra.mxu0 0.0
    %2470 = vmatprep.subr.mxu0 0.0
    %2471 = vmatpush1.msra.mxu0 0.0
    %2472 = vmatprep.subr.mxu0 0.0
    %2473 = vmatpush1.msra.mxu0 0.0
    %2474 = vmatprep.subr.mxu0 0.0
    %2475 = vmatpush1.msra.mxu0 0.0
    %2476 = vmatprep.subr.mxu0 0.0
    %2477 = vmatpush1.msra.mxu0 0.0
    %2478 = vmatprep.subr.mxu0 0.0
    %2479 = vmatpush1.msra.mxu0 0.0
    %2480 = vmatprep.subr.mxu0 0.0
    %2481 = vmatpush1.msra.mxu0 0.0
    %2482 = vmatprep.subr.mxu0 0.0
    %2483 = vmatpush1.msra.mxu0 0.0
    %2484 = vmatprep.subr.mxu0 0.0
    %2485 = vmatpush1.msra.mxu0 0.0
    %2486 = vmatprep.subr.mxu0 0.0
    %2487 = vmatpush1.msra.mxu0 0.0
    %2488 = vmatprep.subr.mxu0 0.0
    %2489 = vmatpush1.msra.mxu0 0.0
    %2490 = vmatprep.subr.mxu0 0.0
    %2491 = vmatpush1.msra.mxu0 0.0
    %2492 = vmatprep.subr.mxu0 0.0
    %2493 = vmatpush1.msra.mxu0 0.0
    %2494 = vmatprep.subr.mxu0 0.0
    %2495 = vmatpush1.msra.mxu0 0.0
    %2496 = vmatprep.subr.mxu0 0.0
    %2497 = vmatpush1.msra.mxu0 0.0
    %2498 = vmatprep.subr.mxu0 0.0
    %2499 = vmatpush1.msra.mxu0 0.0
    %2500 = vmatprep.subr.mxu0 0.0
    %2501 = vmatpush1.msra.mxu0 0.0
    %2502 = vmatprep.subr.mxu0 0.0
    %2503 = vmatpush1.msra.mxu0 0.0
    %2504 = vmatprep.subr.mxu0 0.0
    %2505 = vmatpush1.msra.mxu0 0.0
    %2506 = vmatprep.subr.mxu0 0.0
    %2507 = vmatpush1.msra.mxu0 0.0
    %2508 = vmatprep.subr.mxu0 0.0
    %2509 = vmatpush1.msra.mxu0 0.0
    %2510 = vmatprep.subr.mxu0 0.0
    %2511 = vmatpush1.msra.mxu0 0.0
    %2512 = vmatprep.subr.mxu0 0.0
    %2513 = vmatpush1.msra.mxu0 0.0
    %2514 = vmatprep.subr.mxu0 0.0
    %2515 = vmatpush1.msra.mxu0 0.0
    %2516 = vmatprep.subr.mxu0 0.0
    %2517 = vmatpush1.msra.mxu0 0.0
    %2518 = vmatprep.subr.mxu0 0.0
    %2519 = vmatpush1.msra.mxu0 0.0
    %2520 = vmatprep.subr.mxu0 0.0
    %2521 = vmatpush1.msra.mxu0 0.0
    %2522 = vmatprep.subr.mxu0 0.0
    %2523 = vmatpush1.msra.mxu0 0.0
    %2524 = vmatprep.mubr.f32.mxu0 0.0
    %2525 = vmatmul.mubr.f32.gmra.mrb[0].mxu0 %v2458
    %v2526 = vpop.f32.mrb[0].mxu0
    %v2527 = vadd.f32 0.0, %v2526
    %v2528 = vpop.f32.mrb[0].mxu0
    %v2529 = vadd.f32 0.0, %v2528
    %2530 = vdwg.mxu0
    %v2531 = vadd.f32 %v2455, %v2527
    %v2532 = vadd.f32 %v2456, %v2529
    %v2533 = vxor.u32 %v2531, 2147483648
    %v2534 = vxor.u32 %v2532, 2147483648
    %v2535 = vmul.f32 %v2533, 1.442695
    %v2536 = vpow.pop %v2535
    %v2537 = vmul.f32 %v2534, 1.442695
    %v2538 = vpow.pop %v2537
    %v2539 = vadd.f32 %v2536, 1.0
    %v2540 = vadd.f32 %v2538, 1.0
    %v2541 = vrcp.pop %v2539
    %v2542 = vmul.f32 1.0, %v2541
    %v2543 = vrcp.pop %v2540
    %v2544 = vmul.f32 1.0, %v2543
    %v2545 = vtanh.pop %v2532
    %v2546 = vmul.f32 %v2542, %v2367
    %2548 = vrot.lane.b32.xlu0 %v2545, 64
    %v2549 = vpop.permute.xlu0 %2548
    %v2551 = vmul.f32 %v2542, %v2549
    %2553 = vrot.lane.b32.xlu0 %v2551, 64
    %v2554 = vpop.permute.xlu0 %2553
    %v2556 = vadd.f32 %v2546, %v2554
    %v2557 = vtanh.pop %v2556
    %2559 = vrot.lane.b32.xlu0 %v2557, 64
    %v2560 = vpop.permute.xlu0 %2559
    %v2562 = vmul.f32 %v2544, %v2560
    %v2564 = vsel %vm364, %v2562, 0
    %2566 = vmatprep.subr.mxu0 0.0
    %2567 = vmatpush1.msra.mxu0 %v2067
    %2568 = vmatprep.subr.mxu0 0.0
    %2569 = vmatpush1.msra.mxu0 %v2068
    %2570 = vmatprep.subr.mxu0 0.0
    %2571 = vmatpush1.msra.mxu0 %v2069
    %2572 = vmatprep.subr.mxu0 0.0
    %2573 = vmatpush1.msra.mxu0 %v2070
    %2574 = vmatprep.subr.mxu0 0.0
    %2575 = vmatpush1.msra.mxu0 %v2071
    %2576 = vmatprep.subr.mxu0 0.0
    %2577 = vmatpush1.msra.mxu0 %v2072
    %2578 = vmatprep.subr.mxu0 0.0
    %2579 = vmatpush1.msra.mxu0 %v2073
    %2580 = vmatprep.subr.mxu0 0.0
    %2581 = vmatpush1.msra.mxu0 %v2074
    %2582 = vmatprep.subr.mxu0 0.0
    %2583 = vmatpush1.msra.mxu0 0.0
    %2584 = vmatprep.subr.mxu0 0.0
    %2585 = vmatpush1.msra.mxu0 0.0
    %2586 = vmatprep.subr.mxu0 0.0
    %2587 = vmatpush1.msra.mxu0 0.0
    %2588 = vmatprep.subr.mxu0 0.0
    %2589 = vmatpush1.msra.mxu0 0.0
    %2590 = vmatprep.subr.mxu0 0.0
    %2591 = vmatpush1.msra.mxu0 0.0
    %2592 = vmatprep.subr.mxu0 0.0
    %2593 = vmatpush1.msra.mxu0 0.0
    %2594 = vmatprep.subr.mxu0 0.0
    %2595 = vmatpush1.msra.mxu0 0.0
    %2596 = vmatprep.subr.mxu0 0.0
    %2597 = vmatpush1.msra.mxu0 0.0
    %2598 = vmatprep.subr.mxu0 0.0
    %2599 = vmatpush1.msra.mxu0 0.0
    %2600 = vmatprep.subr.mxu0 0.0
    %2601 = vmatpush1.msra.mxu0 0.0
    %2602 = vmatprep.subr.mxu0 0.0
    %2603 = vmatpush1.msra.mxu0 0.0
    %2604 = vmatprep.subr.mxu0 0.0
    %2605 = vmatpush1.msra.mxu0 0.0
    %2606 = vmatprep.subr.mxu0 0.0
    %2607 = vmatpush1.msra.mxu0 0.0
    %2608 = vmatprep.subr.mxu0 0.0
    %2609 = vmatpush1.msra.mxu0 0.0
    %2610 = vmatprep.subr.mxu0 0.0
    %2611 = vmatpush1.msra.mxu0 0.0
    %2612 = vmatprep.subr.mxu0 0.0
    %2613 = vmatpush1.msra.mxu0 0.0
    %2614 = vmatprep.subr.mxu0 0.0
    %2615 = vmatpush1.msra.mxu0 0.0
    %2616 = vmatprep.subr.mxu0 0.0
    %2617 = vmatpush1.msra.mxu0 0.0
    %2618 = vmatprep.subr.mxu0 0.0
    %2619 = vmatpush1.msra.mxu0 0.0
    %2620 = vmatprep.subr.mxu0 0.0
    %2621 = vmatpush1.msra.mxu0 0.0
    %2622 = vmatprep.subr.mxu0 0.0
    %2623 = vmatpush1.msra.mxu0 0.0
    %2624 = vmatprep.subr.mxu0 0.0
    %2625 = vmatpush1.msra.mxu0 0.0
    %2626 = vmatprep.subr.mxu0 0.0
    %2627 = vmatpush1.msra.mxu0 0.0
    %2628 = vmatprep.subr.mxu0 0.0
    %2629 = vmatpush1.msra.mxu0 0.0
    %2630 = vmatprep.mubr.f32.mxu0 0.0
    %2631 = vmatmul.mubr.f32.gmra.mrb[0].mxu0 %v2564
    %v2632 = vpop.f32.mrb[0].mxu0
    %v2633 = vadd.f32 0.0, %v2632
    %v2634 = vpop.f32.mrb[0].mxu0
    %2635 = vdwg.mxu0
    %s2636 = scalar_lea.vmem [#allocation3], 16
    %2637 = vst.msk [vmem:[%s2636] sm:$0xff] %vm257, %v2633
    %v2638 = vld [vmem:[%s813] sm:$0xff]
    %v2639 = vld [vmem:[%s813 + $0x8] sm:$0xff]
    %s2640 = smul.addr %s997, 8
    %s2641 = scalar_lea.vmem [#allocation5], %s2640
    %v2642 = vld [vmem:[%s2641] sm:$0xff]
    %v2643 = vld [vmem:[%s2641 + $0x8] sm:$0xff]
    %v2644 = vadd.f32 %v2638, %v2642
    %v2645 = vadd.f32 %v2639, %v2643
    %v2647 = vsel %vm257, %v2633, 0
    %2649 = vmatprep.subr.mxu0 %v2060
    %2650 = vmatpush1.msra.mxu0 %v2059
    %2651 = vmatprep.subr.mxu0 %v2062
    %2652 = vmatpush1.msra.mxu0 %v2061
    %2653 = vmatprep.subr.mxu0 %v2064
    %2654 = vmatpush1.msra.mxu0 %v2063
    %2655 = vmatprep.subr.mxu0 %v2066
    %2656 = vmatpush1.msra.mxu0 %v2065
    %2657 = vmatprep.subr.mxu0 0.0
    %2658 = vmatpush1.msra.mxu0 0.0
    %2659 = vmatprep.subr.mxu0 0.0
    %2660 = vmatpush1.msra.mxu0 0.0
    %2661 = vmatprep.subr.mxu0 0.0
    %2662 = vmatpush1.msra.mxu0 0.0
    %2663 = vmatprep.subr.mxu0 0.0
    %2664 = vmatpush1.msra.mxu0 0.0
    %2665 = vmatprep.subr.mxu0 0.0
    %2666 = vmatpush1.msra.mxu0 0.0
    %2667 = vmatprep.subr.mxu0 0.0
    %2668 = vmatpush1.msra.mxu0 0.0
    %2669 = vmatprep.subr.mxu0 0.0
    %2670 = vmatpush1.msra.mxu0 0.0
    %2671 = vmatprep.subr.mxu0 0.0
    %2672 = vmatpush1.msra.mxu0 0.0
    %2673 = vmatprep.subr.mxu0 0.0
    %2674 = vmatpush1.msra.mxu0 0.0
    %2675 = vmatprep.subr.mxu0 0.0
    %2676 = vmatpush1.msra.mxu0 0.0
    %2677 = vmatprep.subr.mxu0 0.0
    %2678 = vmatpush1.msra.mxu0 0.0
    %2679 = vmatprep.subr.mxu0 0.0
    %2680 = vmatpush1.msra.mxu0 0.0
    %2681 = vmatprep.subr.mxu0 0.0
    %2682 = vmatpush1.msra.mxu0 0.0
    %2683 = vmatprep.subr.mxu0 0.0
    %2684 = vmatpush1.msra.mxu0 0.0
    %2685 = vmatprep.subr.mxu0 0.0
    %2686 = vmatpush1.msra.mxu0 0.0
    %2687 = vmatprep.subr.mxu0 0.0
    %2688 = vmatpush1.msra.mxu0 0.0
    %2689 = vmatprep.subr.mxu0 0.0
    %2690 = vmatpush1.msra.mxu0 0.0
    %2691 = vmatprep.subr.mxu0 0.0
    %2692 = vmatpush1.msra.mxu0 0.0
    %2693 = vmatprep.subr.mxu0 0.0
    %2694 = vmatpush1.msra.mxu0 0.0
    %2695 = vmatprep.subr.mxu0 0.0
    %2696 = vmatpush1.msra.mxu0 0.0
    %2697 = vmatprep.subr.mxu0 0.0
    %2698 = vmatpush1.msra.mxu0 0.0
    %2699 = vmatprep.subr.mxu0 0.0
    %2700 = vmatpush1.msra.mxu0 0.0
    %2701 = vmatprep.subr.mxu0 0.0
    %2702 = vmatpush1.msra.mxu0 0.0
    %2703 = vmatprep.subr.mxu0 0.0
    %2704 = vmatpush1.msra.mxu0 0.0
    %2705 = vmatprep.subr.mxu0 0.0
    %2706 = vmatpush1.msra.mxu0 0.0
    %2707 = vmatprep.subr.mxu0 0.0
    %2708 = vmatpush1.msra.mxu0 0.0
    %2709 = vmatprep.subr.mxu0 0.0
    %2710 = vmatpush1.msra.mxu0 0.0
    %2711 = vmatprep.subr.mxu0 0.0
    %2712 = vmatpush1.msra.mxu0 0.0
    %2713 = vmatprep.mubr.f32.mxu0 0.0
    %2714 = vmatmul.mubr.f32.gmra.mrb[0].mxu0 %v2647
    %v2715 = vpop.f32.mrb[0].mxu0
    %v2716 = vadd.f32 0.0, %v2715
    %v2717 = vpop.f32.mrb[0].mxu0
    %v2718 = vadd.f32 0.0, %v2717
    %2719 = vdwg.mxu0
    %v2720 = vadd.f32 %v2644, %v2716
    %v2721 = vadd.f32 %v2645, %v2718
    %v2722 = vxor.u32 %v2720, 2147483648
    %v2723 = vxor.u32 %v2721, 2147483648
    %v2724 = vmul.f32 %v2722, 1.442695
    %v2725 = vpow.pop %v2724
    %v2726 = vmul.f32 %v2723, 1.442695
    %v2727 = vpow.pop %v2726
    %v2728 = vadd.f32 %v2725, 1.0
    %v2729 = vadd.f32 %v2727, 1.0
    %v2730 = vrcp.pop %v2728
    %v2731 = vmul.f32 1.0, %v2730
    %v2732 = vrcp.pop %v2729
    %v2733 = vmul.f32 1.0, %v2732
    %v2734 = vtanh.pop %v2721
    %v2735 = vmul.f32 %v2731, %v2556
    %2737 = vrot.lane.b32.xlu0 %v2734, 64
    %v2738 = vpop.permute.xlu0 %2737
    %v2740 = vmul.f32 %v2731, %v2738
    %2742 = vrot.lane.b32.xlu0 %v2740, 64
    %v2743 = vpop.permute.xlu0 %2742
    %v2745 = vadd.f32 %v2735, %v2743
    %v2746 = vtanh.pop %v2745
    %2748 = vrot.lane.b32.xlu0 %v2746, 64
    %v2749 = vpop.permute.xlu0 %2748
    %v2751 = vmul.f32 %v2733, %v2749
    %v2753 = vsel %vm364, %v2751, 0
    %2755 = vmatprep.subr.mxu0 0.0
    %2756 = vmatpush1.msra.mxu0 %v2067
    %2757 = vmatprep.subr.mxu0 0.0
    %2758 = vmatpush1.msra.mxu0 %v2068
    %2759 = vmatprep.subr.mxu0 0.0
    %2760 = vmatpush1.msra.mxu0 %v2069
    %2761 = vmatprep.subr.mxu0 0.0
    %2762 = vmatpush1.msra.mxu0 %v2070
    %2763 = vmatprep.subr.mxu0 0.0
    %2764 = vmatpush1.msra.mxu0 %v2071
    %2765 = vmatprep.subr.mxu0 0.0
    %2766 = vmatpush1.msra.mxu0 %v2072
    %2767 = vmatprep.subr.mxu0 0.0
    %2768 = vmatpush1.msra.mxu0 %v2073
    %2769 = vmatprep.subr.mxu0 0.0
    %2770 = vmatpush1.msra.mxu0 %v2074
    %2771 = vmatprep.subr.mxu0 0.0
    %2772 = vmatpush1.msra.mxu0 0.0
    %2773 = vmatprep.subr.mxu0 0.0
    %2774 = vmatpush1.msra.mxu0 0.0
    %2775 = vmatprep.subr.mxu0 0.0
    %2776 = vmatpush1.msra.mxu0 0.0
    %2777 = vmatprep.subr.mxu0 0.0
    %2778 = vmatpush1.msra.mxu0 0.0
    %2779 = vmatprep.subr.mxu0 0.0
    %2780 = vmatpush1.msra.mxu0 0.0
    %2781 = vmatprep.subr.mxu0 0.0
    %2782 = vmatpush1.msra.mxu0 0.0
    %2783 = vmatprep.subr.mxu0 0.0
    %2784 = vmatpush1.msra.mxu0 0.0
    %2785 = vmatprep.subr.mxu0 0.0
    %2786 = vmatpush1.msra.mxu0 0.0
    %2787 = vmatprep.subr.mxu0 0.0
    %2788 = vmatpush1.msra.mxu0 0.0
    %2789 = vmatprep.subr.mxu0 0.0
    %2790 = vmatpush1.msra.mxu0 0.0
    %2791 = vmatprep.subr.mxu0 0.0
    %2792 = vmatpush1.msra.mxu0 0.0
    %2793 = vmatprep.subr.mxu0 0.0
    %2794 = vmatpush1.msra.mxu0 0.0
    %2795 = vmatprep.subr.mxu0 0.0
    %2796 = vmatpush1.msra.mxu0 0.0
    %2797 = vmatprep.subr.mxu0 0.0
    %2798 = vmatpush1.msra.mxu0 0.0
    %2799 = vmatprep.subr.mxu0 0.0
    %2800 = vmatpush1.msra.mxu0 0.0
    %2801 = vmatprep.subr.mxu0 0.0
    %2802 = vmatpush1.msra.mxu0 0.0
    %2803 = vmatprep.subr.mxu0 0.0
    %2804 = vmatpush1.msra.mxu0 0.0
    %2805 = vmatprep.subr.mxu0 0.0
    %2806 = vmatpush1.msra.mxu0 0.0
    %2807 = vmatprep.subr.mxu0 0.0
    %2808 = vmatpush1.msra.mxu0 0.0
    %2809 = vmatprep.subr.mxu0 0.0
    %2810 = vmatpush1.msra.mxu0 0.0
    %2811 = vmatprep.subr.mxu0 0.0
    %2812 = vmatpush1.msra.mxu0 0.0
    %2813 = vmatprep.subr.mxu0 0.0
    %2814 = vmatpush1.msra.mxu0 0.0
    %2815 = vmatprep.subr.mxu0 0.0
    %2816 = vmatpush1.msra.mxu0 0.0
    %2817 = vmatprep.subr.mxu0 0.0
    %2818 = vmatpush1.msra.mxu0 0.0
    %2819 = vmatprep.mubr.f32.mxu0 0.0
    %2820 = vmatmul.mubr.f32.gmra.mrb[0].mxu0 %v2753
    %v2821 = vpop.f32.mrb[0].mxu0
    %v2822 = vadd.f32 0.0, %v2821
    %v2823 = vpop.f32.mrb[0].mxu0
    %2824 = vdwg.mxu0
    %s2825 = scalar_lea.vmem [#allocation3], 24
    %2826 = vst.msk [vmem:[%s2825] sm:$0xff] %vm257, %v2822
    %v2827 = vld [vmem:[%s999] sm:$0xff]
    %v2828 = vld [vmem:[%s999 + $0x8] sm:$0xff]
    %s2829 = smul.addr %s811, 8
    %s2830 = scalar_lea.vmem [#allocation5], %s2829
    %v2831 = vld [vmem:[%s2830] sm:$0xff]
    %v2832 = vld [vmem:[%s2830 + $0x8] sm:$0xff]
    %v2833 = vadd.f32 %v2827, %v2831
    %v2834 = vadd.f32 %v2828, %v2832
    %v2836 = vsel %vm257, %v2822, 0
    %2838 = vmatprep.subr.mxu0 %v2060
    %2839 = vmatpush1.msra.mxu0 %v2059
    %2840 = vmatprep.subr.mxu0 %v2062
    %2841 = vmatpush1.msra.mxu0 %v2061
    %2842 = vmatprep.subr.mxu0 %v2064
    %2843 = vmatpush1.msra.mxu0 %v2063
    %2844 = vmatprep.subr.mxu0 %v2066
    %2845 = vmatpush1.msra.mxu0 %v2065
    %2846 = vmatprep.subr.mxu0 0.0
    %2847 = vmatpush1.msra.mxu0 0.0
    %2848 = vmatprep.subr.mxu0 0.0
    %2849 = vmatpush1.msra.mxu0 0.0
    %2850 = vmatprep.subr.mxu0 0.0
    %2851 = vmatpush1.msra.mxu0 0.0
    %2852 = vmatprep.subr.mxu0 0.0
    %2853 = vmatpush1.msra.mxu0 0.0
    %2854 = vmatprep.subr.mxu0 0.0
    %2855 = vmatpush1.msra.mxu0 0.0
    %2856 = vmatprep.subr.mxu0 0.0
    %2857 = vmatpush1.msra.mxu0 0.0
    %2858 = vmatprep.subr.mxu0 0.0
    %2859 = vmatpush1.msra.mxu0 0.0
    %2860 = vmatprep.subr.mxu0 0.0
    %2861 = vmatpush1.msra.mxu0 0.0
    %2862 = vmatprep.subr.mxu0 0.0
    %2863 = vmatpush1.msra.mxu0 0.0
    %2864 = vmatprep.subr.mxu0 0.0
    %2865 = vmatpush1.msra.mxu0 0.0
    %2866 = vmatprep.subr.mxu0 0.0
    %2867 = vmatpush1.msra.mxu0 0.0
    %2868 = vmatprep.subr.mxu0 0.0
    %2869 = vmatpush1.msra.mxu0 0.0
    %2870 = vmatprep.subr.mxu0 0.0
    %2871 = vmatpush1.msra.mxu0 0.0
    %2872 = vmatprep.subr.mxu0 0.0
    %2873 = vmatpush1.msra.mxu0 0.0
    %2874 = vmatprep.subr.mxu0 0.0
    %2875 = vmatpush1.msra.mxu0 0.0
    %2876 = vmatprep.subr.mxu0 0.0
    %2877 = vmatpush1.msra.mxu0 0.0
    %2878 = vmatprep.subr.mxu0 0.0
    %2879 = vmatpush1.msra.mxu0 0.0
    %2880 = vmatprep.subr.mxu0 0.0
    %2881 = vmatpush1.msra.mxu0 0.0
    %2882 = vmatprep.subr.mxu0 0.0
    %2883 = vmatpush1.msra.mxu0 0.0
    %2884 = vmatprep.subr.mxu0 0.0
    %2885 = vmatpush1.msra.mxu0 0.0
    %2886 = vmatprep.subr.mxu0 0.0
    %2887 = vmatpush1.msra.mxu0 0.0
    %2888 = vmatprep.subr.mxu0 0.0
    %2889 = vmatpush1.msra.mxu0 0.0
    %2890 = vmatprep.subr.mxu0 0.0
    %2891 = vmatpush1.msra.mxu0 0.0
    %2892 = vmatprep.subr.mxu0 0.0
    %2893 = vmatpush1.msra.mxu0 0.0
    %2894 = vmatprep.subr.mxu0 0.0
    %2895 = vmatpush1.msra.mxu0 0.0
    %2896 = vmatprep.subr.mxu0 0.0
    %2897 = vmatpush1.msra.mxu0 0.0
    %2898 = vmatprep.subr.mxu0 0.0
    %2899 = vmatpush1.msra.mxu0 0.0
    %2900 = vmatprep.subr.mxu0 0.0
    %2901 = vmatpush1.msra.mxu0 0.0
    %2902 = vmatprep.mubr.f32.mxu0 0.0
    %2903 = vmatmul.mubr.f32.gmra.mrb[0].mxu0 %v2836
    %v2904 = vpop.f32.mrb[0].mxu0
    %v2905 = vadd.f32 0.0, %v2904
    %v2906 = vpop.f32.mrb[0].mxu0
    %v2907 = vadd.f32 0.0, %v2906
    %2908 = vdwg.mxu0
    %v2909 = vadd.f32 %v2833, %v2905
    %v2910 = vadd.f32 %v2834, %v2907
    %v2911 = vxor.u32 %v2909, 2147483648
    %v2912 = vxor.u32 %v2910, 2147483648
    %v2913 = vmul.f32 %v2911, 1.442695
    %v2914 = vpow.pop %v2913
    %v2915 = vmul.f32 %v2912, 1.442695
    %v2916 = vpow.pop %v2915
    %v2917 = vadd.f32 %v2914, 1.0
    %v2918 = vadd.f32 %v2916, 1.0
    %v2919 = vrcp.pop %v2917
    %v2920 = vmul.f32 1.0, %v2919
    %v2921 = vrcp.pop %v2918
    %v2922 = vmul.f32 1.0, %v2921
    %v2923 = vtanh.pop %v2910
    %v2924 = vmul.f32 %v2920, %v2745
    %2926 = vrot.lane.b32.xlu0 %v2923, 64
    %v2927 = vpop.permute.xlu0 %2926
    %v2929 = vmul.f32 %v2920, %v2927
    %2931 = vrot.lane.b32.xlu0 %v2929, 64
    %v2932 = vpop.permute.xlu0 %2931
    %v2934 = vadd.f32 %v2924, %v2932
    %v2935 = vtanh.pop %v2934
    %2937 = vrot.lane.b32.xlu0 %v2935, 64
    %v2938 = vpop.permute.xlu0 %2937
    %v2940 = vmul.f32 %v2922, %v2938
    %v2942 = vsel %vm364, %v2940, 0
    %2944 = vmatprep.subr.mxu0 0.0
    %2945 = vmatpush1.msra.mxu0 %v2067
    %2946 = vmatprep.subr.mxu0 0.0
    %2947 = vmatpush1.msra.mxu0 %v2068
    %2948 = vmatprep.subr.mxu0 0.0
    %2949 = vmatpush1.msra.mxu0 %v2069
    %2950 = vmatprep.subr.mxu0 0.0
    %2951 = vmatpush1.msra.mxu0 %v2070
    %2952 = vmatprep.subr.mxu0 0.0
    %2953 = vmatpush1.msra.mxu0 %v2071
    %2954 = vmatprep.subr.mxu0 0.0
    %2955 = vmatpush1.msra.mxu0 %v2072
    %2956 = vmatprep.subr.mxu0 0.0
    %2957 = vmatpush1.msra.mxu0 %v2073
    %2958 = vmatprep.subr.mxu0 0.0
    %2959 = vmatpush1.msra.mxu0 %v2074
    %2960 = vmatprep.subr.mxu0 0.0
    %2961 = vmatpush1.msra.mxu0 0.0
    %2962 = vmatprep.subr.mxu0 0.0
    %2963 = vmatpush1.msra.mxu0 0.0
    %2964 = vmatprep.subr.mxu0 0.0
    %2965 = vmatpush1.msra.mxu0 0.0
    %2966 = vmatprep.subr.mxu0 0.0
    %2967 = vmatpush1.msra.mxu0 0.0
    %2968 = vmatprep.subr.mxu0 0.0
    %2969 = vmatpush1.msra.mxu0 0.0
    %2970 = vmatprep.subr.mxu0 0.0
    %2971 = vmatpush1.msra.mxu0 0.0
    %2972 = vmatprep.subr.mxu0 0.0
    %2973 = vmatpush1.msra.mxu0 0.0
    %2974 = vmatprep.subr.mxu0 0.0
    %2975 = vmatpush1.msra.mxu0 0.0
    %2976 = vmatprep.subr.mxu0 0.0
    %2977 = vmatpush1.msra.mxu0 0.0
    %2978 = vmatprep.subr.mxu0 0.0
    %2979 = vmatpush1.msra.mxu0 0.0
    %2980 = vmatprep.subr.mxu0 0.0
    %2981 = vmatpush1.msra.mxu0 0.0
    %2982 = vmatprep.subr.mxu0 0.0
    %2983 = vmatpush1.msra.mxu0 0.0
    %2984 = vmatprep.subr.mxu0 0.0
    %2985 = vmatpush1.msra.mxu0 0.0
    %2986 = vmatprep.subr.mxu0 0.0
    %2987 = vmatpush1.msra.mxu0 0.0
    %2988 = vmatprep.subr.mxu0 0.0
    %2989 = vmatpush1.msra.mxu0 0.0
    %2990 = vmatprep.subr.mxu0 0.0
    %2991 = vmatpush1.msra.mxu0 0.0
    %2992 = vmatprep.subr.mxu0 0.0
    %2993 = vmatpush1.msra.mxu0 0.0
    %2994 = vmatprep.subr.mxu0 0.0
    %2995 = vmatpush1.msra.mxu0 0.0
    %2996 = vmatprep.subr.mxu0 0.0
    %2997 = vmatpush1.msra.mxu0 0.0
    %2998 = vmatprep.subr.mxu0 0.0
    %2999 = vmatpush1.msra.mxu0 0.0
    %3000 = vmatprep.subr.mxu0 0.0
    %3001 = vmatpush1.msra.mxu0 0.0
    %3002 = vmatprep.subr.mxu0 0.0
    %3003 = vmatpush1.msra.mxu0 0.0
    %3004 = vmatprep.subr.mxu0 0.0
    %3005 = vmatpush1.msra.mxu0 0.0
    %3006 = vmatprep.subr.mxu0 0.0
    %3007 = vmatpush1.msra.mxu0 0.0
    %3008 = vmatprep.mubr.f32.mxu0 0.0
    %3009 = vmatmul.mubr.f32.gmra.mrb[0].mxu0 %v2942
    %v3010 = vpop.f32.mrb[0].mxu0
    %v3011 = vadd.f32 0.0, %v3010
    %v3012 = vpop.f32.mrb[0].mxu0
    %3013 = vdwg.mxu0
    %s3014 = scalar_lea.vmem [#allocation3], 32
    %3015 = vst.msk [vmem:[%s3014] sm:$0xff] %vm257, %v3011
    %v3016 = vld [vmem:[%s1185] sm:$0xff]
    %v3017 = vld [vmem:[%s1185 + $0x8] sm:$0xff]
    %s3018 = smul.addr %s625, 8
    %s3019 = scalar_lea.vmem [#allocation5], %s3018
    %v3020 = vld [vmem:[%s3019] sm:$0xff]
    %v3021 = vld [vmem:[%s3019 + $0x8] sm:$0xff]
    %v3022 = vadd.f32 %v3016, %v3020
    %v3023 = vadd.f32 %v3017, %v3021
    %v3025 = vsel %vm257, %v3011, 0
    %3027 = vmatprep.subr.mxu0 %v2060
    %3028 = vmatpush1.msra.mxu0 %v2059
    %3029 = vmatprep.subr.mxu0 %v2062
    %3030 = vmatpush1.msra.mxu0 %v2061
    %3031 = vmatprep.subr.mxu0 %v2064
    %3032 = vmatpush1.msra.mxu0 %v2063
    %3033 = vmatprep.subr.mxu0 %v2066
    %3034 = vmatpush1.msra.mxu0 %v2065
    %3035 = vmatprep.subr.mxu0 0.0
    %3036 = vmatpush1.msra.mxu0 0.0
    %3037 = vmatprep.subr.mxu0 0.0
    %3038 = vmatpush1.msra.mxu0 0.0
    %3039 = vmatprep.subr.mxu0 0.0
    %3040 = vmatpush1.msra.mxu0 0.0
    %3041 = vmatprep.subr.mxu0 0.0
    %3042 = vmatpush1.msra.mxu0 0.0
    %3043 = vmatprep.subr.mxu0 0.0
    %3044 = vmatpush1.msra.mxu0 0.0
    %3045 = vmatprep.subr.mxu0 0.0
    %3046 = vmatpush1.msra.mxu0 0.0
    %3047 = vmatprep.subr.mxu0 0.0
    %3048 = vmatpush1.msra.mxu0 0.0
    %3049 = vmatprep.subr.mxu0 0.0
    %3050 = vmatpush1.msra.mxu0 0.0
    %3051 = vmatprep.subr.mxu0 0.0
    %3052 = vmatpush1.msra.mxu0 0.0
    %3053 = vmatprep.subr.mxu0 0.0
    %3054 = vmatpush1.msra.mxu0 0.0
    %3055 = vmatprep.subr.mxu0 0.0
    %3056 = vmatpush1.msra.mxu0 0.0
    %3057 = vmatprep.subr.mxu0 0.0
    %3058 = vmatpush1.msra.mxu0 0.0
    %3059 = vmatprep.subr.mxu0 0.0
    %3060 = vmatpush1.msra.mxu0 0.0
    %3061 = vmatprep.subr.mxu0 0.0
    %3062 = vmatpush1.msra.mxu0 0.0
    %3063 = vmatprep.subr.mxu0 0.0
    %3064 = vmatpush1.msra.mxu0 0.0
    %3065 = vmatprep.subr.mxu0 0.0
    %3066 = vmatpush1.msra.mxu0 0.0
    %3067 = vmatprep.subr.mxu0 0.0
    %3068 = vmatpush1.msra.mxu0 0.0
    %3069 = vmatprep.subr.mxu0 0.0
    %3070 = vmatpush1.msra.mxu0 0.0
    %3071 = vmatprep.subr.mxu0 0.0
    %3072 = vmatpush1.msra.mxu0 0.0
    %3073 = vmatprep.subr.mxu0 0.0
    %3074 = vmatpush1.msra.mxu0 0.0
    %3075 = vmatprep.subr.mxu0 0.0
    %3076 = vmatpush1.msra.mxu0 0.0
    %3077 = vmatprep.subr.mxu0 0.0
    %3078 = vmatpush1.msra.mxu0 0.0
    %3079 = vmatprep.subr.mxu0 0.0
    %3080 = vmatpush1.msra.mxu0 0.0
    %3081 = vmatprep.subr.mxu0 0.0
    %3082 = vmatpush1.msra.mxu0 0.0
    %3083 = vmatprep.subr.mxu0 0.0
    %3084 = vmatpush1.msra.mxu0 0.0
    %3085 = vmatprep.subr.mxu0 0.0
    %3086 = vmatpush1.msra.mxu0 0.0
    %3087 = vmatprep.subr.mxu0 0.0
    %3088 = vmatpush1.msra.mxu0 0.0
    %3089 = vmatprep.subr.mxu0 0.0
    %3090 = vmatpush1.msra.mxu0 0.0
    %3091 = vmatprep.mubr.f32.mxu0 0.0
    %3092 = vmatmul.mubr.f32.gmra.mrb[0].mxu0 %v3025
    %v3093 = vpop.f32.mrb[0].mxu0
    %v3094 = vadd.f32 0.0, %v3093
    %v3095 = vpop.f32.mrb[0].mxu0
    %v3096 = vadd.f32 0.0, %v3095
    %3097 = vdwg.mxu0
    %v3098 = vadd.f32 %v3022, %v3094
    %v3099 = vadd.f32 %v3023, %v3096
    %v3100 = vxor.u32 %v3098, 2147483648
    %v3101 = vxor.u32 %v3099, 2147483648
    %v3102 = vmul.f32 %v3100, 1.442695
    %v3103 = vpow.pop %v3102
    %v3104 = vmul.f32 %v3101, 1.442695
    %v3105 = vpow.pop %v3104
    %v3106 = vadd.f32 %v3103, 1.0
    %v3107 = vadd.f32 %v3105, 1.0
    %v3108 = vrcp.pop %v3106
    %v3109 = vmul.f32 1.0, %v3108
    %v3110 = vrcp.pop %v3107
    %v3111 = vmul.f32 1.0, %v3110
    %v3112 = vtanh.pop %v3099
    %v3113 = vmul.f32 %v3109, %v2934
    %3115 = vrot.lane.b32.xlu0 %v3112, 64
    %v3116 = vpop.permute.xlu0 %3115
    %v3118 = vmul.f32 %v3109, %v3116
    %3120 = vrot.lane.b32.xlu0 %v3118, 64
    %v3121 = vpop.permute.xlu0 %3120
    %v3123 = vadd.f32 %v3113, %v3121
    %v3124 = vtanh.pop %v3123
    %3126 = vrot.lane.b32.xlu0 %v3124, 64
    %v3127 = vpop.permute.xlu0 %3126
    %v3129 = vmul.f32 %v3111, %v3127
    %v3131 = vsel %vm364, %v3129, 0
    %3133 = vmatprep.subr.mxu0 0.0
    %3134 = vmatpush1.msra.mxu0 %v2067
    %3135 = vmatprep.subr.mxu0 0.0
    %3136 = vmatpush1.msra.mxu0 %v2068
    %3137 = vmatprep.subr.mxu0 0.0
    %3138 = vmatpush1.msra.mxu0 %v2069
    %3139 = vmatprep.subr.mxu0 0.0
    %3140 = vmatpush1.msra.mxu0 %v2070
    %3141 = vmatprep.subr.mxu0 0.0
    %3142 = vmatpush1.msra.mxu0 %v2071
    %3143 = vmatprep.subr.mxu0 0.0
    %3144 = vmatpush1.msra.mxu0 %v2072
    %3145 = vmatprep.subr.mxu0 0.0
    %3146 = vmatpush1.msra.mxu0 %v2073
    %3147 = vmatprep.subr.mxu0 0.0
    %3148 = vmatpush1.msra.mxu0 %v2074
    %3149 = vmatprep.subr.mxu0 0.0
    %3150 = vmatpush1.msra.mxu0 0.0
    %3151 = vmatprep.subr.mxu0 0.0
    %3152 = vmatpush1.msra.mxu0 0.0
    %3153 = vmatprep.subr.mxu0 0.0
    %3154 = vmatpush1.msra.mxu0 0.0
    %3155 = vmatprep.subr.mxu0 0.0
    %3156 = vmatpush1.msra.mxu0 0.0
    %3157 = vmatprep.subr.mxu0 0.0
    %3158 = vmatpush1.msra.mxu0 0.0
    %3159 = vmatprep.subr.mxu0 0.0
    %3160 = vmatpush1.msra.mxu0 0.0
    %3161 = vmatprep.subr.mxu0 0.0
    %3162 = vmatpush1.msra.mxu0 0.0
    %3163 = vmatprep.subr.mxu0 0.0
    %3164 = vmatpush1.msra.mxu0 0.0
    %3165 = vmatprep.subr.mxu0 0.0
    %3166 = vmatpush1.msra.mxu0 0.0
    %3167 = vmatprep.subr.mxu0 0.0
    %3168 = vmatpush1.msra.mxu0 0.0
    %3169 = vmatprep.subr.mxu0 0.0
    %3170 = vmatpush1.msra.mxu0 0.0
    %3171 = vmatprep.subr.mxu0 0.0
    %3172 = vmatpush1.msra.mxu0 0.0
    %3173 = vmatprep.subr.mxu0 0.0
    %3174 = vmatpush1.msra.mxu0 0.0
    %3175 = vmatprep.subr.mxu0 0.0
    %3176 = vmatpush1.msra.mxu0 0.0
    %3177 = vmatprep.subr.mxu0 0.0
    %3178 = vmatpush1.msra.mxu0 0.0
    %3179 = vmatprep.subr.mxu0 0.0
    %3180 = vmatpush1.msra.mxu0 0.0
    %3181 = vmatprep.subr.mxu0 0.0
    %3182 = vmatpush1.msra.mxu0 0.0
    %3183 = vmatprep.subr.mxu0 0.0
    %3184 = vmatpush1.msra.mxu0 0.0
    %3185 = vmatprep.subr.mxu0 0.0
    %3186 = vmatpush1.msra.mxu0 0.0
    %3187 = vmatprep.subr.mxu0 0.0
    %3188 = vmatpush1.msra.mxu0 0.0
    %3189 = vmatprep.subr.mxu0 0.0
    %3190 = vmatpush1.msra.mxu0 0.0
    %3191 = vmatprep.subr.mxu0 0.0
    %3192 = vmatpush1.msra.mxu0 0.0
    %3193 = vmatprep.subr.mxu0 0.0
    %3194 = vmatpush1.msra.mxu0 0.0
    %3195 = vmatprep.subr.mxu0 0.0
    %3196 = vmatpush1.msra.mxu0 0.0
    %3197 = vmatprep.mubr.f32.mxu0 0.0
    %3198 = vmatmul.mubr.f32.gmra.mrb[0].mxu0 %v3131
    %v3199 = vpop.f32.mrb[0].mxu0
    %v3200 = vadd.f32 0.0, %v3199
    %v3201 = vpop.f32.mrb[0].mxu0
    %3202 = vdwg.mxu0
    %s3203 = scalar_lea.vmem [#allocation3], 40
    %3204 = vst.msk [vmem:[%s3203] sm:$0xff] %vm257, %v3200
    %v3205 = vld [vmem:[%s1371] sm:$0xff]
    %v3206 = vld [vmem:[%s1371 + $0x8] sm:$0xff]
    %s3207 = smul.addr %s439, 8
    %s3208 = scalar_lea.vmem [#allocation5], %s3207
    %v3209 = vld [vmem:[%s3208] sm:$0xff]
    %v3210 = vld [vmem:[%s3208 + $0x8] sm:$0xff]
    %v3211 = vadd.f32 %v3205, %v3209
    %v3212 = vadd.f32 %v3206, %v3210
    %v3214 = vsel %vm257, %v3200, 0
    %3216 = vmatprep.subr.mxu0 %v2060
    %3217 = vmatpush1.msra.mxu0 %v2059
    %3218 = vmatprep.subr.mxu0 %v2062
    %3219 = vmatpush1.msra.mxu0 %v2061
    %3220 = vmatprep.subr.mxu0 %v2064
    %3221 = vmatpush1.msra.mxu0 %v2063
    %3222 = vmatprep.subr.mxu0 %v2066
    %3223 = vmatpush1.msra.mxu0 %v2065
    %3224 = vmatprep.subr.mxu0 0.0
    %3225 = vmatpush1.msra.mxu0 0.0
    %3226 = vmatprep.subr.mxu0 0.0
    %3227 = vmatpush1.msra.mxu0 0.0
    %3228 = vmatprep.subr.mxu0 0.0
    %3229 = vmatpush1.msra.mxu0 0.0
    %3230 = vmatprep.subr.mxu0 0.0
    %3231 = vmatpush1.msra.mxu0 0.0
    %3232 = vmatprep.subr.mxu0 0.0
    %3233 = vmatpush1.msra.mxu0 0.0
    %3234 = vmatprep.subr.mxu0 0.0
    %3235 = vmatpush1.msra.mxu0 0.0
    %3236 = vmatprep.subr.mxu0 0.0
    %3237 = vmatpush1.msra.mxu0 0.0
    %3238 = vmatprep.subr.mxu0 0.0
    %3239 = vmatpush1.msra.mxu0 0.0
    %3240 = vmatprep.subr.mxu0 0.0
    %3241 = vmatpush1.msra.mxu0 0.0
    %3242 = vmatprep.subr.mxu0 0.0
    %3243 = vmatpush1.msra.mxu0 0.0
    %3244 = vmatprep.subr.mxu0 0.0
    %3245 = vmatpush1.msra.mxu0 0.0
    %3246 = vmatprep.subr.mxu0 0.0
    %3247 = vmatpush1.msra.mxu0 0.0
    %3248 = vmatprep.subr.mxu0 0.0
    %3249 = vmatpush1.msra.mxu0 0.0
    %3250 = vmatprep.subr.mxu0 0.0
    %3251 = vmatpush1.msra.mxu0 0.0
    %3252 = vmatprep.subr.mxu0 0.0
    %3253 = vmatpush1.msra.mxu0 0.0
    %3254 = vmatprep.subr.mxu0 0.0
    %3255 = vmatpush1.msra.mxu0 0.0
    %3256 = vmatprep.subr.mxu0 0.0
    %3257 = vmatpush1.msra.mxu0 0.0
    %3258 = vmatprep.subr.mxu0 0.0
    %3259 = vmatpush1.msra.mxu0 0.0
    %3260 = vmatprep.subr.mxu0 0.0
    %3261 = vmatpush1.msra.mxu0 0.0
    %3262 = vmatprep.subr.mxu0 0.0
    %3263 = vmatpush1.msra.mxu0 0.0
    %3264 = vmatprep.subr.mxu0 0.0
    %3265 = vmatpush1.msra.mxu0 0.0
    %3266 = vmatprep.subr.mxu0 0.0
    %3267 = vmatpush1.msra.mxu0 0.0
    %3268 = vmatprep.subr.mxu0 0.0
    %3269 = vmatpush1.msra.mxu0 0.0
    %3270 = vmatprep.subr.mxu0 0.0
    %3271 = vmatpush1.msra.mxu0 0.0
    %3272 = vmatprep.subr.mxu0 0.0
    %3273 = vmatpush1.msra.mxu0 0.0
    %3274 = vmatprep.subr.mxu0 0.0
    %3275 = vmatpush1.msra.mxu0 0.0
    %3276 = vmatprep.subr.mxu0 0.0
    %3277 = vmatpush1.msra.mxu0 0.0
    %3278 = vmatprep.subr.mxu0 0.0
    %3279 = vmatpush1.msra.mxu0 0.0
    %3280 = vmatprep.mubr.f32.mxu0 0.0
    %3281 = vmatmul.mubr.f32.gmra.mrb[0].mxu0 %v3214
    %v3282 = vpop.f32.mrb[0].mxu0
    %v3283 = vadd.f32 0.0, %v3282
    %v3284 = vpop.f32.mrb[0].mxu0
    %v3285 = vadd.f32 0.0, %v3284
    %3286 = vdwg.mxu0
    %v3287 = vadd.f32 %v3211, %v3283
    %v3288 = vadd.f32 %v3212, %v3285
    %v3289 = vxor.u32 %v3287, 2147483648
    %v3290 = vxor.u32 %v3288, 2147483648
    %v3291 = vmul.f32 %v3289, 1.442695
    %v3292 = vpow.pop %v3291
    %v3293 = vmul.f32 %v3290, 1.442695
    %v3294 = vpow.pop %v3293
    %v3295 = vadd.f32 %v3292, 1.0
    %v3296 = vadd.f32 %v3294, 1.0
    %v3297 = vrcp.pop %v3295
    %v3298 = vmul.f32 1.0, %v3297
    %v3299 = vrcp.pop %v3296
    %v3300 = vmul.f32 1.0, %v3299
    %v3301 = vtanh.pop %v3288
    %v3302 = vmul.f32 %v3298, %v3123
    %3304 = vrot.lane.b32.xlu0 %v3301, 64
    %v3305 = vpop.permute.xlu0 %3304
    %v3307 = vmul.f32 %v3298, %v3305
    %3309 = vrot.lane.b32.xlu0 %v3307, 64
    %v3310 = vpop.permute.xlu0 %3309
    %v3312 = vadd.f32 %v3302, %v3310
    %v3313 = vtanh.pop %v3312
    %3315 = vrot.lane.b32.xlu0 %v3313, 64
    %v3316 = vpop.permute.xlu0 %3315
    %v3318 = vmul.f32 %v3300, %v3316
    %v3320 = vsel %vm364, %v3318, 0
    %3322 = vmatprep.subr.mxu0 0.0
    %3323 = vmatpush1.msra.mxu0 %v2067
    %3324 = vmatprep.subr.mxu0 0.0
    %3325 = vmatpush1.msra.mxu0 %v2068
    %3326 = vmatprep.subr.mxu0 0.0
    %3327 = vmatpush1.msra.mxu0 %v2069
    %3328 = vmatprep.subr.mxu0 0.0
    %3329 = vmatpush1.msra.mxu0 %v2070
    %3330 = vmatprep.subr.mxu0 0.0
    %3331 = vmatpush1.msra.mxu0 %v2071
    %3332 = vmatprep.subr.mxu0 0.0
    %3333 = vmatpush1.msra.mxu0 %v2072
    %3334 = vmatprep.subr.mxu0 0.0
    %3335 = vmatpush1.msra.mxu0 %v2073
    %3336 = vmatprep.subr.mxu0 0.0
    %3337 = vmatpush1.msra.mxu0 %v2074
    %3338 = vmatprep.subr.mxu0 0.0
    %3339 = vmatpush1.msra.mxu0 0.0
    %3340 = vmatprep.subr.mxu0 0.0
    %3341 = vmatpush1.msra.mxu0 0.0
    %3342 = vmatprep.subr.mxu0 0.0
    %3343 = vmatpush1.msra.mxu0 0.0
    %3344 = vmatprep.subr.mxu0 0.0
    %3345 = vmatpush1.msra.mxu0 0.0
    %3346 = vmatprep.subr.mxu0 0.0
    %3347 = vmatpush1.msra.mxu0 0.0
    %3348 = vmatprep.subr.mxu0 0.0
    %3349 = vmatpush1.msra.mxu0 0.0
    %3350 = vmatprep.subr.mxu0 0.0
    %3351 = vmatpush1.msra.mxu0 0.0
    %3352 = vmatprep.subr.mxu0 0.0
    %3353 = vmatpush1.msra.mxu0 0.0
    %3354 = vmatprep.subr.mxu0 0.0
    %3355 = vmatpush1.msra.mxu0 0.0
    %3356 = vmatprep.subr.mxu0 0.0
    %3357 = vmatpush1.msra.mxu0 0.0
    %3358 = vmatprep.subr.mxu0 0.0
    %3359 = vmatpush1.msra.mxu0 0.0
    %3360 = vmatprep.subr.mxu0 0.0
    %3361 = vmatpush1.msra.mxu0 0.0
    %3362 = vmatprep.subr.mxu0 0.0
    %3363 = vmatpush1.msra.mxu0 0.0
    %3364 = vmatprep.subr.mxu0 0.0
    %3365 = vmatpush1.msra.mxu0 0.0
    %3366 = vmatprep.subr.mxu0 0.0
    %3367 = vmatpush1.msra.mxu0 0.0
    %3368 = vmatprep.subr.mxu0 0.0
    %3369 = vmatpush1.msra.mxu0 0.0
    %3370 = vmatprep.subr.mxu0 0.0
    %3371 = vmatpush1.msra.mxu0 0.0
    %3372 = vmatprep.subr.mxu0 0.0
    %3373 = vmatpush1.msra.mxu0 0.0
    %3374 = vmatprep.subr.mxu0 0.0
    %3375 = vmatpush1.msra.mxu0 0.0
    %3376 = vmatprep.subr.mxu0 0.0
    %3377 = vmatpush1.msra.mxu0 0.0
    %3378 = vmatprep.subr.mxu0 0.0
    %3379 = vmatpush1.msra.mxu0 0.0
    %3380 = vmatprep.subr.mxu0 0.0
    %3381 = vmatpush1.msra.mxu0 0.0
    %3382 = vmatprep.subr.mxu0 0.0
    %3383 = vmatpush1.msra.mxu0 0.0
    %3384 = vmatprep.subr.mxu0 0.0
    %3385 = vmatpush1.msra.mxu0 0.0
    %3386 = vmatprep.mubr.f32.mxu0 0.0
    %3387 = vmatmul.mubr.f32.gmra.mrb[0].mxu0 %v3320
    %v3388 = vpop.f32.mrb[0].mxu0
    %v3389 = vadd.f32 0.0, %v3388
    %v3390 = vpop.f32.mrb[0].mxu0
    %3391 = vdwg.mxu0
    %s3392 = scalar_lea.vmem [#allocation3], 48
    %3393 = vst.msk [vmem:[%s3392] sm:$0xff] %vm257, %v3389
    %v3394 = vld [vmem:[%s1557] sm:$0xff]
    %v3395 = vld [vmem:[%s1557 + $0x8] sm:$0xff]
    %s3396 = smul.addr %s252, 8
    %s3397 = scalar_lea.vmem [#allocation5], %s3396
    %v3398 = vld [vmem:[%s3397] sm:$0xff]
    %v3399 = vld [vmem:[%s3397 + $0x8] sm:$0xff]
    %v3400 = vadd.f32 %v3394, %v3398
    %v3401 = vadd.f32 %v3395, %v3399
    %v3403 = vsel %vm257, %v3389, 0
    %3405 = vmatprep.subr.mxu0 %v2060
    %3406 = vmatpush1.msra.mxu0 %v2059
    %3407 = vmatprep.subr.mxu0 %v2062
    %3408 = vmatpush1.msra.mxu0 %v2061
    %3409 = vmatprep.subr.mxu0 %v2064
    %3410 = vmatpush1.msra.mxu0 %v2063
    %3411 = vmatprep.subr.mxu0 %v2066
    %3412 = vmatpush1.msra.mxu0 %v2065
    %3413 = vmatprep.subr.mxu0 0.0
    %3414 = vmatpush1.msra.mxu0 0.0
    %3415 = vmatprep.subr.mxu0 0.0
    %3416 = vmatpush1.msra.mxu0 0.0
    %3417 = vmatprep.subr.mxu0 0.0
    %3418 = vmatpush1.msra.mxu0 0.0
    %3419 = vmatprep.subr.mxu0 0.0
    %3420 = vmatpush1.msra.mxu0 0.0
    %3421 = vmatprep.subr.mxu0 0.0
    %3422 = vmatpush1.msra.mxu0 0.0
    %3423 = vmatprep.subr.mxu0 0.0
    %3424 = vmatpush1.msra.mxu0 0.0
    %3425 = vmatprep.subr.mxu0 0.0
    %3426 = vmatpush1.msra.mxu0 0.0
    %3427 = vmatprep.subr.mxu0 0.0
    %3428 = vmatpush1.msra.mxu0 0.0
    %3429 = vmatprep.subr.mxu0 0.0
    %3430 = vmatpush1.msra.mxu0 0.0
    %3431 = vmatprep.subr.mxu0 0.0
    %3432 = vmatpush1.msra.mxu0 0.0
    %3433 = vmatprep.subr.mxu0 0.0
    %3434 = vmatpush1.msra.mxu0 0.0
    %3435 = vmatprep.subr.mxu0 0.0
    %3436 = vmatpush1.msra.mxu0 0.0
    %3437 = vmatprep.subr.mxu0 0.0
    %3438 = vmatpush1.msra.mxu0 0.0
    %3439 = vmatprep.subr.mxu0 0.0
    %3440 = vmatpush1.msra.mxu0 0.0
    %3441 = vmatprep.subr.mxu0 0.0
    %3442 = vmatpush1.msra.mxu0 0.0
    %3443 = vmatprep.subr.mxu0 0.0
    %3444 = vmatpush1.msra.mxu0 0.0
    %3445 = vmatprep.subr.mxu0 0.0
    %3446 = vmatpush1.msra.mxu0 0.0
    %3447 = vmatprep.subr.mxu0 0.0
    %3448 = vmatpush1.msra.mxu0 0.0
    %3449 = vmatprep.subr.mxu0 0.0
    %3450 = vmatpush1.msra.mxu0 0.0
    %3451 = vmatprep.subr.mxu0 0.0
    %3452 = vmatpush1.msra.mxu0 0.0
    %3453 = vmatprep.subr.mxu0 0.0
    %3454 = vmatpush1.msra.mxu0 0.0
    %3455 = vmatprep.subr.mxu0 0.0
    %3456 = vmatpush1.msra.mxu0 0.0
    %3457 = vmatprep.subr.mxu0 0.0
    %3458 = vmatpush1.msra.mxu0 0.0
    %3459 = vmatprep.subr.mxu0 0.0
    %3460 = vmatpush1.msra.mxu0 0.0
    %3461 = vmatprep.subr.mxu0 0.0
    %3462 = vmatpush1.msra.mxu0 0.0
    %3463 = vmatprep.subr.mxu0 0.0
    %3464 = vmatpush1.msra.mxu0 0.0
    %3465 = vmatprep.subr.mxu0 0.0
    %3466 = vmatpush1.msra.mxu0 0.0
    %3467 = vmatprep.subr.mxu0 0.0
    %3468 = vmatpush1.msra.mxu0 0.0
    %3469 = vmatprep.mubr.f32.mxu0 0.0
    %3470 = vmatmul.mubr.f32.gmra.mrb[0].mxu0 %v3403
    %v3471 = vpop.f32.mrb[0].mxu0
    %v3472 = vadd.f32 0.0, %v3471
    %v3473 = vpop.f32.mrb[0].mxu0
    %v3474 = vadd.f32 0.0, %v3473
    %3475 = vdwg.mxu0
    %v3476 = vadd.f32 %v3400, %v3472
    %v3477 = vadd.f32 %v3401, %v3474
    %v3478 = vxor.u32 %v3476, 2147483648
    %v3479 = vxor.u32 %v3477, 2147483648
    %v3480 = vmul.f32 %v3478, 1.442695
    %v3481 = vpow.pop %v3480
    %v3482 = vmul.f32 %v3479, 1.442695
    %v3483 = vpow.pop %v3482
    %v3484 = vadd.f32 %v3481, 1.0
    %v3485 = vadd.f32 %v3483, 1.0
    %v3486 = vrcp.pop %v3484
    %v3487 = vmul.f32 1.0, %v3486
    %v3488 = vrcp.pop %v3485
    %v3489 = vmul.f32 1.0, %v3488
    %v3490 = vtanh.pop %v3477
    %v3491 = vmul.f32 %v3487, %v3312
    %3493 = vrot.lane.b32.xlu0 %v3490, 64
    %v3494 = vpop.permute.xlu0 %3493
    %v3496 = vmul.f32 %v3487, %v3494
    %3498 = vrot.lane.b32.xlu0 %v3496, 64
    %v3499 = vpop.permute.xlu0 %3498
    %v3501 = vadd.f32 %v3491, %v3499
    %v3502 = vtanh.pop %v3501
    %3504 = vrot.lane.b32.xlu0 %v3502, 64
    %v3505 = vpop.permute.xlu0 %3504
    %v3507 = vmul.f32 %v3489, %v3505
    %v3509 = vsel %vm364, %v3507, 0
    %3511 = vmatprep.subr.mxu0 0.0
    %3512 = vmatpush1.msra.mxu0 %v2067
    %3513 = vmatprep.subr.mxu0 0.0
    %3514 = vmatpush1.msra.mxu0 %v2068
    %3515 = vmatprep.subr.mxu0 0.0
    %3516 = vmatpush1.msra.mxu0 %v2069
    %3517 = vmatprep.subr.mxu0 0.0
    %3518 = vmatpush1.msra.mxu0 %v2070
    %3519 = vmatprep.subr.mxu0 0.0
    %3520 = vmatpush1.msra.mxu0 %v2071
    %3521 = vmatprep.subr.mxu0 0.0
    %3522 = vmatpush1.msra.mxu0 %v2072
    %3523 = vmatprep.subr.mxu0 0.0
    %3524 = vmatpush1.msra.mxu0 %v2073
    %3525 = vmatprep.subr.mxu0 0.0
    %3526 = vmatpush1.msra.mxu0 %v2074
    %3527 = vmatprep.subr.mxu0 0.0
    %3528 = vmatpush1.msra.mxu0 0.0
    %3529 = vmatprep.subr.mxu0 0.0
    %3530 = vmatpush1.msra.mxu0 0.0
    %3531 = vmatprep.subr.mxu0 0.0
    %3532 = vmatpush1.msra.mxu0 0.0
    %3533 = vmatprep.subr.mxu0 0.0
    %3534 = vmatpush1.msra.mxu0 0.0
    %3535 = vmatprep.subr.mxu0 0.0
    %3536 = vmatpush1.msra.mxu0 0.0
    %3537 = vmatprep.subr.mxu0 0.0
    %3538 = vmatpush1.msra.mxu0 0.0
    %3539 = vmatprep.subr.mxu0 0.0
    %3540 = vmatpush1.msra.mxu0 0.0
    %3541 = vmatprep.subr.mxu0 0.0
    %3542 = vmatpush1.msra.mxu0 0.0
    %3543 = vmatprep.subr.mxu0 0.0
    %3544 = vmatpush1.msra.mxu0 0.0
    %3545 = vmatprep.subr.mxu0 0.0
    %3546 = vmatpush1.msra.mxu0 0.0
    %3547 = vmatprep.subr.mxu0 0.0
    %3548 = vmatpush1.msra.mxu0 0.0
    %3549 = vmatprep.subr.mxu0 0.0
    %3550 = vmatpush1.msra.mxu0 0.0
    %3551 = vmatprep.subr.mxu0 0.0
    %3552 = vmatpush1.msra.mxu0 0.0
    %3553 = vmatprep.subr.mxu0 0.0
    %3554 = vmatpush1.msra.mxu0 0.0
    %3555 = vmatprep.subr.mxu0 0.0
    %3556 = vmatpush1.msra.mxu0 0.0
    %3557 = vmatprep.subr.mxu0 0.0
    %3558 = vmatpush1.msra.mxu0 0.0
    %3559 = vmatprep.subr.mxu0 0.0
    %3560 = vmatpush1.msra.mxu0 0.0
    %3561 = vmatprep.subr.mxu0 0.0
    %3562 = vmatpush1.msra.mxu0 0.0
    %3563 = vmatprep.subr.mxu0 0.0
    %3564 = vmatpush1.msra.mxu0 0.0
    %3565 = vmatprep.subr.mxu0 0.0
    %3566 = vmatpush1.msra.mxu0 0.0
    %3567 = vmatprep.subr.mxu0 0.0
    %3568 = vmatpush1.msra.mxu0 0.0
    %3569 = vmatprep.subr.mxu0 0.0
    %3570 = vmatpush1.msra.mxu0 0.0
    %3571 = vmatprep.subr.mxu0 0.0
    %3572 = vmatpush1.msra.mxu0 0.0
    %3573 = vmatprep.subr.mxu0 0.0
    %3574 = vmatpush1.msra.mxu0 0.0
    %3575 = vmatprep.mubr.f32.mxu0 0.0
    %3576 = vmatmul.mubr.f32.gmra.mrb[0].mxu0 %v3509
    %v3577 = vpop.f32.mrb[0].mxu0
    %v3578 = vadd.f32 0.0, %v3577
    %v3579 = vpop.f32.mrb[0].mxu0
    %3580 = vdwg.mxu0
    %s3581 = scalar_lea.vmem [#allocation3], 56
    %3582 = vst.msk [vmem:[%s3581] sm:$0xff] %vm257, %v3578
    %v3583 = vld [vmem:[#allocation3 + $0x38] sm:$0xff]
    %v3584 = vld [vmem:[#allocation3] sm:$0xff]
    %v3585 = vld [vmem:[%s10] sm:$0xff]
    %v3586 = vld [vmem:[%s10 + $0x8] sm:$0xff]
    %v3587 = vld [vmem:[%s10 + $0x10] sm:$0xff]
    %v3588 = vld [vmem:[%s10 + $0x18] sm:$0xff]
    %v3589 = vld [vmem:[%s11] sm:$0xff]
    %v3590 = vld [vmem:[%s11 + $0x8] sm:$0xff]
    %v3591 = vld [vmem:[%s11 + $0x10] sm:$0xff]
    %v3592 = vld [vmem:[%s11 + $0x18] sm:$0xff]
    %v3594 = vsel %vm257, %v3584, 0
    %3596 = vmatprep.subr.mxu0 0.0
    %3597 = vmatpush1.msra.mxu0 %v3589
    %3598 = vmatprep.subr.mxu0 0.0
    %3599 = vmatpush1.msra.mxu0 %v3590
    %3600 = vmatprep.subr.mxu0 0.0
    %3601 = vmatpush1.msra.mxu0 %v3591
    %3602 = vmatprep.subr.mxu0 0.0
    %3603 = vmatpush1.msra.mxu0 %v3592
    %3604 = vmatprep.subr.mxu0 0.0
    %3605 = vmatpush1.msra.mxu0 0.0
    %3606 = vmatprep.subr.mxu0 0.0
    %3607 = vmatpush1.msra.mxu0 0.0
    %3608 = vmatprep.subr.mxu0 0.0
    %3609 = vmatpush1.msra.mxu0 0.0
    %3610 = vmatprep.subr.mxu0 0.0
    %3611 = vmatpush1.msra.mxu0 0.0
    %3612 = vmatprep.subr.mxu0 0.0
    %3613 = vmatpush1.msra.mxu0 0.0
    %3614 = vmatprep.subr.mxu0 0.0
    %3615 = vmatpush1.msra.mxu0 0.0
    %3616 = vmatprep.subr.mxu0 0.0
    %3617 = vmatpush1.msra.mxu0 0.0
    %3618 = vmatprep.subr.mxu0 0.0
    %3619 = vmatpush1.msra.mxu0 0.0
    %3620 = vmatprep.subr.mxu0 0.0
    %3621 = vmatpush1.msra.mxu0 0.0
    %3622 = vmatprep.subr.mxu0 0.0
    %3623 = vmatpush1.msra.mxu0 0.0
    %3624 = vmatprep.subr.mxu0 0.0
    %3625 = vmatpush1.msra.mxu0 0.0
    %3626 = vmatprep.subr.mxu0 0.0
    %3627 = vmatpush1.msra.mxu0 0.0
    %3628 = vmatprep.subr.mxu0 0.0
    %3629 = vmatpush1.msra.mxu0 0.0
    %3630 = vmatprep.subr.mxu0 0.0
    %3631 = vmatpush1.msra.mxu0 0.0
    %3632 = vmatprep.subr.mxu0 0.0
    %3633 = vmatpush1.msra.mxu0 0.0
    %3634 = vmatprep.subr.mxu0 0.0
    %3635 = vmatpush1.msra.mxu0 0.0
    %3636 = vmatprep.subr.mxu0 0.0
    %3637 = vmatpush1.msra.mxu0 0.0
    %3638 = vmatprep.subr.mxu0 0.0
    %3639 = vmatpush1.msra.mxu0 0.0
    %3640 = vmatprep.subr.mxu0 0.0
    %3641 = vmatpush1.msra.mxu0 0.0
    %3642 = vmatprep.subr.mxu0 0.0
    %3643 = vmatpush1.msra.mxu0 0.0
    %3644 = vmatprep.subr.mxu0 0.0
    %3645 = vmatpush1.msra.mxu0 0.0
    %3646 = vmatprep.subr.mxu0 0.0
    %3647 = vmatpush1.msra.mxu0 0.0
    %3648 = vmatprep.subr.mxu0 0.0
    %3649 = vmatpush1.msra.mxu0 0.0
    %3650 = vmatprep.subr.mxu0 0.0
    %3651 = vmatpush1.msra.mxu0 0.0
    %3652 = vmatprep.subr.mxu0 0.0
    %3653 = vmatpush1.msra.mxu0 0.0
    %3654 = vmatprep.subr.mxu0 0.0
    %3655 = vmatpush1.msra.mxu0 0.0
    %3656 = vmatprep.subr.mxu0 0.0
    %3657 = vmatpush1.msra.mxu0 0.0
    %3658 = vmatprep.subr.mxu0 0.0
    %3659 = vmatpush1.msra.mxu0 0.0
    %3660 = vmatprep.mubr.f32.mxu0 0.0
    %3661 = vmatmul.mubr.f32.gmra.mrb[0].mxu0 %v3594
    %v3662 = vpop.f32.mrb[0].mxu0
    %v3663 = vadd.f32 0.0, %v3662
    %v3664 = vpop.f32.mrb[0].mxu0
    %3665 = vdwg.mxu0
    %v3667 = vsel %vm257, %v3583, 0
    %3669 = vmatprep.subr.mxu0 0.0
    %3670 = vmatpush1.msra.mxu0 %v3585
    %3671 = vmatprep.subr.mxu0 0.0
    %3672 = vmatpush1.msra.mxu0 %v3586
    %3673 = vmatprep.subr.mxu0 0.0
    %3674 = vmatpush1.msra.mxu0 %v3587
    %3675 = vmatprep.subr.mxu0 0.0
    %3676 = vmatpush1.msra.mxu0 %v3588
    %3677 = vmatprep.subr.mxu0 0.0
    %3678 = vmatpush1.msra.mxu0 0.0
    %3679 = vmatprep.subr.mxu0 0.0
    %3680 = vmatpush1.msra.mxu0 0.0
    %3681 = vmatprep.subr.mxu0 0.0
    %3682 = vmatpush1.msra.mxu0 0.0
    %3683 = vmatprep.subr.mxu0 0.0
    %3684 = vmatpush1.msra.mxu0 0.0
    %3685 = vmatprep.subr.mxu0 0.0
    %3686 = vmatpush1.msra.mxu0 0.0
    %3687 = vmatprep.subr.mxu0 0.0
    %3688 = vmatpush1.msra.mxu0 0.0
    %3689 = vmatprep.subr.mxu0 0.0
    %3690 = vmatpush1.msra.mxu0 0.0
    %3691 = vmatprep.subr.mxu0 0.0
    %3692 = vmatpush1.msra.mxu0 0.0
    %3693 = vmatprep.subr.mxu0 0.0
    %3694 = vmatpush1.msra.mxu0 0.0
    %3695 = vmatprep.subr.mxu0 0.0
    %3696 = vmatpush1.msra.mxu0 0.0
    %3697 = vmatprep.subr.mxu0 0.0
    %3698 = vmatpush1.msra.mxu0 0.0
    %3699 = vmatprep.subr.mxu0 0.0
    %3700 = vmatpush1.msra.mxu0 0.0
    %3701 = vmatprep.subr.mxu0 0.0
    %3702 = vmatpush1.msra.mxu0 0.0
    %3703 = vmatprep.subr.mxu0 0.0
    %3704 = vmatpush1.msra.mxu0 0.0
    %3705 = vmatprep.subr.mxu0 0.0
    %3706 = vmatpush1.msra.mxu0 0.0
    %3707 = vmatprep.subr.mxu0 0.0
    %3708 = vmatpush1.msra.mxu0 0.0
    %3709 = vmatprep.subr.mxu0 0.0
    %3710 = vmatpush1.msra.mxu0 0.0
    %3711 = vmatprep.subr.mxu0 0.0
    %3712 = vmatpush1.msra.mxu0 0.0
    %3713 = vmatprep.subr.mxu0 0.0
    %3714 = vmatpush1.msra.mxu0 0.0
    %3715 = vmatprep.subr.mxu0 0.0
    %3716 = vmatpush1.msra.mxu0 0.0
    %3717 = vmatprep.subr.mxu0 0.0
    %3718 = vmatpush1.msra.mxu0 0.0
    %3719 = vmatprep.subr.mxu0 0.0
    %3720 = vmatpush1.msra.mxu0 0.0
    %3721 = vmatprep.subr.mxu0 0.0
    %3722 = vmatpush1.msra.mxu0 0.0
    %3723 = vmatprep.subr.mxu0 0.0
    %3724 = vmatpush1.msra.mxu0 0.0
    %3725 = vmatprep.subr.mxu0 0.0
    %3726 = vmatpush1.msra.mxu0 0.0
    %3727 = vmatprep.subr.mxu0 0.0
    %3728 = vmatpush1.msra.mxu0 0.0
    %3729 = vmatprep.subr.mxu0 0.0
    %3730 = vmatpush1.msra.mxu0 0.0
    %3731 = vmatprep.subr.mxu0 0.0
    %3732 = vmatpush1.msra.mxu0 0.0
    %3733 = vmatprep.mubr.f32.mxu0 0.0
    %3734 = vmatmul.mubr.f32.gmra.mrb[0].mxu0 %v3667
    %v3735 = vpop.f32.mrb[0].mxu0
    %v3736 = vadd.f32 %v3663, %v3735
    %v3737 = vpop.f32.mrb[0].mxu0
    %3738 = vdwg.mxu0
    %v3739 = vld [vmem:[%s12] sm:$0x1]
    %v3741 = vlaneseq
    %v3742 = vshrl.u32 %v3741, 7
    %v3743 = vsub.s32 0, %v3742
    %v3744 = vrot.slane %v3739, %v3743
    %v3746 = vadd.f32 %v3736, %v3744
    %vm3747 = vcmask 23552
    %3748 = vst.msk [vmem:[%s13] sm:$0xff] %vm3747, %v3746
    // Predicated region
    $region58: #{tpu_custom_call.1} parent=1 // pred_check
      _
    $region59: #{tpu_custom_call.1} parent=1 // pred_check_branch
      %3750 = sbr.rel (0) target = $region61
    $region60: #{tpu_custom_call.1} parent=1 // pred_region
      _
    $region61: #{tpu_custom_call.1} parent=1 // pred_fallthru
      _
    // Predicated region
    $region62: #{tpu_custom_call.1} parent=1 // pred_check
      _
    $region63: #{tpu_custom_call.1} parent=1 // pred_check_branch
      %3752 = sbr.rel (0) target = $region65
    $region64: #{tpu_custom_call.1} parent=1 // pred_region
      _
    $region65: #{tpu_custom_call.1} parent=1 // pred_fallthru
      _
    %3753 = vsyncpa [#allocation7], 1

</llo_original>
